<compile_context>
chip_gen: v5e
topology: v5e:2x2
jax: 0.10.0
libtpu: 0.0.40
codegen_flags: <defaults>
</compile_context>

<pallas_src>
import functools

import jax
import jax.numpy as jnp
from jax import lax
from jax.experimental import pallas as pl
from jax.experimental.pallas import tpu as pltpu


def _make_base_grid(gh, gw):
    # Matches AffineGridGenFunction: grid[:,:,0]=y, grid[:,:,1]=x, grid[:,:,2]=1,
    # with coords from arange(-1, 1, 2/size) -> -1 + 2*i/size.  (Reference only.)
    ys = -1.0 + 2.0 * jnp.arange(gh, dtype=jnp.float32) / gh
    xs = -1.0 + 2.0 * jnp.arange(gw, dtype=jnp.float32) / gw
    gy = jnp.broadcast_to(ys[:, None], (gh, gw))
    gx = jnp.broadcast_to(xs[None, :], (gh, gw))
    ones = jnp.ones((gh, gw), jnp.float32)
    return jnp.stack([gy, gx, ones], axis=-1).reshape(gh * gw, 3)


def _transformer_kernel(theta_ref, img_ref, rmat_ref, out_ref, *, H, W, C, GH, GW):
    """One (batch-block, output-pixel-tile) per grid step.

    theta_ref: (B, 6)        f32, SMEM  -- row-major flattened (2, 3) affine matrices
    img_ref  : (BB, H, W*C)  bf16, VMEM -- image block (resident across the tile axis)
    rmat_ref : (W*C, C)      f32, VMEM  -- constant channel-fold matrix (k%C == c)
    out_ref  : (BB, TP, C)              -- sampled output tile
    """
    BB, TP, _ = out_ref.shape
    WC = W * C
    t = pl.program_id(1)

    # --- base grid coords for this tile, computed from iota (no DMA of a base grid) ---
    p = (lax.broadcasted_iota(jnp.int32, (TP, 1), 0) + t * TP).astype(jnp.float32)
    rowf = jnp.floor((p + 0.5) * (1.0 / GW))        # exact grid-row index (p << 2^22)
    colf = p - rowf * GW
    by = 2.0 * rowf / GH - 1.0                      # arange(-1, 1, 2/GH) semantics
    bx = 2.0 * colf / GW - 1.0

    hrows = lax.broadcasted_iota(jnp.int32, (TP, H), 1)
    kcols = lax.broadcasted_iota(jnp.int32, (TP, WC), 1)
    rmat = rmat_ref[...]

    for j in range(BB):                             # small static unroll over batch block
        b = pl.program_id(0) * BB + j

        # --- AffineGridGen: g = [y, x, 1] @ theta^T (row 0 -> y, row 1 -> x) ---
        t00 = theta_ref[b, 0]; t01 = theta_ref[b, 1]; t02 = theta_ref[b, 2]
        t10 = theta_ref[b, 3]; t11 = theta_ref[b, 4]; t12 = theta_ref[b, 5]
        gy = by * t00 + bx * t01 + t02              # (TP, 1)
        gx = by * t10 + bx * t11 + t12              # (TP, 1)

        # --- bilinear weights / integer corner indices ---
        yf = (gy + 1.0) * (0.5 * (H - 1))
        xf = (gx + 1.0) * (0.5 * (W - 1))
        y0f = jnp.floor(yf)
        x0f = jnp.floor(xf)
        wy1 = yf - y0f; wy0 = 1.0 - wy1
        wx1 = xf - x0f; wx0 = 1.0 - wx1
        # Clip before int cast only to avoid int32 overflow aliasing; out-of-range indices
        # simply match no column below, which reproduces the zero-padding semantics.
        y0i = jnp.clip(y0f, -2.0, float(H + 1)).astype(jnp.int32)
        x0i = jnp.clip(x0f, -2.0, float(W + 1)).astype(jnp.int32)

        # --- stage 1: y-selection matrix (weights fused into the select), bf16 MXU matmul ---
        sy = (jnp.where(hrows == y0i, wy0, 0.0)
              + jnp.where(hrows == (y0i + 1), wy1, 0.0)).astype(jnp.bfloat16)   # (TP, H)
        r = jnp.dot(sy, img_ref[j], preferred_element_type=jnp.float32)         # (TP, WC)

        # --- stage 2: x-weight mask over the W*C lane dim (range compare, no int div) ---
        d = kcols - x0i * C
        wxc = (jnp.where((d >= 0) & (d < C), wx0, 0.0)
               + jnp.where((d >= C) & (d < 2 * C), wx1, 0.0))                    # (TP, WC)

        # --- stage 3: fold W groups onto the C output channels (tiny MXU matmul) ---
        out_ref[j] = jnp.dot(wxc * r, rmat,
                             preferred_element_type=jnp.float32).astype(out_ref.dtype)


def _pick_batch_block(b, cap=8):
    for d in range(min(b, cap), 0, -1):
        if b % d == 0:
            return d
    return 1


def _pick_tile(ghw, h, wc):
    # Bound the live per-tile f32 intermediates (~Sy + R + Wxc + contrib) to ~8 MiB.
    budget_rows = max(8, (8 * 1024 * 1024) // (4 * (h + 3 * wc)))
    if ghw <= budget_rows:
        return ghw
    cap = (budget_rows // 8) * 8
    for d in range(cap, 7, -1):
        if ghw % d == 0 and d % 8 == 0:
            return d
    return ghw  # no suitable divisor; fall back to a single tile


def transformer_forward(input1, input2, grid_hw=None, *, interpret=False):
    """Forward of DLAN.Transformer.

    input1: images, BHWC (B, H, W, C)
    input2: affine matrices theta, (B, 2, 3)
    grid_hw: (GH, GW) of AffineGridGen; defaults to the image spatial size.
    """
    B, H, W, C = input1.shape
    GH, GW = grid_hw if grid_hw is not None else (H, W)
    GHW = GH * GW
    WC = W * C

    BB = _pick_batch_block(B)
    TP = _pick_tile(GHW, H, WC)

    theta = input2.reshape(B, 6).astype(jnp.float32)            # (B, 6) -> SMEM
    img = input1.reshape(B, H, WC).astype(jnp.bfloat16)         # (B, H, W*C), bf16 MXU input
    # Constant channel-fold matrix: rmat[k, c] = (k % C == c).
    rmat = (jnp.arange(WC, dtype=jnp.int32)[:, None] % C
            == jnp.arange(C, dtype=jnp.int32)[None, :]).astype(jnp.float32)

    kernel = functools.partial(_transformer_kernel, H=H, W=W, C=C, GH=GH, GW=GW)

    out_flat = pl.pallas_call(
        kernel,
        out_shape=jax.ShapeDtypeStruct((B, GHW, C), input1.dtype),
        grid=(B // BB, GHW // TP),
        in_specs=[
            pl.BlockSpec(memory_space=pltpu.MemorySpace.SMEM),          # theta (scalars)
            pl.BlockSpec((BB, H, WC), lambda b, t: (b, 0, 0)),          # image (resident over t)
            pl.BlockSpec((WC, C), lambda b, t: (0, 0)),                 # channel-fold matrix
        ],
        out_specs=pl.BlockSpec((BB, TP, C), lambda b, t: (b, t, 0)),
        compiler_params=pltpu.CompilerParams(
            dimension_semantics=("parallel", "parallel"),
            vmem_limit_bytes=32 * 1024 * 1024,
        ),
        interpret=interpret,
    )(theta, img, rmat)
    return out_flat.reshape(B, GH, GW, C)


def transformer_reference(input1, input2, grid_hw=None):
    """Pure-JAX f32 reference (same math, gather via take_along_axis)."""
    B, H, W, C = input1.shape
    GH, GW = grid_hw if grid_hw is not None else (H, W)
    HW, GHW = H * W, GH * GW
    base = _make_base_grid(GH, GW)                              # (GHW, 3)
    theta = input2.astype(jnp.float32)                          # (B, 2, 3)
    g = jnp.einsum('pk,bjk->bpj', base, theta)                  # (B, GHW, 2)
    yf = (g[..., 0] + 1.0) * 0.5 * (H - 1)
    xf = (g[..., 1] + 1.0) * 0.5 * (W - 1)
    y0 = jnp.floor(yf); x0 = jnp.floor(xf)
    wy1 = yf - y0; wy0 = 1.0 - wy1
    wx1 = xf - x0; wx0 = 1.0 - wx1
    imgf = input1.reshape(B, HW, C).astype(jnp.float32)
    out = jnp.zeros((B, GHW, C), jnp.float32)
    for dy, wy in ((0.0, wy0), (1.0, wy1)):
        for dx, wx in ((0.0, wx0), (1.0, wx1)):
            yi = y0 + dy
            xi = x0 + dx
            valid = (yi >= 0) & (yi <= H - 1) & (xi >= 0) & (xi <= W - 1)
            w = jnp.where(valid, wy * wx, 0.0)                               # (B, GHW)
            idx = jnp.clip(yi * W + xi, 0, HW - 1).astype(jnp.int32)         # (B, GHW)
            vals = jnp.take_along_axis(imgf, idx[..., None], axis=1)         # (B, GHW, C)
            out = out + w[..., None] * vals
    return out.reshape(B, GH, GW, C).astype(input1.dtype)


if __name__ == "__main__":
    key = jax.random.PRNGKey(0)
    k1, k2 = jax.random.split(key)

    B, H, W, C = 2, 16, 16, 4                     # Transformer(w=16, h=16)-sized grid
    input1 = jax.random.normal(k1, (B, H, W, C), dtype=jnp.float32)      # images, BHWC
    identity = jnp.array([[1.0, 0.0, 0.0], [0.0, 1.0, 0.0]], jnp.float32)
    input2 = identity[None] + 0.1 * jax.random.normal(k2, (B, 2, 3), dtype=jnp.float32)

    out = transformer_forward(input1, input2)
    out = jax.block_until_ready(out)

    ref = transformer_reference(input1, input2)
    assert out.shape == (B, H, W, C), out.shape
    max_err = float(jnp.max(jnp.abs(out - ref)))
    # bf16 MXU inputs for the sampling matmul -> loosened tolerance vs the f32 reference.
    assert jnp.allclose(out, ref, atol=5e-2, rtol=5e-2), f"max_err={max_err}"

    print("KERNEL_OK")
</pallas_src>

<mosaic_0001>
module attributes {stable_mosaic.version = 11 : i64} {
  func.func @_transformer_kernel(%arg0: i32, %arg1: i32, %arg2: memref<2x6xf32, #tpu.memory_space<smem>>, %arg3: memref<2x16x64xbf16, #tpu.memory_space<vmem>>, %arg4: memref<64x4xf32, #tpu.memory_space<vmem>>, %arg5: memref<2x256x4xf32, #tpu.memory_space<vmem>>) attributes {dimension_semantics = [#tpu.dimension_semantics<parallel>, #tpu.dimension_semantics<parallel>], iteration_bounds = array<i64: 1, 1>, scalar_prefetch = 0 : i64, scratch_operands = 0 : i64, tpu.core_type = #tpu.core_type<tc>, window_params = [{transform_indices = @transform_0, window_bounds = array<i64: 2, 6>}, {transform_indices = @transform_1, window_bounds = array<i64: 2, 16, 64>}, {pipeline_mode = #tpu.pipeline_mode<synchronous>, transform_indices = @transform_2, window_bounds = array<i64: 64, 4>}, {transform_indices = @transform_3, window_bounds = array<i64: 2, 256, 4>}]} {
    %0 = tpu.iota {dimensions = array<i32: 0>} : vector<256x1xi32>
    %c256_i32 = arith.constant 256 : i32
    %1 = arith.muli %arg1, %c256_i32 : i32
    %2 = vector.broadcast %1 : i32 to vector<256x1xi32>
    %3 = arith.addi %0, %2 : vector<256x1xi32>
    %4 = arith.sitofp %3 : vector<256x1xi32> to vector<256x1xf32>
    %cst = arith.constant 5.000000e-01 : f32
    %5 = vector.broadcast %cst : f32 to vector<256x1xf32>
    %6 = arith.addf %4, %5 : vector<256x1xf32>
    %cst_0 = arith.constant 6.250000e-02 : f32
    %7 = vector.broadcast %cst_0 : f32 to vector<256x1xf32>
    %8 = arith.mulf %6, %7 : vector<256x1xf32>
    %9 = math.floor %8 : vector<256x1xf32>
    %cst_1 = arith.constant 1.600000e+01 : f32
    %10 = vector.broadcast %cst_1 : f32 to vector<256x1xf32>
    %11 = arith.mulf %9, %10 : vector<256x1xf32>
    %12 = arith.subf %4, %11 : vector<256x1xf32>
    %cst_2 = arith.constant 2.000000e+00 : f32
    %13 = vector.broadcast %cst_2 : f32 to vector<256x1xf32>
    %14 = arith.mulf %13, %9 : vector<256x1xf32>
    %cst_3 = arith.constant 1.600000e+01 : f32
    %15 = vector.broadcast %cst_3 : f32 to vector<256x1xf32>
    %16 = arith.divf %14, %15 : vector<256x1xf32>
    %cst_4 = arith.constant 1.000000e+00 : f32
    %17 = vector.broadcast %cst_4 : f32 to vector<256x1xf32>
    %18 = arith.subf %16, %17 : vector<256x1xf32>
    %cst_5 = arith.constant 2.000000e+00 : f32
    %19 = vector.broadcast %cst_5 : f32 to vector<256x1xf32>
    %20 = arith.mulf %19, %12 : vector<256x1xf32>
    %cst_6 = arith.constant 1.600000e+01 : f32
    %21 = vector.broadcast %cst_6 : f32 to vector<256x1xf32>
    %22 = arith.divf %20, %21 : vector<256x1xf32>
    %cst_7 = arith.constant 1.000000e+00 : f32
    %23 = vector.broadcast %cst_7 : f32 to vector<256x1xf32>
    %24 = arith.subf %22, %23 : vector<256x1xf32>
    %25 = tpu.iota {dimensions = array<i32: 1>} : vector<256x16xi32>
    %26 = tpu.iota {dimensions = array<i32: 1>} : vector<256x64xi32>
    %c0 = arith.constant 0 : index
    %c0_8 = arith.constant 0 : index
    %27 = vector.load %arg4[%c0, %c0_8] : memref<64x4xf32, #tpu.memory_space<vmem>>, vector<64x4xf32>
    %c2_i32 = arith.constant 2 : i32
    %28 = arith.muli %arg0, %c2_i32 : i32
    %c0_i32 = arith.constant 0 : i32
    %29 = arith.addi %28, %c0_i32 : i32
    %30 = arith.index_cast %29 : i32 to index
    %c0_9 = arith.constant 0 : index
    %31 = memref.load %arg2[%30, %c0_9] : memref<2x6xf32, #tpu.memory_space<smem>>
    %32 = arith.index_cast %29 : i32 to index
    %c1 = arith.constant 1 : index
    %33 = memref.load %arg2[%32, %c1] : memref<2x6xf32, #tpu.memory_space<smem>>
    %34 = arith.index_cast %29 : i32 to index
    %c2 = arith.constant 2 : index
    %35 = memref.load %arg2[%34, %c2] : memref<2x6xf32, #tpu.memory_space<smem>>
    %36 = arith.index_cast %29 : i32 to index
    %c3 = arith.constant 3 : index
    %37 = memref.load %arg2[%36, %c3] : memref<2x6xf32, #tpu.memory_space<smem>>
    %38 = arith.index_cast %29 : i32 to index
    %c4 = arith.constant 4 : index
    %39 = memref.load %arg2[%38, %c4] : memref<2x6xf32, #tpu.memory_space<smem>>
    %40 = arith.index_cast %29 : i32 to index
    %c5 = arith.constant 5 : index
    %41 = memref.load %arg2[%40, %c5] : memref<2x6xf32, #tpu.memory_space<smem>>
    %42 = vector.broadcast %31 : f32 to vector<256x1xf32>
    %43 = arith.mulf %18, %42 : vector<256x1xf32>
    %44 = vector.broadcast %33 : f32 to vector<256x1xf32>
    %45 = arith.mulf %24, %44 : vector<256x1xf32>
    %46 = arith.addf %43, %45 : vector<256x1xf32>
    %47 = vector.broadcast %35 : f32 to vector<256x1xf32>
    %48 = arith.addf %46, %47 : vector<256x1xf32>
    %49 = vector.broadcast %37 : f32 to vector<256x1xf32>
    %50 = arith.mulf %18, %49 : vector<256x1xf32>
    %51 = vector.broadcast %39 : f32 to vector<256x1xf32>
    %52 = arith.mulf %24, %51 : vector<256x1xf32>
    %53 = arith.addf %50, %52 : vector<256x1xf32>
    %54 = vector.broadcast %41 : f32 to vector<256x1xf32>
    %55 = arith.addf %53, %54 : vector<256x1xf32>
    %cst_10 = arith.constant 1.000000e+00 : f32
    %56 = vector.broadcast %cst_10 : f32 to vector<256x1xf32>
    %57 = arith.addf %48, %56 : vector<256x1xf32>
    %cst_11 = arith.constant 7.500000e+00 : f32
    %58 = vector.broadcast %cst_11 : f32 to vector<256x1xf32>
    %59 = arith.mulf %57, %58 : vector<256x1xf32>
    %cst_12 = arith.constant 1.000000e+00 : f32
    %60 = vector.broadcast %cst_12 : f32 to vector<256x1xf32>
    %61 = arith.addf %55, %60 : vector<256x1xf32>
    %cst_13 = arith.constant 7.500000e+00 : f32
    %62 = vector.broadcast %cst_13 : f32 to vector<256x1xf32>
    %63 = arith.mulf %61, %62 : vector<256x1xf32>
    %64 = math.floor %59 : vector<256x1xf32>
    %65 = math.floor %63 : vector<256x1xf32>
    %66 = arith.subf %59, %64 : vector<256x1xf32>
    %cst_14 = arith.constant 1.000000e+00 : f32
    %67 = vector.broadcast %cst_14 : f32 to vector<256x1xf32>
    %68 = arith.subf %67, %66 : vector<256x1xf32>
    %69 = arith.subf %63, %65 : vector<256x1xf32>
    %cst_15 = arith.constant 1.000000e+00 : f32
    %70 = vector.broadcast %cst_15 : f32 to vector<256x1xf32>
    %71 = arith.subf %70, %69 : vector<256x1xf32>
    %cst_16 = arith.constant -2.000000e+00 : f32
    %cst_17 = arith.constant 1.700000e+01 : f32
    %72 = vector.broadcast %cst_16 : f32 to vector<256x1xf32>
    %73 = arith.maximumf %72, %64 : vector<256x1xf32>
    %74 = vector.broadcast %cst_17 : f32 to vector<256x1xf32>
    %75 = arith.minimumf %74, %73 : vector<256x1xf32>
    %76 = arith.fptosi %75 : vector<256x1xf32> to vector<256x1xi32>
    %cst_18 = arith.constant -2.000000e+00 : f32
    %cst_19 = arith.constant 1.700000e+01 : f32
    %77 = vector.broadcast %cst_18 : f32 to vector<256x1xf32>
    %78 = arith.maximumf %77, %65 : vector<256x1xf32>
    %79 = vector.broadcast %cst_19 : f32 to vector<256x1xf32>
    %80 = arith.minimumf %79, %78 : vector<256x1xf32>
    %81 = arith.fptosi %80 : vector<256x1xf32> to vector<256x1xi32>
    %82 = vector.broadcast %76 : vector<256x1xi32> to vector<256x16xi32>
    %83 = arith.cmpi eq, %25, %82 : vector<256x16xi32>
    %cst_20 = arith.constant 0.000000e+00 : f32
    %84 = vector.shape_cast %68 : vector<256x1xf32> to vector<256x1xf32>
    %85 = vector.broadcast %84 : vector<256x1xf32> to vector<256x16xf32>
    %86 = vector.broadcast %cst_20 : f32 to vector<256x16xf32>
    %87 = arith.select %83, %85, %86 : vector<256x16xi1>, vector<256x16xf32>
    %c1_i32 = arith.constant 1 : i32
    %88 = vector.broadcast %c1_i32 : i32 to vector<256x1xi32>
    %89 = arith.addi %76, %88 : vector<256x1xi32>
    %90 = vector.broadcast %89 : vector<256x1xi32> to vector<256x16xi32>
    %91 = arith.cmpi eq, %25, %90 : vector<256x16xi32>
    %cst_21 = arith.constant 0.000000e+00 : f32
    %92 = vector.shape_cast %66 : vector<256x1xf32> to vector<256x1xf32>
    %93 = vector.broadcast %92 : vector<256x1xf32> to vector<256x16xf32>
    %94 = vector.broadcast %cst_21 : f32 to vector<256x16xf32>
    %95 = arith.select %91, %93, %94 : vector<256x16xi1>, vector<256x16xf32>
    %96 = arith.addf %87, %95 : vector<256x16xf32>
    %97 = arith.truncf %96 : vector<256x16xf32> to vector<256x16xbf16>
    %c0_22 = arith.constant 0 : index
    %c0_23 = arith.constant 0 : index
    %c0_24 = arith.constant 0 : index
    %98 = vector.load %arg3[%c0_22, %c0_23, %c0_24] : memref<2x16x64xbf16, #tpu.memory_space<vmem>>, vector<1x16x64xbf16>
    %99 = vector.shape_cast %98 : vector<1x16x64xbf16> to vector<16x64xbf16>
    %cst_25 = arith.constant dense<0.000000e+00> : vector<256x64xf32>
    %100 = tpu.matmul %97, %99, %cst_25 {dimension_numbers = #tpu.dot_dimension_numbers<[1], [0], [0], [1], [0, 0, 1, 1], [], []>} : vector<256x16xbf16>, vector<16x64xbf16>, vector<256x64xf32> -> vector<256x64xf32>
    %c4_i32 = arith.constant 4 : i32
    %101 = vector.broadcast %c4_i32 : i32 to vector<256x1xi32>
    %102 = arith.muli %81, %101 : vector<256x1xi32>
    %103 = vector.broadcast %102 : vector<256x1xi32> to vector<256x64xi32>
    %104 = arith.subi %26, %103 : vector<256x64xi32>
    %c0_i32_26 = arith.constant 0 : i32
    %105 = vector.broadcast %c0_i32_26 : i32 to vector<256x64xi32>
    %106 = arith.cmpi sge, %104, %105 : vector<256x64xi32>
    %c4_i32_27 = arith.constant 4 : i32
    %107 = vector.broadcast %c4_i32_27 : i32 to vector<256x64xi32>
    %108 = arith.cmpi slt, %104, %107 : vector<256x64xi32>
    %109 = arith.andi %106, %108 : vector<256x64xi1>
    %cst_28 = arith.constant 0.000000e+00 : f32
    %110 = vector.shape_cast %71 : vector<256x1xf32> to vector<256x1xf32>
    %111 = vector.broadcast %110 : vector<256x1xf32> to vector<256x64xf32>
    %112 = vector.broadcast %cst_28 : f32 to vector<256x64xf32>
    %113 = arith.select %109, %111, %112 : vector<256x64xi1>, vector<256x64xf32>
    %c4_i32_29 = arith.constant 4 : i32
    %114 = vector.broadcast %c4_i32_29 : i32 to vector<256x64xi32>
    %115 = arith.cmpi sge, %104, %114 : vector<256x64xi32>
    %c8_i32 = arith.constant 8 : i32
    %116 = vector.broadcast %c8_i32 : i32 to vector<256x64xi32>
    %117 = arith.cmpi slt, %104, %116 : vector<256x64xi32>
    %118 = arith.andi %115, %117 : vector<256x64xi1>
    %cst_30 = arith.constant 0.000000e+00 : f32
    %119 = vector.shape_cast %69 : vector<256x1xf32> to vector<256x1xf32>
    %120 = vector.broadcast %119 : vector<256x1xf32> to vector<256x64xf32>
    %121 = vector.broadcast %cst_30 : f32 to vector<256x64xf32>
    %122 = arith.select %118, %120, %121 : vector<256x64xi1>, vector<256x64xf32>
    %123 = arith.addf %113, %122 : vector<256x64xf32>
    %124 = arith.mulf %123, %100 : vector<256x64xf32>
    %cst_31 = arith.constant dense<0.000000e+00> : vector<256x4xf32>
    %125 = tpu.matmul %124, %27, %cst_31 {dimension_numbers = #tpu.dot_dimension_numbers<[1], [0], [0], [1], [0, 0, 1, 1], [], []>} : vector<256x64xf32>, vector<64x4xf32>, vector<256x4xf32> -> vector<256x4xf32>
    %c0_32 = arith.constant 0 : index
    %c0_33 = arith.constant 0 : index
    %c0_34 = arith.constant 0 : index
    %126 = vector.load %arg5[%c0_32, %c0_33, %c0_34] : memref<2x256x4xf32, #tpu.memory_space<vmem>>, vector<1x256x4xf32>
    %127 = vector.shape_cast %126 : vector<1x256x4xf32> to vector<256x4xf32>
    %128 = vector.shape_cast %125 : vector<256x4xf32> to vector<1x256x4xf32>
    tpu.vector_store %arg5[%c0_32, %c0_33, %c0_34], %128 {strides = array<i32>} : memref<2x256x4xf32, #tpu.memory_space<vmem>>, vector<1x256x4xf32>,
    %c2_i32_35 = arith.constant 2 : i32
    %129 = arith.muli %arg0, %c2_i32_35 : i32
    %c1_i32_36 = arith.constant 1 : i32
    %130 = arith.addi %129, %c1_i32_36 : i32
    %131 = arith.index_cast %130 : i32 to index
    %c0_37 = arith.constant 0 : index
    %132 = memref.load %arg2[%131, %c0_37] : memref<2x6xf32, #tpu.memory_space<smem>>
    %133 = arith.index_cast %130 : i32 to index
    %c1_38 = arith.constant 1 : index
    %134 = memref.load %arg2[%133, %c1_38] : memref<2x6xf32, #tpu.memory_space<smem>>
    %135 = arith.index_cast %130 : i32 to index
    %c2_39 = arith.constant 2 : index
    %136 = memref.load %arg2[%135, %c2_39] : memref<2x6xf32, #tpu.memory_space<smem>>
    %137 = arith.index_cast %130 : i32 to index
    %c3_40 = arith.constant 3 : index
    %138 = memref.load %arg2[%137, %c3_40] : memref<2x6xf32, #tpu.memory_space<smem>>
    %139 = arith.index_cast %130 : i32 to index
    %c4_41 = arith.constant 4 : index
    %140 = memref.load %arg2[%139, %c4_41] : memref<2x6xf32, #tpu.memory_space<smem>>
    %141 = arith.index_cast %130 : i32 to index
    %c5_42 = arith.constant 5 : index
    %142 = memref.load %arg2[%141, %c5_42] : memref<2x6xf32, #tpu.memory_space<smem>>
    %143 = vector.broadcast %132 : f32 to vector<256x1xf32>
    %144 = arith.mulf %18, %143 : vector<256x1xf32>
    %145 = vector.broadcast %134 : f32 to vector<256x1xf32>
    %146 = arith.mulf %24, %145 : vector<256x1xf32>
    %147 = arith.addf %144, %146 : vector<256x1xf32>
    %148 = vector.broadcast %136 : f32 to vector<256x1xf32>
    %149 = arith.addf %147, %148 : vector<256x1xf32>
    %150 = vector.broadcast %138 : f32 to vector<256x1xf32>
    %151 = arith.mulf %18, %150 : vector<256x1xf32>
    %152 = vector.broadcast %140 : f32 to vector<256x1xf32>
    %153 = arith.mulf %24, %152 : vector<256x1xf32>
    %154 = arith.addf %151, %153 : vector<256x1xf32>
    %155 = vector.broadcast %142 : f32 to vector<256x1xf32>
    %156 = arith.addf %154, %155 : vector<256x1xf32>
    %cst_43 = arith.constant 1.000000e+00 : f32
    %157 = vector.broadcast %cst_43 : f32 to vector<256x1xf32>
    %158 = arith.addf %149, %157 : vector<256x1xf32>
    %cst_44 = arith.constant 7.500000e+00 : f32
    %159 = vector.broadcast %cst_44 : f32 to vector<256x1xf32>
    %160 = arith.mulf %158, %159 : vector<256x1xf32>
    %cst_45 = arith.constant 1.000000e+00 : f32
    %161 = vector.broadcast %cst_45 : f32 to vector<256x1xf32>
    %162 = arith.addf %156, %161 : vector<256x1xf32>
    %cst_46 = arith.constant 7.500000e+00 : f32
    %163 = vector.broadcast %cst_46 : f32 to vector<256x1xf32>
    %164 = arith.mulf %162, %163 : vector<256x1xf32>
    %165 = math.floor %160 : vector<256x1xf32>
    %166 = math.floor %164 : vector<256x1xf32>
    %167 = arith.subf %160, %165 : vector<256x1xf32>
    %cst_47 = arith.constant 1.000000e+00 : f32
    %168 = vector.broadcast %cst_47 : f32 to vector<256x1xf32>
    %169 = arith.subf %168, %167 : vector<256x1xf32>
    %170 = arith.subf %164, %166 : vector<256x1xf32>
    %cst_48 = arith.constant 1.000000e+00 : f32
    %171 = vector.broadcast %cst_48 : f32 to vector<256x1xf32>
    %172 = arith.subf %171, %170 : vector<256x1xf32>
    %cst_49 = arith.constant -2.000000e+00 : f32
    %cst_50 = arith.constant 1.700000e+01 : f32
    %173 = vector.broadcast %cst_49 : f32 to vector<256x1xf32>
    %174 = arith.maximumf %173, %165 : vector<256x1xf32>
    %175 = vector.broadcast %cst_50 : f32 to vector<256x1xf32>
    %176 = arith.minimumf %175, %174 : vector<256x1xf32>
    %177 = arith.fptosi %176 : vector<256x1xf32> to vector<256x1xi32>
    %cst_51 = arith.constant -2.000000e+00 : f32
    %cst_52 = arith.constant 1.700000e+01 : f32
    %178 = vector.broadcast %cst_51 : f32 to vector<256x1xf32>
    %179 = arith.maximumf %178, %166 : vector<256x1xf32>
    %180 = vector.broadcast %cst_52 : f32 to vector<256x1xf32>
    %181 = arith.minimumf %180, %179 : vector<256x1xf32>
    %182 = arith.fptosi %181 : vector<256x1xf32> to vector<256x1xi32>
    %183 = vector.broadcast %177 : vector<256x1xi32> to vector<256x16xi32>
    %184 = arith.cmpi eq, %25, %183 : vector<256x16xi32>
    %cst_53 = arith.constant 0.000000e+00 : f32
    %185 = vector.shape_cast %169 : vector<256x1xf32> to vector<256x1xf32>
    %186 = vector.broadcast %185 : vector<256x1xf32> to vector<256x16xf32>
    %187 = vector.broadcast %cst_53 : f32 to vector<256x16xf32>
    %188 = arith.select %184, %186, %187 : vector<256x16xi1>, vector<256x16xf32>
    %c1_i32_54 = arith.constant 1 : i32
    %189 = vector.broadcast %c1_i32_54 : i32 to vector<256x1xi32>
    %190 = arith.addi %177, %189 : vector<256x1xi32>
    %191 = vector.broadcast %190 : vector<256x1xi32> to vector<256x16xi32>
    %192 = arith.cmpi eq, %25, %191 : vector<256x16xi32>
    %cst_55 = arith.constant 0.000000e+00 : f32
    %193 = vector.shape_cast %167 : vector<256x1xf32> to vector<256x1xf32>
    %194 = vector.broadcast %193 : vector<256x1xf32> to vector<256x16xf32>
    %195 = vector.broadcast %cst_55 : f32 to vector<256x16xf32>
    %196 = arith.select %192, %194, %195 : vector<256x16xi1>, vector<256x16xf32>
    %197 = arith.addf %188, %196 : vector<256x16xf32>
    %198 = arith.truncf %197 : vector<256x16xf32> to vector<256x16xbf16>
    %c1_56 = arith.constant 1 : index
    %c0_57 = arith.constant 0 : index
    %c0_58 = arith.constant 0 : index
    %199 = vector.load %arg3[%c1_56, %c0_57, %c0_58] : memref<2x16x64xbf16, #tpu.memory_space<vmem>>, vector<1x16x64xbf16>
    %200 = vector.shape_cast %199 : vector<1x16x64xbf16> to vector<16x64xbf16>
    %cst_59 = arith.constant dense<0.000000e+00> : vector<256x64xf32>
    %201 = tpu.matmul %198, %200, %cst_59 {dimension_numbers = #tpu.dot_dimension_numbers<[1], [0], [0], [1], [0, 0, 1, 1], [], []>} : vector<256x16xbf16>, vector<16x64xbf16>, vector<256x64xf32> -> vector<256x64xf32>
    %c4_i32_60 = arith.constant 4 : i32
    %202 = vector.broadcast %c4_i32_60 : i32 to vector<256x1xi32>
    %203 = arith.muli %182, %202 : vector<256x1xi32>
    %204 = vector.broadcast %203 : vector<256x1xi32> to vector<256x64xi32>
    %205 = arith.subi %26, %204 : vector<256x64xi32>
    %c0_i32_61 = arith.constant 0 : i32
    %206 = vector.broadcast %c0_i32_61 : i32 to vector<256x64xi32>
    %207 = arith.cmpi sge, %205, %206 : vector<256x64xi32>
    %c4_i32_62 = arith.constant 4 : i32
    %208 = vector.broadcast %c4_i32_62 : i32 to vector<256x64xi32>
    %209 = arith.cmpi slt, %205, %208 : vector<256x64xi32>
    %210 = arith.andi %207, %209 : vector<256x64xi1>
    %cst_63 = arith.constant 0.000000e+00 : f32
    %211 = vector.shape_cast %172 : vector<256x1xf32> to vector<256x1xf32>
    %212 = vector.broadcast %211 : vector<256x1xf32> to vector<256x64xf32>
    %213 = vector.broadcast %cst_63 : f32 to vector<256x64xf32>
    %214 = arith.select %210, %212, %213 : vector<256x64xi1>, vector<256x64xf32>
    %c4_i32_64 = arith.constant 4 : i32
    %215 = vector.broadcast %c4_i32_64 : i32 to vector<256x64xi32>
    %216 = arith.cmpi sge, %205, %215 : vector<256x64xi32>
    %c8_i32_65 = arith.constant 8 : i32
    %217 = vector.broadcast %c8_i32_65 : i32 to vector<256x64xi32>
    %218 = arith.cmpi slt, %205, %217 : vector<256x64xi32>
    %219 = arith.andi %216, %218 : vector<256x64xi1>
    %cst_66 = arith.constant 0.000000e+00 : f32
    %220 = vector.shape_cast %170 : vector<256x1xf32> to vector<256x1xf32>
    %221 = vector.broadcast %220 : vector<256x1xf32> to vector<256x64xf32>
    %222 = vector.broadcast %cst_66 : f32 to vector<256x64xf32>
    %223 = arith.select %219, %221, %222 : vector<256x64xi1>, vector<256x64xf32>
    %224 = arith.addf %214, %223 : vector<256x64xf32>
    %225 = arith.mulf %224, %201 : vector<256x64xf32>
    %cst_67 = arith.constant dense<0.000000e+00> : vector<256x4xf32>
    %226 = tpu.matmul %225, %27, %cst_67 {dimension_numbers = #tpu.dot_dimension_numbers<[1], [0], [0], [1], [0, 0, 1, 1], [], []>} : vector<256x64xf32>, vector<64x4xf32>, vector<256x4xf32> -> vector<256x4xf32>
    %c1_68 = arith.constant 1 : index
    %c0_69 = arith.constant 0 : index
    %c0_70 = arith.constant 0 : index
    %227 = vector.load %arg5[%c1_68, %c0_69, %c0_70] : memref<2x256x4xf32, #tpu.memory_space<vmem>>, vector<1x256x4xf32>
    %228 = vector.shape_cast %227 : vector<1x256x4xf32> to vector<256x4xf32>
    %229 = vector.shape_cast %226 : vector<256x4xf32> to vector<1x256x4xf32>
    tpu.vector_store %arg5[%c1_68, %c0_69, %c0_70], %229 {strides = array<i32>} : memref<2x256x4xf32, #tpu.memory_space<vmem>>, vector<1x256x4xf32>,
    return
  }
  func.func @transform_0(%arg0: i32, %arg1: i32) -> (i32, i32) {
    %c0_i32 = arith.constant 0 : i32
    %c0_i32_0 = arith.constant 0 : i32
    %c0_i32_1 = arith.constant 0 : i32
    return %c0_i32, %c0_i32_0 : i32, i32
  }
  func.func @transform_1(%arg0: i32, %arg1: i32) -> (i32, i32, i32) {
    %c0_i32 = arith.constant 0 : i32
    %c0_i32_0 = arith.constant 0 : i32
    %c0_i32_1 = arith.constant 0 : i32
    return %arg0, %c0_i32, %c0_i32_0 : i32, i32, i32
  }
  func.func @transform_2(%arg0: i32, %arg1: i32) -> (i32, i32) {
    %c0_i32 = arith.constant 0 : i32
    %c0_i32_0 = arith.constant 0 : i32
    %c0_i32_1 = arith.constant 0 : i32
    return %c0_i32, %c0_i32_0 : i32, i32
  }
  func.func @transform_3(%arg0: i32, %arg1: i32) -> (i32, i32, i32) {
    %c0_i32 = arith.constant 0 : i32
    %c0_i32_0 = arith.constant 0 : i32
    return %arg0, %arg1, %c0_i32 : i32, i32, i32
  }
}

</mosaic_0001>

<llo_original>
// kernel: tpu_custom_call.1
$region0: #{tpu_custom_call.1}
  #allocation0 [shape = 'u32[]', space=smem, size = 0x4, offset = 0x4, fixed_abs, tag = 'smem constant byte address 0x4 - core index']
  #allocation1 [shape = 'u32[72,128]{1,0:T(1,128)}', space=vmem, size = 0x9000, scoped, tag = 'internal scratch']
  %s0 = inlined_call_operand.vmem [shape: f32[2,6], index: 0, kind: input, shape index: {}]
  %s1 = inlined_call_operand.vmem [shape: bf16[2,16,64], index: 1, kind: input, shape index: {}]
  %s2 = inlined_call_operand.vmem [shape: f32[64,4], index: 2, kind: input, shape index: {}]
  %s3 = inlined_call_operand.vmem [shape: f32[2,256,4], index: 3, kind: output, shape index: {}]
  %s4 = sld [smem:[#allocation0]]
  $region26: #{tpu_custom_call.1} parent=0
    _
  %s6 = ssub.s32 1, %s4
  %s7 = scalar_select 0, %s6, %s4
  $region1: #{tpu_custom_call.1} parent=0
    #allocation2 [shape = 'u8[1024]{0}', space=smem, size = 0x400, scoped, tag = 'input window, operand 0, single buffered']
    #allocation3 [shape = 's32[1]{0}', space=sflag, size = 0x4, scoped, tag = 'scoped memory for tpu_custom_call.1']
    %8 = vsyncpa [#allocation3], 0
    // Predicated region
    $region2: #{tpu_custom_call.1} parent=1 // pred_check
      _
    $region3: #{tpu_custom_call.1} parent=1 // pred_check_branch
      %10 = sbr.rel (0) target = $region5
    $region4: #{tpu_custom_call.1} parent=1 // pred_region
      %12 = vsyncadd [#allocation3], 0
      %s14 = sshll.u32 %s0, 4
      %s15 = int_to_ptr.vmem [resolvable:$true] %s14
      %17 = dma.vmem_to_smem %s15, 32, [#allocation2], [#allocation3]
    $region5: #{tpu_custom_call.1} parent=1 // pred_fallthru
      _
    // Predicated region
    $region6: #{tpu_custom_call.1} parent=1 // pred_check
      _
    $region7: #{tpu_custom_call.1} parent=1 // pred_check_branch
      %19 = sbr.rel (0) target = $region9
    $region8: #{tpu_custom_call.1} parent=1 // pred_region
      _
    $region9: #{tpu_custom_call.1} parent=1 // pred_fallthru
      _
    // Predicated region
    $region10: #{tpu_custom_call.1} parent=1 // pred_check
      _
    $region11: #{tpu_custom_call.1} parent=1 // pred_check_branch
      %21 = sbr.rel (0) target = $region13
    $region12: #{tpu_custom_call.1} parent=1 // pred_region
      _
    $region13: #{tpu_custom_call.1} parent=1 // pred_fallthru
      _
    // Predicated region
    $region14: #{tpu_custom_call.1} parent=1 // pred_check
      _
    $region15: #{tpu_custom_call.1} parent=1 // pred_check_branch
      %23 = sbr.rel (0) target = $region17
    $region16: #{tpu_custom_call.1} parent=1 // pred_region
      %25 = dma.done [#allocation3], 32
    $region17: #{tpu_custom_call.1} parent=1 // pred_fallthru
      _
    %26 = sfence
    %v28 = vlaneseq
    %v29 = vshrl.u32 %v28, 7
    %v30 = vadd.s32 %v29, 8
    %v31 = vadd.s32 %v29, 16
    %v32 = vadd.s32 %v29, 24
    %v33 = vadd.s32 %v29, 32
    %v34 = vadd.s32 %v29, 40
    %v35 = vadd.s32 %v29, 48
    %v36 = vadd.s32 %v29, 56
    %v37 = vadd.s32 %v29, 64
    %v38 = vadd.s32 %v29, 72
    %v39 = vadd.s32 %v29, 80
    %v40 = vadd.s32 %v29, 88
    %v41 = vadd.s32 %v29, 96
    %v42 = vadd.s32 %v29, 104
    %v43 = vadd.s32 %v29, 112
    %v44 = vadd.s32 %v29, 120
    %v45 = vadd.s32 %v29, 128
    %v46 = vadd.s32 %v29, 136
    %v47 = vadd.s32 %v29, 144
    %v48 = vadd.s32 %v29, 152
    %v49 = vadd.s32 %v29, 160
    %v50 = vadd.s32 %v29, 168
    %v51 = vadd.s32 %v29, 176
    %v52 = vadd.s32 %v29, 184
    %v53 = vadd.s32 %v29, 192
    %v54 = vadd.s32 %v29, 200
    %v55 = vadd.s32 %v29, 208
    %v56 = vadd.s32 %v29, 216
    %v57 = vadd.s32 %v29, 224
    %v58 = vadd.s32 %v29, 232
    %v59 = vadd.s32 %v29, 240
    %v60 = vadd.s32 %v29, 248
    %s61 = smul.u32 0, 256
    %v62 = vstv %s61
    %v63 = vadd.s32 %v29, %v62
    %v64 = vadd.s32 %v30, %v62
    %v65 = vadd.s32 %v31, %v62
    %v66 = vadd.s32 %v32, %v62
    %v67 = vadd.s32 %v33, %v62
    %v68 = vadd.s32 %v34, %v62
    %v69 = vadd.s32 %v35, %v62
    %v70 = vadd.s32 %v36, %v62
    %v71 = vadd.s32 %v37, %v62
    %v72 = vadd.s32 %v38, %v62
    %v73 = vadd.s32 %v39, %v62
    %v74 = vadd.s32 %v40, %v62
    %v75 = vadd.s32 %v41, %v62
    %v76 = vadd.s32 %v42, %v62
    %v77 = vadd.s32 %v43, %v62
    %v78 = vadd.s32 %v44, %v62
    %v79 = vadd.s32 %v45, %v62
    %v80 = vadd.s32 %v46, %v62
    %v81 = vadd.s32 %v47, %v62
    %v82 = vadd.s32 %v48, %v62
    %v83 = vadd.s32 %v49, %v62
    %v84 = vadd.s32 %v50, %v62
    %v85 = vadd.s32 %v51, %v62
    %v86 = vadd.s32 %v52, %v62
    %v87 = vadd.s32 %v53, %v62
    %v88 = vadd.s32 %v54, %v62
    %v89 = vadd.s32 %v55, %v62
    %v90 = vadd.s32 %v56, %v62
    %v91 = vadd.s32 %v57, %v62
    %v92 = vadd.s32 %v58, %v62
    %v93 = vadd.s32 %v59, %v62
    %v94 = vadd.s32 %v60, %v62
    %v95 = vcvt.s32.f32 %v63
    %v96 = vcvt.s32.f32 %v64
    %v97 = vcvt.s32.f32 %v65
    %v98 = vcvt.s32.f32 %v66
    %v99 = vcvt.s32.f32 %v67
    %v100 = vcvt.s32.f32 %v68
    %v101 = vcvt.s32.f32 %v69
    %v102 = vcvt.s32.f32 %v70
    %v103 = vcvt.s32.f32 %v71
    %v104 = vcvt.s32.f32 %v72
    %v105 = vcvt.s32.f32 %v73
    %v106 = vcvt.s32.f32 %v74
    %v107 = vcvt.s32.f32 %v75
    %v108 = vcvt.s32.f32 %v76
    %v109 = vcvt.s32.f32 %v77
    %v110 = vcvt.s32.f32 %v78
    %v111 = vcvt.s32.f32 %v79
    %v112 = vcvt.s32.f32 %v80
    %v113 = vcvt.s32.f32 %v81
    %v114 = vcvt.s32.f32 %v82
    %v115 = vcvt.s32.f32 %v83
    %v116 = vcvt.s32.f32 %v84
    %v117 = vcvt.s32.f32 %v85
    %v118 = vcvt.s32.f32 %v86
    %v119 = vcvt.s32.f32 %v87
    %v120 = vcvt.s32.f32 %v88
    %v121 = vcvt.s32.f32 %v89
    %v122 = vcvt.s32.f32 %v90
    %v123 = vcvt.s32.f32 %v91
    %v124 = vcvt.s32.f32 %v92
    %v125 = vcvt.s32.f32 %v93
    %v126 = vcvt.s32.f32 %v94
    %v127 = vadd.f32 %v95, 0.5
    %v128 = vadd.f32 %v96, 0.5
    %v129 = vadd.f32 %v97, 0.5
    %v130 = vadd.f32 %v98, 0.5
    %v131 = vadd.f32 %v99, 0.5
    %v132 = vadd.f32 %v100, 0.5
    %v133 = vadd.f32 %v101, 0.5
    %v134 = vadd.f32 %v102, 0.5
    %v135 = vadd.f32 %v103, 0.5
    %v136 = vadd.f32 %v104, 0.5
    %v137 = vadd.f32 %v105, 0.5
    %v138 = vadd.f32 %v106, 0.5
    %v139 = vadd.f32 %v107, 0.5
    %v140 = vadd.f32 %v108, 0.5
    %v141 = vadd.f32 %v109, 0.5
    %v142 = vadd.f32 %v110, 0.5
    %v143 = vadd.f32 %v111, 0.5
    %v144 = vadd.f32 %v112, 0.5
    %v145 = vadd.f32 %v113, 0.5
    %v146 = vadd.f32 %v114, 0.5
    %v147 = vadd.f32 %v115, 0.5
    %v148 = vadd.f32 %v116, 0.5
    %v149 = vadd.f32 %v117, 0.5
    %v150 = vadd.f32 %v118, 0.5
    %v151 = vadd.f32 %v119, 0.5
    %v152 = vadd.f32 %v120, 0.5
    %v153 = vadd.f32 %v121, 0.5
    %v154 = vadd.f32 %v122, 0.5
    %v155 = vadd.f32 %v123, 0.5
    %v156 = vadd.f32 %v124, 0.5
    %v157 = vadd.f32 %v125, 0.5
    %v158 = vadd.f32 %v126, 0.5
    %v159 = vmul.f32 %v127, 0.0625
    %v160 = vmul.f32 %v128, 0.0625
    %v161 = vmul.f32 %v129, 0.0625
    %v162 = vmul.f32 %v130, 0.0625
    %v163 = vmul.f32 %v131, 0.0625
    %v164 = vmul.f32 %v132, 0.0625
    %v165 = vmul.f32 %v133, 0.0625
    %v166 = vmul.f32 %v134, 0.0625
    %v167 = vmul.f32 %v135, 0.0625
    %v168 = vmul.f32 %v136, 0.0625
    %v169 = vmul.f32 %v137, 0.0625
    %v170 = vmul.f32 %v138, 0.0625
    %v171 = vmul.f32 %v139, 0.0625
    %v172 = vmul.f32 %v140, 0.0625
    %v173 = vmul.f32 %v141, 0.0625
    %v174 = vmul.f32 %v142, 0.0625
    %v175 = vmul.f32 %v143, 0.0625
    %v176 = vmul.f32 %v144, 0.0625
    %v177 = vmul.f32 %v145, 0.0625
    %v178 = vmul.f32 %v146, 0.0625
    %v179 = vmul.f32 %v147, 0.0625
    %v180 = vmul.f32 %v148, 0.0625
    %v181 = vmul.f32 %v149, 0.0625
    %v182 = vmul.f32 %v150, 0.0625
    %v183 = vmul.f32 %v151, 0.0625
    %v184 = vmul.f32 %v152, 0.0625
    %v185 = vmul.f32 %v153, 0.0625
    %v186 = vmul.f32 %v154, 0.0625
    %v187 = vmul.f32 %v155, 0.0625
    %v188 = vmul.f32 %v156, 0.0625
    %v189 = vmul.f32 %v157, 0.0625
    %v190 = vmul.f32 %v158, 0.0625
    %v191 = vfloor.f32 %v159
    %v192 = vfloor.f32 %v160
    %v193 = vfloor.f32 %v161
    %v194 = vfloor.f32 %v162
    %v195 = vfloor.f32 %v163
    %v196 = vfloor.f32 %v164
    %v197 = vfloor.f32 %v165
    %v198 = vfloor.f32 %v166
    %v199 = vfloor.f32 %v167
    %v200 = vfloor.f32 %v168
    %v201 = vfloor.f32 %v169
    %v202 = vfloor.f32 %v170
    %v203 = vfloor.f32 %v171
    %v204 = vfloor.f32 %v172
    %v205 = vfloor.f32 %v173
    %v206 = vfloor.f32 %v174
    %v207 = vfloor.f32 %v175
    %v208 = vfloor.f32 %v176
    %v209 = vfloor.f32 %v177
    %v210 = vfloor.f32 %v178
    %v211 = vfloor.f32 %v179
    %v212 = vfloor.f32 %v180
    %v213 = vfloor.f32 %v181
    %v214 = vfloor.f32 %v182
    %v215 = vfloor.f32 %v183
    %v216 = vfloor.f32 %v184
    %v217 = vfloor.f32 %v185
    %v218 = vfloor.f32 %v186
    %v219 = vfloor.f32 %v187
    %v220 = vfloor.f32 %v188
    %v221 = vfloor.f32 %v189
    %v222 = vfloor.f32 %v190
    %v223 = vmul.f32 %v191, 16.0
    %v224 = vmul.f32 %v192, 16.0
    %v225 = vmul.f32 %v193, 16.0
    %v226 = vmul.f32 %v194, 16.0
    %v227 = vmul.f32 %v195, 16.0
    %v228 = vmul.f32 %v196, 16.0
    %v229 = vmul.f32 %v197, 16.0
    %v230 = vmul.f32 %v198, 16.0
    %v231 = vmul.f32 %v199, 16.0
    %v232 = vmul.f32 %v200, 16.0
    %v233 = vmul.f32 %v201, 16.0
    %v234 = vmul.f32 %v202, 16.0
    %v235 = vmul.f32 %v203, 16.0
    %v236 = vmul.f32 %v204, 16.0
    %v237 = vmul.f32 %v205, 16.0
    %v238 = vmul.f32 %v206, 16.0
    %v239 = vmul.f32 %v207, 16.0
    %v240 = vmul.f32 %v208, 16.0
    %v241 = vmul.f32 %v209, 16.0
    %v242 = vmul.f32 %v210, 16.0
    %v243 = vmul.f32 %v211, 16.0
    %v244 = vmul.f32 %v212, 16.0
    %v245 = vmul.f32 %v213, 16.0
    %v246 = vmul.f32 %v214, 16.0
    %v247 = vmul.f32 %v215, 16.0
    %v248 = vmul.f32 %v216, 16.0
    %v249 = vmul.f32 %v217, 16.0
    %v250 = vmul.f32 %v218, 16.0
    %v251 = vmul.f32 %v219, 16.0
    %v252 = vmul.f32 %v220, 16.0
    %v253 = vmul.f32 %v221, 16.0
    %v254 = vmul.f32 %v222, 16.0
    %v255 = vsub.f32 %v95, %v223
    %v256 = vsub.f32 %v96, %v224
    %v257 = vsub.f32 %v97, %v225
    %v258 = vsub.f32 %v98, %v226
    %v259 = vsub.f32 %v99, %v227
    %v260 = vsub.f32 %v100, %v228
    %v261 = vsub.f32 %v101, %v229
    %v262 = vsub.f32 %v102, %v230
    %v263 = vsub.f32 %v103, %v231
    %v264 = vsub.f32 %v104, %v232
    %v265 = vsub.f32 %v105, %v233
    %v266 = vsub.f32 %v106, %v234
    %v267 = vsub.f32 %v107, %v235
    %v268 = vsub.f32 %v108, %v236
    %v269 = vsub.f32 %v109, %v237
    %v270 = vsub.f32 %v110, %v238
    %v271 = vsub.f32 %v111, %v239
    %v272 = vsub.f32 %v112, %v240
    %v273 = vsub.f32 %v113, %v241
    %v274 = vsub.f32 %v114, %v242
    %v275 = vsub.f32 %v115, %v243
    %v276 = vsub.f32 %v116, %v244
    %v277 = vsub.f32 %v117, %v245
    %v278 = vsub.f32 %v118, %v246
    %v279 = vsub.f32 %v119, %v247
    %v280 = vsub.f32 %v120, %v248
    %v281 = vsub.f32 %v121, %v249
    %v282 = vsub.f32 %v122, %v250
    %v283 = vsub.f32 %v123, %v251
    %v284 = vsub.f32 %v124, %v252
    %v285 = vsub.f32 %v125, %v253
    %v286 = vsub.f32 %v126, %v254
    %v287 = vmul.f32 %v191, 2.0
    %v288 = vmul.f32 %v192, 2.0
    %v289 = vmul.f32 %v193, 2.0
    %v290 = vmul.f32 %v194, 2.0
    %v291 = vmul.f32 %v195, 2.0
    %v292 = vmul.f32 %v196, 2.0
    %v293 = vmul.f32 %v197, 2.0
    %v294 = vmul.f32 %v198, 2.0
    %v295 = vmul.f32 %v199, 2.0
    %v296 = vmul.f32 %v200, 2.0
    %v297 = vmul.f32 %v201, 2.0
    %v298 = vmul.f32 %v202, 2.0
    %v299 = vmul.f32 %v203, 2.0
    %v300 = vmul.f32 %v204, 2.0
    %v301 = vmul.f32 %v205, 2.0
    %v302 = vmul.f32 %v206, 2.0
    %v303 = vmul.f32 %v207, 2.0
    %v304 = vmul.f32 %v208, 2.0
    %v305 = vmul.f32 %v209, 2.0
    %v306 = vmul.f32 %v210, 2.0
    %v307 = vmul.f32 %v211, 2.0
    %v308 = vmul.f32 %v212, 2.0
    %v309 = vmul.f32 %v213, 2.0
    %v310 = vmul.f32 %v214, 2.0
    %v311 = vmul.f32 %v215, 2.0
    %v312 = vmul.f32 %v216, 2.0
    %v313 = vmul.f32 %v217, 2.0
    %v314 = vmul.f32 %v218, 2.0
    %v315 = vmul.f32 %v219, 2.0
    %v316 = vmul.f32 %v220, 2.0
    %v317 = vmul.f32 %v221, 2.0
    %v318 = vmul.f32 %v222, 2.0
    %v319 = vrcp.pop 16.0
    %v320 = vmul.f32 16.0, %v319
    %v321 = vsub.f32 1.0, %v320
    %v322 = vmul.f32 %v319, %v321
    %v323 = vadd.f32 %v319, %v322
    %vm324 = vweird.f32 %v319
    %v325 = vsel %vm324, %v319, %v323
    %v326 = vmul.f32 %v287, %v325
    %v327 = vmul.f32 %v288, %v325
    %v328 = vmul.f32 %v289, %v325
    %v329 = vmul.f32 %v290, %v325
    %v330 = vmul.f32 %v291, %v325
    %v331 = vmul.f32 %v292, %v325
    %v332 = vmul.f32 %v293, %v325
    %v333 = vmul.f32 %v294, %v325
    %v334 = vmul.f32 %v295, %v325
    %v335 = vmul.f32 %v296, %v325
    %v336 = vmul.f32 %v297, %v325
    %v337 = vmul.f32 %v298, %v325
    %v338 = vmul.f32 %v299, %v325
    %v339 = vmul.f32 %v300, %v325
    %v340 = vmul.f32 %v301, %v325
    %v341 = vmul.f32 %v302, %v325
    %v342 = vmul.f32 %v303, %v325
    %v343 = vmul.f32 %v304, %v325
    %v344 = vmul.f32 %v305, %v325
    %v345 = vmul.f32 %v306, %v325
    %v346 = vmul.f32 %v307, %v325
    %v347 = vmul.f32 %v308, %v325
    %v348 = vmul.f32 %v309, %v325
    %v349 = vmul.f32 %v310, %v325
    %v350 = vmul.f32 %v311, %v325
    %v351 = vmul.f32 %v312, %v325
    %v352 = vmul.f32 %v313, %v325
    %v353 = vmul.f32 %v314, %v325
    %v354 = vmul.f32 %v315, %v325
    %v355 = vmul.f32 %v316, %v325
    %v356 = vmul.f32 %v317, %v325
    %v357 = vmul.f32 %v318, %v325
    %v358 = vsub.f32 %v326, 1.0
    %v359 = vsub.f32 %v327, 1.0
    %v360 = vsub.f32 %v328, 1.0
    %v361 = vsub.f32 %v329, 1.0
    %v362 = vsub.f32 %v330, 1.0
    %v363 = vsub.f32 %v331, 1.0
    %v364 = vsub.f32 %v332, 1.0
    %v365 = vsub.f32 %v333, 1.0
    %v366 = vsub.f32 %v334, 1.0
    %v367 = vsub.f32 %v335, 1.0
    %v368 = vsub.f32 %v336, 1.0
    %v369 = vsub.f32 %v337, 1.0
    %v370 = vsub.f32 %v338, 1.0
    %v371 = vsub.f32 %v339, 1.0
    %v372 = vsub.f32 %v340, 1.0
    %v373 = vsub.f32 %v341, 1.0
    %v374 = vsub.f32 %v342, 1.0
    %v375 = vsub.f32 %v343, 1.0
    %v376 = vsub.f32 %v344, 1.0
    %v377 = vsub.f32 %v345, 1.0
    %v378 = vsub.f32 %v346, 1.0
    %v379 = vsub.f32 %v347, 1.0
    %v380 = vsub.f32 %v348, 1.0
    %v381 = vsub.f32 %v349, 1.0
    %v382 = vsub.f32 %v350, 1.0
    %v383 = vsub.f32 %v351, 1.0
    %v384 = vsub.f32 %v352, 1.0
    %v385 = vsub.f32 %v353, 1.0
    %v386 = vsub.f32 %v354, 1.0
    %v387 = vsub.f32 %v355, 1.0
    %v388 = vsub.f32 %v356, 1.0
    %v389 = vsub.f32 %v357, 1.0
    %v390 = vmul.f32 %v255, 2.0
    %v391 = vmul.f32 %v256, 2.0
    %v392 = vmul.f32 %v257, 2.0
    %v393 = vmul.f32 %v258, 2.0
    %v394 = vmul.f32 %v259, 2.0
    %v395 = vmul.f32 %v260, 2.0
    %v396 = vmul.f32 %v261, 2.0
    %v397 = vmul.f32 %v262, 2.0
    %v398 = vmul.f32 %v263, 2.0
    %v399 = vmul.f32 %v264, 2.0
    %v400 = vmul.f32 %v265, 2.0
    %v401 = vmul.f32 %v266, 2.0
    %v402 = vmul.f32 %v267, 2.0
    %v403 = vmul.f32 %v268, 2.0
    %v404 = vmul.f32 %v269, 2.0
    %v405 = vmul.f32 %v270, 2.0
    %v406 = vmul.f32 %v271, 2.0
    %v407 = vmul.f32 %v272, 2.0
    %v408 = vmul.f32 %v273, 2.0
    %v409 = vmul.f32 %v274, 2.0
    %v410 = vmul.f32 %v275, 2.0
    %v411 = vmul.f32 %v276, 2.0
    %v412 = vmul.f32 %v277, 2.0
    %v413 = vmul.f32 %v278, 2.0
    %v414 = vmul.f32 %v279, 2.0
    %v415 = vmul.f32 %v280, 2.0
    %v416 = vmul.f32 %v281, 2.0
    %v417 = vmul.f32 %v282, 2.0
    %v418 = vmul.f32 %v283, 2.0
    %v419 = vmul.f32 %v284, 2.0
    %v420 = vmul.f32 %v285, 2.0
    %v421 = vmul.f32 %v286, 2.0
    %v422 = vmul.f32 %v390, %v325
    %v423 = vmul.f32 %v391, %v325
    %v424 = vmul.f32 %v392, %v325
    %v425 = vmul.f32 %v393, %v325
    %v426 = vmul.f32 %v394, %v325
    %v427 = vmul.f32 %v395, %v325
    %v428 = vmul.f32 %v396, %v325
    %v429 = vmul.f32 %v397, %v325
    %v430 = vmul.f32 %v398, %v325
    %v431 = vmul.f32 %v399, %v325
    %v432 = vmul.f32 %v400, %v325
    %v433 = vmul.f32 %v401, %v325
    %v434 = vmul.f32 %v402, %v325
    %v435 = vmul.f32 %v403, %v325
    %v436 = vmul.f32 %v404, %v325
    %v437 = vmul.f32 %v405, %v325
    %v438 = vmul.f32 %v406, %v325
    %v439 = vmul.f32 %v407, %v325
    %v440 = vmul.f32 %v408, %v325
    %v441 = vmul.f32 %v409, %v325
    %v442 = vmul.f32 %v410, %v325
    %v443 = vmul.f32 %v411, %v325
    %v444 = vmul.f32 %v412, %v325
    %v445 = vmul.f32 %v413, %v325
    %v446 = vmul.f32 %v414, %v325
    %v447 = vmul.f32 %v415, %v325
    %v448 = vmul.f32 %v416, %v325
    %v449 = vmul.f32 %v417, %v325
    %v450 = vmul.f32 %v418, %v325
    %v451 = vmul.f32 %v419, %v325
    %v452 = vmul.f32 %v420, %v325
    %v453 = vmul.f32 %v421, %v325
    %v454 = vsub.f32 %v422, 1.0
    %v455 = vsub.f32 %v423, 1.0
    %v456 = vsub.f32 %v424, 1.0
    %v457 = vsub.f32 %v425, 1.0
    %v458 = vsub.f32 %v426, 1.0
    %v459 = vsub.f32 %v427, 1.0
    %v460 = vsub.f32 %v428, 1.0
    %v461 = vsub.f32 %v429, 1.0
    %v462 = vsub.f32 %v430, 1.0
    %v463 = vsub.f32 %v431, 1.0
    %v464 = vsub.f32 %v432, 1.0
    %v465 = vsub.f32 %v433, 1.0
    %v466 = vsub.f32 %v434, 1.0
    %v467 = vsub.f32 %v435, 1.0
    %v468 = vsub.f32 %v436, 1.0
    %v469 = vsub.f32 %v437, 1.0
    %v470 = vsub.f32 %v438, 1.0
    %v471 = vsub.f32 %v439, 1.0
    %v472 = vsub.f32 %v440, 1.0
    %v473 = vsub.f32 %v441, 1.0
    %v474 = vsub.f32 %v442, 1.0
    %v475 = vsub.f32 %v443, 1.0
    %v476 = vsub.f32 %v444, 1.0
    %v477 = vsub.f32 %v445, 1.0
    %v478 = vsub.f32 %v446, 1.0
    %v479 = vsub.f32 %v447, 1.0
    %v480 = vsub.f32 %v448, 1.0
    %v481 = vsub.f32 %v449, 1.0
    %v482 = vsub.f32 %v450, 1.0
    %v483 = vsub.f32 %v451, 1.0
    %v484 = vsub.f32 %v452, 1.0
    %v485 = vsub.f32 %v453, 1.0
    %v486 = vlaneseq
    %v487 = vand.u32 %v486, 127
    %v488 = vld [vmem:[%s2] sm:$0xff]
    %v489 = vld [vmem:[%s2 + $0x8] sm:$0xff]
    %v490 = vld [vmem:[%s2 + $0x10] sm:$0xff]
    %v491 = vld [vmem:[%s2 + $0x18] sm:$0xff]
    %v492 = vld [vmem:[%s2 + $0x20] sm:$0xff]
    %v493 = vld [vmem:[%s2 + $0x28] sm:$0xff]
    %v494 = vld [vmem:[%s2 + $0x30] sm:$0xff]
    %v495 = vld [vmem:[%s2 + $0x38] sm:$0xff]
    %s496 = smul.u32 0, 2
    %s497 = smul.u32 %s496, 128
    %s498 = sld [smem:[#allocation2 + %s497]]
    %s499 = sadd.s32 %s497, 1
    %s500 = sld [smem:[#allocation2 + %s499]]
    %s501 = sadd.s32 %s497, 2
    %s502 = sld [smem:[#allocation2 + %s501]]
    %s503 = sadd.s32 %s497, 3
    %s504 = sld [smem:[#allocation2 + %s503]]
    %s505 = sadd.s32 %s497, 4
    %s506 = sld [smem:[#allocation2 + %s505]]
    %s507 = sadd.s32 %s497, 5
    %s508 = sld [smem:[#allocation2 + %s507]]
    %v509 = vstv %s498
    %v510 = vmul.f32 %v358, %v509
    %v511 = vmul.f32 %v359, %v509
    %v512 = vmul.f32 %v360, %v509
    %v513 = vmul.f32 %v361, %v509
    %v514 = vmul.f32 %v362, %v509
    %v515 = vmul.f32 %v363, %v509
    %v516 = vmul.f32 %v364, %v509
    %v517 = vmul.f32 %v365, %v509
    %v518 = vmul.f32 %v366, %v509
    %v519 = vmul.f32 %v367, %v509
    %v520 = vmul.f32 %v368, %v509
    %v521 = vmul.f32 %v369, %v509
    %v522 = vmul.f32 %v370, %v509
    %v523 = vmul.f32 %v371, %v509
    %v524 = vmul.f32 %v372, %v509
    %v525 = vmul.f32 %v373, %v509
    %v526 = vmul.f32 %v374, %v509
    %v527 = vmul.f32 %v375, %v509
    %v528 = vmul.f32 %v376, %v509
    %v529 = vmul.f32 %v377, %v509
    %v530 = vmul.f32 %v378, %v509
    %v531 = vmul.f32 %v379, %v509
    %v532 = vmul.f32 %v380, %v509
    %v533 = vmul.f32 %v381, %v509
    %v534 = vmul.f32 %v382, %v509
    %v535 = vmul.f32 %v383, %v509
    %v536 = vmul.f32 %v384, %v509
    %v537 = vmul.f32 %v385, %v509
    %v538 = vmul.f32 %v386, %v509
    %v539 = vmul.f32 %v387, %v509
    %v540 = vmul.f32 %v388, %v509
    %v541 = vmul.f32 %v389, %v509
    %v542 = vstv %s500
    %v543 = vmul.f32 %v454, %v542
    %v544 = vmul.f32 %v455, %v542
    %v545 = vmul.f32 %v456, %v542
    %v546 = vmul.f32 %v457, %v542
    %v547 = vmul.f32 %v458, %v542
    %v548 = vmul.f32 %v459, %v542
    %v549 = vmul.f32 %v460, %v542
    %v550 = vmul.f32 %v461, %v542
    %v551 = vmul.f32 %v462, %v542
    %v552 = vmul.f32 %v463, %v542
    %v553 = vmul.f32 %v464, %v542
    %v554 = vmul.f32 %v465, %v542
    %v555 = vmul.f32 %v466, %v542
    %v556 = vmul.f32 %v467, %v542
    %v557 = vmul.f32 %v468, %v542
    %v558 = vmul.f32 %v469, %v542
    %v559 = vmul.f32 %v470, %v542
    %v560 = vmul.f32 %v471, %v542
    %v561 = vmul.f32 %v472, %v542
    %v562 = vmul.f32 %v473, %v542
    %v563 = vmul.f32 %v474, %v542
    %v564 = vmul.f32 %v475, %v542
    %v565 = vmul.f32 %v476, %v542
    %v566 = vmul.f32 %v477, %v542
    %v567 = vmul.f32 %v478, %v542
    %v568 = vmul.f32 %v479, %v542
    %v569 = vmul.f32 %v480, %v542
    %v570 = vmul.f32 %v481, %v542
    %v571 = vmul.f32 %v482, %v542
    %v572 = vmul.f32 %v483, %v542
    %v573 = vmul.f32 %v484, %v542
    %v574 = vmul.f32 %v485, %v542
    %v575 = vadd.f32 %v510, %v543
    %v576 = vadd.f32 %v511, %v544
    %v577 = vadd.f32 %v512, %v545
    %v578 = vadd.f32 %v513, %v546
    %v579 = vadd.f32 %v514, %v547
    %v580 = vadd.f32 %v515, %v548
    %v581 = vadd.f32 %v516, %v549
    %v582 = vadd.f32 %v517, %v550
    %v583 = vadd.f32 %v518, %v551
    %v584 = vadd.f32 %v519, %v552
    %v585 = vadd.f32 %v520, %v553
    %v586 = vadd.f32 %v521, %v554
    %v587 = vadd.f32 %v522, %v555
    %v588 = vadd.f32 %v523, %v556
    %v589 = vadd.f32 %v524, %v557
    %v590 = vadd.f32 %v525, %v558
    %v591 = vadd.f32 %v526, %v559
    %v592 = vadd.f32 %v527, %v560
    %v593 = vadd.f32 %v528, %v561
    %v594 = vadd.f32 %v529, %v562
    %v595 = vadd.f32 %v530, %v563
    %v596 = vadd.f32 %v531, %v564
    %v597 = vadd.f32 %v532, %v565
    %v598 = vadd.f32 %v533, %v566
    %v599 = vadd.f32 %v534, %v567
    %v600 = vadd.f32 %v535, %v568
    %v601 = vadd.f32 %v536, %v569
    %v602 = vadd.f32 %v537, %v570
    %v603 = vadd.f32 %v538, %v571
    %v604 = vadd.f32 %v539, %v572
    %v605 = vadd.f32 %v540, %v573
    %v606 = vadd.f32 %v541, %v574
    %v607 = vstv %s502
    %v608 = vadd.f32 %v575, %v607
    %v609 = vadd.f32 %v576, %v607
    %v610 = vadd.f32 %v577, %v607
    %v611 = vadd.f32 %v578, %v607
    %v612 = vadd.f32 %v579, %v607
    %v613 = vadd.f32 %v580, %v607
    %v614 = vadd.f32 %v581, %v607
    %v615 = vadd.f32 %v582, %v607
    %v616 = vadd.f32 %v583, %v607
    %v617 = vadd.f32 %v584, %v607
    %v618 = vadd.f32 %v585, %v607
    %v619 = vadd.f32 %v586, %v607
    %v620 = vadd.f32 %v587, %v607
    %v621 = vadd.f32 %v588, %v607
    %v622 = vadd.f32 %v589, %v607
    %v623 = vadd.f32 %v590, %v607
    %v624 = vadd.f32 %v591, %v607
    %v625 = vadd.f32 %v592, %v607
    %v626 = vadd.f32 %v593, %v607
    %v627 = vadd.f32 %v594, %v607
    %v628 = vadd.f32 %v595, %v607
    %v629 = vadd.f32 %v596, %v607
    %v630 = vadd.f32 %v597, %v607
    %v631 = vadd.f32 %v598, %v607
    %v632 = vadd.f32 %v599, %v607
    %v633 = vadd.f32 %v600, %v607
    %v634 = vadd.f32 %v601, %v607
    %v635 = vadd.f32 %v602, %v607
    %v636 = vadd.f32 %v603, %v607
    %v637 = vadd.f32 %v604, %v607
    %v638 = vadd.f32 %v605, %v607
    %v639 = vadd.f32 %v606, %v607
    %v640 = vstv %s504
    %v641 = vmul.f32 %v358, %v640
    %v642 = vmul.f32 %v359, %v640
    %v643 = vmul.f32 %v360, %v640
    %v644 = vmul.f32 %v361, %v640
    %v645 = vmul.f32 %v362, %v640
    %v646 = vmul.f32 %v363, %v640
    %v647 = vmul.f32 %v364, %v640
    %v648 = vmul.f32 %v365, %v640
    %v649 = vmul.f32 %v366, %v640
    %v650 = vmul.f32 %v367, %v640
    %v651 = vmul.f32 %v368, %v640
    %v652 = vmul.f32 %v369, %v640
    %v653 = vmul.f32 %v370, %v640
    %v654 = vmul.f32 %v371, %v640
    %v655 = vmul.f32 %v372, %v640
    %v656 = vmul.f32 %v373, %v640
    %v657 = vmul.f32 %v374, %v640
    %v658 = vmul.f32 %v375, %v640
    %v659 = vmul.f32 %v376, %v640
    %v660 = vmul.f32 %v377, %v640
    %v661 = vmul.f32 %v378, %v640
    %v662 = vmul.f32 %v379, %v640
    %v663 = vmul.f32 %v380, %v640
    %v664 = vmul.f32 %v381, %v640
    %v665 = vmul.f32 %v382, %v640
    %v666 = vmul.f32 %v383, %v640
    %v667 = vmul.f32 %v384, %v640
    %v668 = vmul.f32 %v385, %v640
    %v669 = vmul.f32 %v386, %v640
    %v670 = vmul.f32 %v387, %v640
    %v671 = vmul.f32 %v388, %v640
    %v672 = vmul.f32 %v389, %v640
    %v673 = vstv %s506
    %v674 = vmul.f32 %v454, %v673
    %v675 = vmul.f32 %v455, %v673
    %v676 = vmul.f32 %v456, %v673
    %v677 = vmul.f32 %v457, %v673
    %v678 = vmul.f32 %v458, %v673
    %v679 = vmul.f32 %v459, %v673
    %v680 = vmul.f32 %v460, %v673
    %v681 = vmul.f32 %v461, %v673
    %v682 = vmul.f32 %v462, %v673
    %v683 = vmul.f32 %v463, %v673
    %v684 = vmul.f32 %v464, %v673
    %v685 = vmul.f32 %v465, %v673
    %v686 = vmul.f32 %v466, %v673
    %v687 = vmul.f32 %v467, %v673
    %v688 = vmul.f32 %v468, %v673
    %v689 = vmul.f32 %v469, %v673
    %v690 = vmul.f32 %v470, %v673
    %v691 = vmul.f32 %v471, %v673
    %v692 = vmul.f32 %v472, %v673
    %v693 = vmul.f32 %v473, %v673
    %v694 = vmul.f32 %v474, %v673
    %v695 = vmul.f32 %v475, %v673
    %v696 = vmul.f32 %v476, %v673
    %v697 = vmul.f32 %v477, %v673
    %v698 = vmul.f32 %v478, %v673
    %v699 = vmul.f32 %v479, %v673
    %v700 = vmul.f32 %v480, %v673
    %v701 = vmul.f32 %v481, %v673
    %v702 = vmul.f32 %v482, %v673
    %v703 = vmul.f32 %v483, %v673
    %v704 = vmul.f32 %v484, %v673
    %v705 = vmul.f32 %v485, %v673
    %v706 = vadd.f32 %v641, %v674
    %v707 = vadd.f32 %v642, %v675
    %v708 = vadd.f32 %v643, %v676
    %v709 = vadd.f32 %v644, %v677
    %v710 = vadd.f32 %v645, %v678
    %v711 = vadd.f32 %v646, %v679
    %v712 = vadd.f32 %v647, %v680
    %v713 = vadd.f32 %v648, %v681
    %v714 = vadd.f32 %v649, %v682
    %v715 = vadd.f32 %v650, %v683
    %v716 = vadd.f32 %v651, %v684
    %v717 = vadd.f32 %v652, %v685
    %v718 = vadd.f32 %v653, %v686
    %v719 = vadd.f32 %v654, %v687
    %v720 = vadd.f32 %v655, %v688
    %v721 = vadd.f32 %v656, %v689
    %v722 = vadd.f32 %v657, %v690
    %v723 = vadd.f32 %v658, %v691
    %v724 = vadd.f32 %v659, %v692
    %v725 = vadd.f32 %v660, %v693
    %v726 = vadd.f32 %v661, %v694
    %v727 = vadd.f32 %v662, %v695
    %v728 = vadd.f32 %v663, %v696
    %v729 = vadd.f32 %v664, %v697
    %v730 = vadd.f32 %v665, %v698
    %v731 = vadd.f32 %v666, %v699
    %v732 = vadd.f32 %v667, %v700
    %v733 = vadd.f32 %v668, %v701
    %v734 = vadd.f32 %v669, %v702
    %v735 = vadd.f32 %v670, %v703
    %v736 = vadd.f32 %v671, %v704
    %v737 = vadd.f32 %v672, %v705
    %v738 = vstv %s508
    %v739 = vadd.f32 %v706, %v738
    %v740 = vadd.f32 %v707, %v738
    %v741 = vadd.f32 %v708, %v738
    %v742 = vadd.f32 %v709, %v738
    %v743 = vadd.f32 %v710, %v738
    %v744 = vadd.f32 %v711, %v738
    %v745 = vadd.f32 %v712, %v738
    %v746 = vadd.f32 %v713, %v738
    %v747 = vadd.f32 %v714, %v738
    %v748 = vadd.f32 %v715, %v738
    %v749 = vadd.f32 %v716, %v738
    %v750 = vadd.f32 %v717, %v738
    %v751 = vadd.f32 %v718, %v738
    %v752 = vadd.f32 %v719, %v738
    %v753 = vadd.f32 %v720, %v738
    %v754 = vadd.f32 %v721, %v738
    %v755 = vadd.f32 %v722, %v738
    %v756 = vadd.f32 %v723, %v738
    %v757 = vadd.f32 %v724, %v738
    %v758 = vadd.f32 %v725, %v738
    %v759 = vadd.f32 %v726, %v738
    %v760 = vadd.f32 %v727, %v738
    %v761 = vadd.f32 %v728, %v738
    %v762 = vadd.f32 %v729, %v738
    %v763 = vadd.f32 %v730, %v738
    %v764 = vadd.f32 %v731, %v738
    %v765 = vadd.f32 %v732, %v738
    %v766 = vadd.f32 %v733, %v738
    %v767 = vadd.f32 %v734, %v738
    %v768 = vadd.f32 %v735, %v738
    %v769 = vadd.f32 %v736, %v738
    %v770 = vadd.f32 %v737, %v738
    %v771 = vadd.f32 %v608, 1.0
    %v772 = vadd.f32 %v609, 1.0
    %v773 = vadd.f32 %v610, 1.0
    %v774 = vadd.f32 %v611, 1.0
    %v775 = vadd.f32 %v612, 1.0
    %v776 = vadd.f32 %v613, 1.0
    %v777 = vadd.f32 %v614, 1.0
    %v778 = vadd.f32 %v615, 1.0
    %v779 = vadd.f32 %v616, 1.0
    %v780 = vadd.f32 %v617, 1.0
    %v781 = vadd.f32 %v618, 1.0
    %v782 = vadd.f32 %v619, 1.0
    %v783 = vadd.f32 %v620, 1.0
    %v784 = vadd.f32 %v621, 1.0
    %v785 = vadd.f32 %v622, 1.0
    %v786 = vadd.f32 %v623, 1.0
    %v787 = vadd.f32 %v624, 1.0
    %v788 = vadd.f32 %v625, 1.0
    %v789 = vadd.f32 %v626, 1.0
    %v790 = vadd.f32 %v627, 1.0
    %v791 = vadd.f32 %v628, 1.0
    %v792 = vadd.f32 %v629, 1.0
    %v793 = vadd.f32 %v630, 1.0
    %v794 = vadd.f32 %v631, 1.0
    %v795 = vadd.f32 %v632, 1.0
    %v796 = vadd.f32 %v633, 1.0
    %v797 = vadd.f32 %v634, 1.0
    %v798 = vadd.f32 %v635, 1.0
    %v799 = vadd.f32 %v636, 1.0
    %v800 = vadd.f32 %v637, 1.0
    %v801 = vadd.f32 %v638, 1.0
    %v802 = vadd.f32 %v639, 1.0
    %v803 = vmul.f32 %v771, 7.5
    %v804 = vmul.f32 %v772, 7.5
    %v805 = vmul.f32 %v773, 7.5
    %v806 = vmul.f32 %v774, 7.5
    %v807 = vmul.f32 %v775, 7.5
    %v808 = vmul.f32 %v776, 7.5
    %v809 = vmul.f32 %v777, 7.5
    %v810 = vmul.f32 %v778, 7.5
    %v811 = vmul.f32 %v779, 7.5
    %v812 = vmul.f32 %v780, 7.5
    %v813 = vmul.f32 %v781, 7.5
    %v814 = vmul.f32 %v782, 7.5
    %v815 = vmul.f32 %v783, 7.5
    %v816 = vmul.f32 %v784, 7.5
    %v817 = vmul.f32 %v785, 7.5
    %v818 = vmul.f32 %v786, 7.5
    %v819 = vmul.f32 %v787, 7.5
    %v820 = vmul.f32 %v788, 7.5
    %v821 = vmul.f32 %v789, 7.5
    %v822 = vmul.f32 %v790, 7.5
    %v823 = vmul.f32 %v791, 7.5
    %v824 = vmul.f32 %v792, 7.5
    %v825 = vmul.f32 %v793, 7.5
    %v826 = vmul.f32 %v794, 7.5
    %v827 = vmul.f32 %v795, 7.5
    %v828 = vmul.f32 %v796, 7.5
    %v829 = vmul.f32 %v797, 7.5
    %v830 = vmul.f32 %v798, 7.5
    %v831 = vmul.f32 %v799, 7.5
    %v832 = vmul.f32 %v800, 7.5
    %v833 = vmul.f32 %v801, 7.5
    %v834 = vmul.f32 %v802, 7.5
    %v835 = vadd.f32 %v739, 1.0
    %v836 = vadd.f32 %v740, 1.0
    %v837 = vadd.f32 %v741, 1.0
    %v838 = vadd.f32 %v742, 1.0
    %v839 = vadd.f32 %v743, 1.0
    %v840 = vadd.f32 %v744, 1.0
    %v841 = vadd.f32 %v745, 1.0
    %v842 = vadd.f32 %v746, 1.0
    %v843 = vadd.f32 %v747, 1.0
    %v844 = vadd.f32 %v748, 1.0
    %v845 = vadd.f32 %v749, 1.0
    %v846 = vadd.f32 %v750, 1.0
    %v847 = vadd.f32 %v751, 1.0
    %v848 = vadd.f32 %v752, 1.0
    %v849 = vadd.f32 %v753, 1.0
    %v850 = vadd.f32 %v754, 1.0
    %v851 = vadd.f32 %v755, 1.0
    %v852 = vadd.f32 %v756, 1.0
    %v853 = vadd.f32 %v757, 1.0
    %v854 = vadd.f32 %v758, 1.0
    %v855 = vadd.f32 %v759, 1.0
    %v856 = vadd.f32 %v760, 1.0
    %v857 = vadd.f32 %v761, 1.0
    %v858 = vadd.f32 %v762, 1.0
    %v859 = vadd.f32 %v763, 1.0
    %v860 = vadd.f32 %v764, 1.0
    %v861 = vadd.f32 %v765, 1.0
    %v862 = vadd.f32 %v766, 1.0
    %v863 = vadd.f32 %v767, 1.0
    %v864 = vadd.f32 %v768, 1.0
    %v865 = vadd.f32 %v769, 1.0
    %v866 = vadd.f32 %v770, 1.0
    %v867 = vmul.f32 %v835, 7.5
    %v868 = vmul.f32 %v836, 7.5
    %v869 = vmul.f32 %v837, 7.5
    %v870 = vmul.f32 %v838, 7.5
    %v871 = vmul.f32 %v839, 7.5
    %v872 = vmul.f32 %v840, 7.5
    %v873 = vmul.f32 %v841, 7.5
    %v874 = vmul.f32 %v842, 7.5
    %v875 = vmul.f32 %v843, 7.5
    %v876 = vmul.f32 %v844, 7.5
    %v877 = vmul.f32 %v845, 7.5
    %v878 = vmul.f32 %v846, 7.5
    %v879 = vmul.f32 %v847, 7.5
    %v880 = vmul.f32 %v848, 7.5
    %v881 = vmul.f32 %v849, 7.5
    %v882 = vmul.f32 %v850, 7.5
    %v883 = vmul.f32 %v851, 7.5
    %v884 = vmul.f32 %v852, 7.5
    %v885 = vmul.f32 %v853, 7.5
    %v886 = vmul.f32 %v854, 7.5
    %v887 = vmul.f32 %v855, 7.5
    %v888 = vmul.f32 %v856, 7.5
    %v889 = vmul.f32 %v857, 7.5
    %v890 = vmul.f32 %v858, 7.5
    %v891 = vmul.f32 %v859, 7.5
    %v892 = vmul.f32 %v860, 7.5
    %v893 = vmul.f32 %v861, 7.5
    %v894 = vmul.f32 %v862, 7.5
    %v895 = vmul.f32 %v863, 7.5
    %v896 = vmul.f32 %v864, 7.5
    %v897 = vmul.f32 %v865, 7.5
    %v898 = vmul.f32 %v866, 7.5
    %v899 = vfloor.f32 %v803
    %v900 = vfloor.f32 %v804
    %v901 = vfloor.f32 %v805
    %v902 = vfloor.f32 %v806
    %v903 = vfloor.f32 %v807
    %v904 = vfloor.f32 %v808
    %v905 = vfloor.f32 %v809
    %v906 = vfloor.f32 %v810
    %v907 = vfloor.f32 %v811
    %v908 = vfloor.f32 %v812
    %v909 = vfloor.f32 %v813
    %v910 = vfloor.f32 %v814
    %v911 = vfloor.f32 %v815
    %v912 = vfloor.f32 %v816
    %v913 = vfloor.f32 %v817
    %v914 = vfloor.f32 %v818
    %v915 = vfloor.f32 %v819
    %v916 = vfloor.f32 %v820
    %v917 = vfloor.f32 %v821
    %v918 = vfloor.f32 %v822
    %v919 = vfloor.f32 %v823
    %v920 = vfloor.f32 %v824
    %v921 = vfloor.f32 %v825
    %v922 = vfloor.f32 %v826
    %v923 = vfloor.f32 %v827
    %v924 = vfloor.f32 %v828
    %v925 = vfloor.f32 %v829
    %v926 = vfloor.f32 %v830
    %v927 = vfloor.f32 %v831
    %v928 = vfloor.f32 %v832
    %v929 = vfloor.f32 %v833
    %v930 = vfloor.f32 %v834
    %v931 = vfloor.f32 %v867
    %v932 = vfloor.f32 %v868
    %v933 = vfloor.f32 %v869
    %v934 = vfloor.f32 %v870
    %v935 = vfloor.f32 %v871
    %v936 = vfloor.f32 %v872
    %v937 = vfloor.f32 %v873
    %v938 = vfloor.f32 %v874
    %v939 = vfloor.f32 %v875
    %v940 = vfloor.f32 %v876
    %v941 = vfloor.f32 %v877
    %v942 = vfloor.f32 %v878
    %v943 = vfloor.f32 %v879
    %v944 = vfloor.f32 %v880
    %v945 = vfloor.f32 %v881
    %v946 = vfloor.f32 %v882
    %v947 = vfloor.f32 %v883
    %v948 = vfloor.f32 %v884
    %v949 = vfloor.f32 %v885
    %v950 = vfloor.f32 %v886
    %v951 = vfloor.f32 %v887
    %v952 = vfloor.f32 %v888
    %v953 = vfloor.f32 %v889
    %v954 = vfloor.f32 %v890
    %v955 = vfloor.f32 %v891
    %v956 = vfloor.f32 %v892
    %v957 = vfloor.f32 %v893
    %v958 = vfloor.f32 %v894
    %v959 = vfloor.f32 %v895
    %v960 = vfloor.f32 %v896
    %v961 = vfloor.f32 %v897
    %v962 = vfloor.f32 %v898
    %v963 = vsub.f32 %v803, %v899
    %v964 = vsub.f32 %v804, %v900
    %v965 = vsub.f32 %v805, %v901
    %v966 = vsub.f32 %v806, %v902
    %v967 = vsub.f32 %v807, %v903
    %v968 = vsub.f32 %v808, %v904
    %v969 = vsub.f32 %v809, %v905
    %v970 = vsub.f32 %v810, %v906
    %v971 = vsub.f32 %v811, %v907
    %v972 = vsub.f32 %v812, %v908
    %v973 = vsub.f32 %v813, %v909
    %v974 = vsub.f32 %v814, %v910
    %v975 = vsub.f32 %v815, %v911
    %v976 = vsub.f32 %v816, %v912
    %v977 = vsub.f32 %v817, %v913
    %v978 = vsub.f32 %v818, %v914
    %v979 = vsub.f32 %v819, %v915
    %v980 = vsub.f32 %v820, %v916
    %v981 = vsub.f32 %v821, %v917
    %v982 = vsub.f32 %v822, %v918
    %v983 = vsub.f32 %v823, %v919
    %v984 = vsub.f32 %v824, %v920
    %v985 = vsub.f32 %v825, %v921
    %v986 = vsub.f32 %v826, %v922
    %v987 = vsub.f32 %v827, %v923
    %v988 = vsub.f32 %v828, %v924
    %v989 = vsub.f32 %v829, %v925
    %v990 = vsub.f32 %v830, %v926
    %v991 = vsub.f32 %v831, %v927
    %v992 = vsub.f32 %v832, %v928
    %v993 = vsub.f32 %v833, %v929
    %v994 = vsub.f32 %v834, %v930
    %v995 = vsub.f32 1.0, %v963
    %v996 = vsub.f32 1.0, %v964
    %v997 = vsub.f32 1.0, %v965
    %v998 = vsub.f32 1.0, %v966
    %v999 = vsub.f32 1.0, %v967
    %v1000 = vsub.f32 1.0, %v968
    %v1001 = vsub.f32 1.0, %v969
    %v1002 = vsub.f32 1.0, %v970
    %v1003 = vsub.f32 1.0, %v971
    %v1004 = vsub.f32 1.0, %v972
    %v1005 = vsub.f32 1.0, %v973
    %v1006 = vsub.f32 1.0, %v974
    %v1007 = vsub.f32 1.0, %v975
    %v1008 = vsub.f32 1.0, %v976
    %v1009 = vsub.f32 1.0, %v977
    %v1010 = vsub.f32 1.0, %v978
    %v1011 = vsub.f32 1.0, %v979
    %v1012 = vsub.f32 1.0, %v980
    %v1013 = vsub.f32 1.0, %v981
    %v1014 = vsub.f32 1.0, %v982
    %v1015 = vsub.f32 1.0, %v983
    %v1016 = vsub.f32 1.0, %v984
    %v1017 = vsub.f32 1.0, %v985
    %v1018 = vsub.f32 1.0, %v986
    %v1019 = vsub.f32 1.0, %v987
    %v1020 = vsub.f32 1.0, %v988
    %v1021 = vsub.f32 1.0, %v989
    %v1022 = vsub.f32 1.0, %v990
    %v1023 = vsub.f32 1.0, %v991
    %v1024 = vsub.f32 1.0, %v992
    %v1025 = vsub.f32 1.0, %v993
    %v1026 = vsub.f32 1.0, %v994
    %v1027 = vsub.f32 %v867, %v931
    %v1028 = vsub.f32 %v868, %v932
    %v1029 = vsub.f32 %v869, %v933
    %v1030 = vsub.f32 %v870, %v934
    %v1031 = vsub.f32 %v871, %v935
    %v1032 = vsub.f32 %v872, %v936
    %v1033 = vsub.f32 %v873, %v937
    %v1034 = vsub.f32 %v874, %v938
    %v1035 = vsub.f32 %v875, %v939
    %v1036 = vsub.f32 %v876, %v940
    %v1037 = vsub.f32 %v877, %v941
    %v1038 = vsub.f32 %v878, %v942
    %v1039 = vsub.f32 %v879, %v943
    %v1040 = vsub.f32 %v880, %v944
    %v1041 = vsub.f32 %v881, %v945
    %v1042 = vsub.f32 %v882, %v946
    %v1043 = vsub.f32 %v883, %v947
    %v1044 = vsub.f32 %v884, %v948
    %v1045 = vsub.f32 %v885, %v949
    %v1046 = vsub.f32 %v886, %v950
    %v1047 = vsub.f32 %v887, %v951
    %v1048 = vsub.f32 %v888, %v952
    %v1049 = vsub.f32 %v889, %v953
    %v1050 = vsub.f32 %v890, %v954
    %v1051 = vsub.f32 %v891, %v955
    %v1052 = vsub.f32 %v892, %v956
    %v1053 = vsub.f32 %v893, %v957
    %v1054 = vsub.f32 %v894, %v958
    %v1055 = vsub.f32 %v895, %v959
    %v1056 = vsub.f32 %v896, %v960
    %v1057 = vsub.f32 %v897, %v961
    %v1058 = vsub.f32 %v898, %v962
    %v1059 = vsub.f32 1.0, %v1027
    %v1060 = vsub.f32 1.0, %v1028
    %v1061 = vsub.f32 1.0, %v1029
    %v1062 = vsub.f32 1.0, %v1030
    %v1063 = vsub.f32 1.0, %v1031
    %v1064 = vsub.f32 1.0, %v1032
    %v1065 = vsub.f32 1.0, %v1033
    %v1066 = vsub.f32 1.0, %v1034
    %v1067 = vsub.f32 1.0, %v1035
    %v1068 = vsub.f32 1.0, %v1036
    %v1069 = vsub.f32 1.0, %v1037
    %v1070 = vsub.f32 1.0, %v1038
    %v1071 = vsub.f32 1.0, %v1039
    %v1072 = vsub.f32 1.0, %v1040
    %v1073 = vsub.f32 1.0, %v1041
    %v1074 = vsub.f32 1.0, %v1042
    %v1075 = vsub.f32 1.0, %v1043
    %v1076 = vsub.f32 1.0, %v1044
    %v1077 = vsub.f32 1.0, %v1045
    %v1078 = vsub.f32 1.0, %v1046
    %v1079 = vsub.f32 1.0, %v1047
    %v1080 = vsub.f32 1.0, %v1048
    %v1081 = vsub.f32 1.0, %v1049
    %v1082 = vsub.f32 1.0, %v1050
    %v1083 = vsub.f32 1.0, %v1051
    %v1084 = vsub.f32 1.0, %v1052
    %v1085 = vsub.f32 1.0, %v1053
    %v1086 = vsub.f32 1.0, %v1054
    %v1087 = vsub.f32 1.0, %v1055
    %v1088 = vsub.f32 1.0, %v1056
    %v1089 = vsub.f32 1.0, %v1057
    %v1090 = vsub.f32 1.0, %v1058
    %v1091 = vmax.f32 %v899, -2.0
    %v1092 = vmax.f32 %v900, -2.0
    %v1093 = vmax.f32 %v901, -2.0
    %v1094 = vmax.f32 %v902, -2.0
    %v1095 = vmax.f32 %v903, -2.0
    %v1096 = vmax.f32 %v904, -2.0
    %v1097 = vmax.f32 %v905, -2.0
    %v1098 = vmax.f32 %v906, -2.0
    %v1099 = vmax.f32 %v907, -2.0
    %v1100 = vmax.f32 %v908, -2.0
    %v1101 = vmax.f32 %v909, -2.0
    %v1102 = vmax.f32 %v910, -2.0
    %v1103 = vmax.f32 %v911, -2.0
    %v1104 = vmax.f32 %v912, -2.0
    %v1105 = vmax.f32 %v913, -2.0
    %v1106 = vmax.f32 %v914, -2.0
    %v1107 = vmax.f32 %v915, -2.0
    %v1108 = vmax.f32 %v916, -2.0
    %v1109 = vmax.f32 %v917, -2.0
    %v1110 = vmax.f32 %v918, -2.0
    %v1111 = vmax.f32 %v919, -2.0
    %v1112 = vmax.f32 %v920, -2.0
    %v1113 = vmax.f32 %v921, -2.0
    %v1114 = vmax.f32 %v922, -2.0
    %v1115 = vmax.f32 %v923, -2.0
    %v1116 = vmax.f32 %v924, -2.0
    %v1117 = vmax.f32 %v925, -2.0
    %v1118 = vmax.f32 %v926, -2.0
    %v1119 = vmax.f32 %v927, -2.0
    %v1120 = vmax.f32 %v928, -2.0
    %v1121 = vmax.f32 %v929, -2.0
    %v1122 = vmax.f32 %v930, -2.0
    %v1123 = vmin.f32 %v1091, 17.0
    %v1124 = vmin.f32 %v1092, 17.0
    %v1125 = vmin.f32 %v1093, 17.0
    %v1126 = vmin.f32 %v1094, 17.0
    %v1127 = vmin.f32 %v1095, 17.0
    %v1128 = vmin.f32 %v1096, 17.0
    %v1129 = vmin.f32 %v1097, 17.0
    %v1130 = vmin.f32 %v1098, 17.0
    %v1131 = vmin.f32 %v1099, 17.0
    %v1132 = vmin.f32 %v1100, 17.0
    %v1133 = vmin.f32 %v1101, 17.0
    %v1134 = vmin.f32 %v1102, 17.0
    %v1135 = vmin.f32 %v1103, 17.0
    %v1136 = vmin.f32 %v1104, 17.0
    %v1137 = vmin.f32 %v1105, 17.0
    %v1138 = vmin.f32 %v1106, 17.0
    %v1139 = vmin.f32 %v1107, 17.0
    %v1140 = vmin.f32 %v1108, 17.0
    %v1141 = vmin.f32 %v1109, 17.0
    %v1142 = vmin.f32 %v1110, 17.0
    %v1143 = vmin.f32 %v1111, 17.0
    %v1144 = vmin.f32 %v1112, 17.0
    %v1145 = vmin.f32 %v1113, 17.0
    %v1146 = vmin.f32 %v1114, 17.0
    %v1147 = vmin.f32 %v1115, 17.0
    %v1148 = vmin.f32 %v1116, 17.0
    %v1149 = vmin.f32 %v1117, 17.0
    %v1150 = vmin.f32 %v1118, 17.0
    %v1151 = vmin.f32 %v1119, 17.0
    %v1152 = vmin.f32 %v1120, 17.0
    %v1153 = vmin.f32 %v1121, 17.0
    %v1154 = vmin.f32 %v1122, 17.0
    %v1155 = vcvt.f32.s32.to.zero.pseudo %v1123
    %v1156 = vcvt.f32.s32.to.zero.pseudo %v1124
    %v1157 = vcvt.f32.s32.to.zero.pseudo %v1125
    %v1158 = vcvt.f32.s32.to.zero.pseudo %v1126
    %v1159 = vcvt.f32.s32.to.zero.pseudo %v1127
    %v1160 = vcvt.f32.s32.to.zero.pseudo %v1128
    %v1161 = vcvt.f32.s32.to.zero.pseudo %v1129
    %v1162 = vcvt.f32.s32.to.zero.pseudo %v1130
    %v1163 = vcvt.f32.s32.to.zero.pseudo %v1131
    %v1164 = vcvt.f32.s32.to.zero.pseudo %v1132
    %v1165 = vcvt.f32.s32.to.zero.pseudo %v1133
    %v1166 = vcvt.f32.s32.to.zero.pseudo %v1134
    %v1167 = vcvt.f32.s32.to.zero.pseudo %v1135
    %v1168 = vcvt.f32.s32.to.zero.pseudo %v1136
    %v1169 = vcvt.f32.s32.to.zero.pseudo %v1137
    %v1170 = vcvt.f32.s32.to.zero.pseudo %v1138
    %v1171 = vcvt.f32.s32.to.zero.pseudo %v1139
    %v1172 = vcvt.f32.s32.to.zero.pseudo %v1140
    %v1173 = vcvt.f32.s32.to.zero.pseudo %v1141
    %v1174 = vcvt.f32.s32.to.zero.pseudo %v1142
    %v1175 = vcvt.f32.s32.to.zero.pseudo %v1143
    %v1176 = vcvt.f32.s32.to.zero.pseudo %v1144
    %v1177 = vcvt.f32.s32.to.zero.pseudo %v1145
    %v1178 = vcvt.f32.s32.to.zero.pseudo %v1146
    %v1179 = vcvt.f32.s32.to.zero.pseudo %v1147
    %v1180 = vcvt.f32.s32.to.zero.pseudo %v1148
    %v1181 = vcvt.f32.s32.to.zero.pseudo %v1149
    %v1182 = vcvt.f32.s32.to.zero.pseudo %v1150
    %v1183 = vcvt.f32.s32.to.zero.pseudo %v1151
    %v1184 = vcvt.f32.s32.to.zero.pseudo %v1152
    %v1185 = vcvt.f32.s32.to.zero.pseudo %v1153
    %v1186 = vcvt.f32.s32.to.zero.pseudo %v1154
    %v1187 = vmax.f32 %v931, -2.0
    %v1188 = vmax.f32 %v932, -2.0
    %v1189 = vmax.f32 %v933, -2.0
    %v1190 = vmax.f32 %v934, -2.0
    %v1191 = vmax.f32 %v935, -2.0
    %v1192 = vmax.f32 %v936, -2.0
    %v1193 = vmax.f32 %v937, -2.0
    %v1194 = vmax.f32 %v938, -2.0
    %v1195 = vmax.f32 %v939, -2.0
    %v1196 = vmax.f32 %v940, -2.0
    %v1197 = vmax.f32 %v941, -2.0
    %v1198 = vmax.f32 %v942, -2.0
    %v1199 = vmax.f32 %v943, -2.0
    %v1200 = vmax.f32 %v944, -2.0
    %v1201 = vmax.f32 %v945, -2.0
    %v1202 = vmax.f32 %v946, -2.0
    %v1203 = vmax.f32 %v947, -2.0
    %v1204 = vmax.f32 %v948, -2.0
    %v1205 = vmax.f32 %v949, -2.0
    %v1206 = vmax.f32 %v950, -2.0
    %v1207 = vmax.f32 %v951, -2.0
    %v1208 = vmax.f32 %v952, -2.0
    %v1209 = vmax.f32 %v953, -2.0
    %v1210 = vmax.f32 %v954, -2.0
    %v1211 = vmax.f32 %v955, -2.0
    %v1212 = vmax.f32 %v956, -2.0
    %v1213 = vmax.f32 %v957, -2.0
    %v1214 = vmax.f32 %v958, -2.0
    %v1215 = vmax.f32 %v959, -2.0
    %v1216 = vmax.f32 %v960, -2.0
    %v1217 = vmax.f32 %v961, -2.0
    %v1218 = vmax.f32 %v962, -2.0
    %v1219 = vmin.f32 %v1187, 17.0
    %v1220 = vmin.f32 %v1188, 17.0
    %v1221 = vmin.f32 %v1189, 17.0
    %v1222 = vmin.f32 %v1190, 17.0
    %v1223 = vmin.f32 %v1191, 17.0
    %v1224 = vmin.f32 %v1192, 17.0
    %v1225 = vmin.f32 %v1193, 17.0
    %v1226 = vmin.f32 %v1194, 17.0
    %v1227 = vmin.f32 %v1195, 17.0
    %v1228 = vmin.f32 %v1196, 17.0
    %v1229 = vmin.f32 %v1197, 17.0
    %v1230 = vmin.f32 %v1198, 17.0
    %v1231 = vmin.f32 %v1199, 17.0
    %v1232 = vmin.f32 %v1200, 17.0
    %v1233 = vmin.f32 %v1201, 17.0
    %v1234 = vmin.f32 %v1202, 17.0
    %v1235 = vmin.f32 %v1203, 17.0
    %v1236 = vmin.f32 %v1204, 17.0
    %v1237 = vmin.f32 %v1205, 17.0
    %v1238 = vmin.f32 %v1206, 17.0
    %v1239 = vmin.f32 %v1207, 17.0
    %v1240 = vmin.f32 %v1208, 17.0
    %v1241 = vmin.f32 %v1209, 17.0
    %v1242 = vmin.f32 %v1210, 17.0
    %v1243 = vmin.f32 %v1211, 17.0
    %v1244 = vmin.f32 %v1212, 17.0
    %v1245 = vmin.f32 %v1213, 17.0
    %v1246 = vmin.f32 %v1214, 17.0
    %v1247 = vmin.f32 %v1215, 17.0
    %v1248 = vmin.f32 %v1216, 17.0
    %v1249 = vmin.f32 %v1217, 17.0
    %v1250 = vmin.f32 %v1218, 17.0
    %v1251 = vcvt.f32.s32.to.zero.pseudo %v1219
    %v1252 = vcvt.f32.s32.to.zero.pseudo %v1220
    %v1253 = vcvt.f32.s32.to.zero.pseudo %v1221
    %v1254 = vcvt.f32.s32.to.zero.pseudo %v1222
    %v1255 = vcvt.f32.s32.to.zero.pseudo %v1223
    %v1256 = vcvt.f32.s32.to.zero.pseudo %v1224
    %v1257 = vcvt.f32.s32.to.zero.pseudo %v1225
    %v1258 = vcvt.f32.s32.to.zero.pseudo %v1226
    %v1259 = vcvt.f32.s32.to.zero.pseudo %v1227
    %v1260 = vcvt.f32.s32.to.zero.pseudo %v1228
    %v1261 = vcvt.f32.s32.to.zero.pseudo %v1229
    %v1262 = vcvt.f32.s32.to.zero.pseudo %v1230
    %v1263 = vcvt.f32.s32.to.zero.pseudo %v1231
    %v1264 = vcvt.f32.s32.to.zero.pseudo %v1232
    %v1265 = vcvt.f32.s32.to.zero.pseudo %v1233
    %v1266 = vcvt.f32.s32.to.zero.pseudo %v1234
    %v1267 = vcvt.f32.s32.to.zero.pseudo %v1235
    %v1268 = vcvt.f32.s32.to.zero.pseudo %v1236
    %v1269 = vcvt.f32.s32.to.zero.pseudo %v1237
    %v1270 = vcvt.f32.s32.to.zero.pseudo %v1238
    %v1271 = vcvt.f32.s32.to.zero.pseudo %v1239
    %v1272 = vcvt.f32.s32.to.zero.pseudo %v1240
    %v1273 = vcvt.f32.s32.to.zero.pseudo %v1241
    %v1274 = vcvt.f32.s32.to.zero.pseudo %v1242
    %v1275 = vcvt.f32.s32.to.zero.pseudo %v1243
    %v1276 = vcvt.f32.s32.to.zero.pseudo %v1244
    %v1277 = vcvt.f32.s32.to.zero.pseudo %v1245
    %v1278 = vcvt.f32.s32.to.zero.pseudo %v1246
    %v1279 = vcvt.f32.s32.to.zero.pseudo %v1247
    %v1280 = vcvt.f32.s32.to.zero.pseudo %v1248
    %v1281 = vcvt.f32.s32.to.zero.pseudo %v1249
    %v1282 = vcvt.f32.s32.to.zero.pseudo %v1250
    %vm1283 = vcmp.eq.s32.totalorder %v487, %v1155
    %vm1284 = vcmp.eq.s32.totalorder %v487, %v1156
    %vm1285 = vcmp.eq.s32.totalorder %v487, %v1157
    %vm1286 = vcmp.eq.s32.totalorder %v487, %v1158
    %vm1287 = vcmp.eq.s32.totalorder %v487, %v1159
    %vm1288 = vcmp.eq.s32.totalorder %v487, %v1160
    %vm1289 = vcmp.eq.s32.totalorder %v487, %v1161
    %vm1290 = vcmp.eq.s32.totalorder %v487, %v1162
    %vm1291 = vcmp.eq.s32.totalorder %v487, %v1163
    %vm1292 = vcmp.eq.s32.totalorder %v487, %v1164
    %vm1293 = vcmp.eq.s32.totalorder %v487, %v1165
    %vm1294 = vcmp.eq.s32.totalorder %v487, %v1166
    %vm1295 = vcmp.eq.s32.totalorder %v487, %v1167
    %vm1296 = vcmp.eq.s32.totalorder %v487, %v1168
    %vm1297 = vcmp.eq.s32.totalorder %v487, %v1169
    %vm1298 = vcmp.eq.s32.totalorder %v487, %v1170
    %vm1299 = vcmp.eq.s32.totalorder %v487, %v1171
    %vm1300 = vcmp.eq.s32.totalorder %v487, %v1172
    %vm1301 = vcmp.eq.s32.totalorder %v487, %v1173
    %vm1302 = vcmp.eq.s32.totalorder %v487, %v1174
    %vm1303 = vcmp.eq.s32.totalorder %v487, %v1175
    %vm1304 = vcmp.eq.s32.totalorder %v487, %v1176
    %vm1305 = vcmp.eq.s32.totalorder %v487, %v1177
    %vm1306 = vcmp.eq.s32.totalorder %v487, %v1178
    %vm1307 = vcmp.eq.s32.totalorder %v487, %v1179
    %vm1308 = vcmp.eq.s32.totalorder %v487, %v1180
    %vm1309 = vcmp.eq.s32.totalorder %v487, %v1181
    %vm1310 = vcmp.eq.s32.totalorder %v487, %v1182
    %vm1311 = vcmp.eq.s32.totalorder %v487, %v1183
    %vm1312 = vcmp.eq.s32.totalorder %v487, %v1184
    %vm1313 = vcmp.eq.s32.totalorder %v487, %v1185
    %vm1314 = vcmp.eq.s32.totalorder %v487, %v1186
    %v1315 = vsel %vm1283, %v995, 0.0
    %v1316 = vsel %vm1284, %v996, 0.0
    %v1317 = vsel %vm1285, %v997, 0.0
    %v1318 = vsel %vm1286, %v998, 0.0
    %v1319 = vsel %vm1287, %v999, 0.0
    %v1320 = vsel %vm1288, %v1000, 0.0
    %v1321 = vsel %vm1289, %v1001, 0.0
    %v1322 = vsel %vm1290, %v1002, 0.0
    %v1323 = vsel %vm1291, %v1003, 0.0
    %v1324 = vsel %vm1292, %v1004, 0.0
    %v1325 = vsel %vm1293, %v1005, 0.0
    %v1326 = vsel %vm1294, %v1006, 0.0
    %v1327 = vsel %vm1295, %v1007, 0.0
    %v1328 = vsel %vm1296, %v1008, 0.0
    %v1329 = vsel %vm1297, %v1009, 0.0
    %v1330 = vsel %vm1298, %v1010, 0.0
    %v1331 = vsel %vm1299, %v1011, 0.0
    %v1332 = vsel %vm1300, %v1012, 0.0
    %v1333 = vsel %vm1301, %v1013, 0.0
    %v1334 = vsel %vm1302, %v1014, 0.0
    %v1335 = vsel %vm1303, %v1015, 0.0
    %v1336 = vsel %vm1304, %v1016, 0.0
    %v1337 = vsel %vm1305, %v1017, 0.0
    %v1338 = vsel %vm1306, %v1018, 0.0
    %v1339 = vsel %vm1307, %v1019, 0.0
    %v1340 = vsel %vm1308, %v1020, 0.0
    %v1341 = vsel %vm1309, %v1021, 0.0
    %v1342 = vsel %vm1310, %v1022, 0.0
    %v1343 = vsel %vm1311, %v1023, 0.0
    %v1344 = vsel %vm1312, %v1024, 0.0
    %v1345 = vsel %vm1313, %v1025, 0.0
    %v1346 = vsel %vm1314, %v1026, 0.0
    %v1347 = vadd.s32 %v1155, 1
    %v1348 = vadd.s32 %v1156, 1
    %v1349 = vadd.s32 %v1157, 1
    %v1350 = vadd.s32 %v1158, 1
    %v1351 = vadd.s32 %v1159, 1
    %v1352 = vadd.s32 %v1160, 1
    %v1353 = vadd.s32 %v1161, 1
    %v1354 = vadd.s32 %v1162, 1
    %v1355 = vadd.s32 %v1163, 1
    %v1356 = vadd.s32 %v1164, 1
    %v1357 = vadd.s32 %v1165, 1
    %v1358 = vadd.s32 %v1166, 1
    %v1359 = vadd.s32 %v1167, 1
    %v1360 = vadd.s32 %v1168, 1
    %v1361 = vadd.s32 %v1169, 1
    %v1362 = vadd.s32 %v1170, 1
    %v1363 = vadd.s32 %v1171, 1
    %v1364 = vadd.s32 %v1172, 1
    %v1365 = vadd.s32 %v1173, 1
    %v1366 = vadd.s32 %v1174, 1
    %v1367 = vadd.s32 %v1175, 1
    %v1368 = vadd.s32 %v1176, 1
    %v1369 = vadd.s32 %v1177, 1
    %v1370 = vadd.s32 %v1178, 1
    %v1371 = vadd.s32 %v1179, 1
    %v1372 = vadd.s32 %v1180, 1
    %v1373 = vadd.s32 %v1181, 1
    %v1374 = vadd.s32 %v1182, 1
    %v1375 = vadd.s32 %v1183, 1
    %v1376 = vadd.s32 %v1184, 1
    %v1377 = vadd.s32 %v1185, 1
    %v1378 = vadd.s32 %v1186, 1
    %vm1379 = vcmp.eq.s32.totalorder %v487, %v1347
    %vm1380 = vcmp.eq.s32.totalorder %v487, %v1348
    %vm1381 = vcmp.eq.s32.totalorder %v487, %v1349
    %vm1382 = vcmp.eq.s32.totalorder %v487, %v1350
    %vm1383 = vcmp.eq.s32.totalorder %v487, %v1351
    %vm1384 = vcmp.eq.s32.totalorder %v487, %v1352
    %vm1385 = vcmp.eq.s32.totalorder %v487, %v1353
    %vm1386 = vcmp.eq.s32.totalorder %v487, %v1354
    %vm1387 = vcmp.eq.s32.totalorder %v487, %v1355
    %vm1388 = vcmp.eq.s32.totalorder %v487, %v1356
    %vm1389 = vcmp.eq.s32.totalorder %v487, %v1357
    %vm1390 = vcmp.eq.s32.totalorder %v487, %v1358
    %vm1391 = vcmp.eq.s32.totalorder %v487, %v1359
    %vm1392 = vcmp.eq.s32.totalorder %v487, %v1360
    %vm1393 = vcmp.eq.s32.totalorder %v487, %v1361
    %vm1394 = vcmp.eq.s32.totalorder %v487, %v1362
    %vm1395 = vcmp.eq.s32.totalorder %v487, %v1363
    %vm1396 = vcmp.eq.s32.totalorder %v487, %v1364
    %vm1397 = vcmp.eq.s32.totalorder %v487, %v1365
    %vm1398 = vcmp.eq.s32.totalorder %v487, %v1366
    %vm1399 = vcmp.eq.s32.totalorder %v487, %v1367
    %vm1400 = vcmp.eq.s32.totalorder %v487, %v1368
    %vm1401 = vcmp.eq.s32.totalorder %v487, %v1369
    %vm1402 = vcmp.eq.s32.totalorder %v487, %v1370
    %vm1403 = vcmp.eq.s32.totalorder %v487, %v1371
    %vm1404 = vcmp.eq.s32.totalorder %v487, %v1372
    %vm1405 = vcmp.eq.s32.totalorder %v487, %v1373
    %vm1406 = vcmp.eq.s32.totalorder %v487, %v1374
    %vm1407 = vcmp.eq.s32.totalorder %v487, %v1375
    %vm1408 = vcmp.eq.s32.totalorder %v487, %v1376
    %vm1409 = vcmp.eq.s32.totalorder %v487, %v1377
    %vm1410 = vcmp.eq.s32.totalorder %v487, %v1378
    %v1411 = vsel %vm1379, %v963, 0.0
    %v1412 = vsel %vm1380, %v964, 0.0
    %v1413 = vsel %vm1381, %v965, 0.0
    %v1414 = vsel %vm1382, %v966, 0.0
    %v1415 = vsel %vm1383, %v967, 0.0
    %v1416 = vsel %vm1384, %v968, 0.0
    %v1417 = vsel %vm1385, %v969, 0.0
    %v1418 = vsel %vm1386, %v970, 0.0
    %v1419 = vsel %vm1387, %v971, 0.0
    %v1420 = vsel %vm1388, %v972, 0.0
    %v1421 = vsel %vm1389, %v973, 0.0
    %v1422 = vsel %vm1390, %v974, 0.0
    %v1423 = vsel %vm1391, %v975, 0.0
    %v1424 = vsel %vm1392, %v976, 0.0
    %v1425 = vsel %vm1393, %v977, 0.0
    %v1426 = vsel %vm1394, %v978, 0.0
    %v1427 = vsel %vm1395, %v979, 0.0
    %v1428 = vsel %vm1396, %v980, 0.0
    %v1429 = vsel %vm1397, %v981, 0.0
    %v1430 = vsel %vm1398, %v982, 0.0
    %v1431 = vsel %vm1399, %v983, 0.0
    %v1432 = vsel %vm1400, %v984, 0.0
    %v1433 = vsel %vm1401, %v985, 0.0
    %v1434 = vsel %vm1402, %v986, 0.0
    %v1435 = vsel %vm1403, %v987, 0.0
    %v1436 = vsel %vm1404, %v988, 0.0
    %v1437 = vsel %vm1405, %v989, 0.0
    %v1438 = vsel %vm1406, %v990, 0.0
    %v1439 = vsel %vm1407, %v991, 0.0
    %v1440 = vsel %vm1408, %v992, 0.0
    %v1441 = vsel %vm1409, %v993, 0.0
    %v1442 = vsel %vm1410, %v994, 0.0
    %v1443 = vadd.f32 %v1315, %v1411
    %v1444 = vadd.f32 %v1316, %v1412
    %v1445 = vadd.f32 %v1317, %v1413
    %v1446 = vadd.f32 %v1318, %v1414
    %v1447 = vadd.f32 %v1319, %v1415
    %v1448 = vadd.f32 %v1320, %v1416
    %v1449 = vadd.f32 %v1321, %v1417
    %v1450 = vadd.f32 %v1322, %v1418
    %v1451 = vadd.f32 %v1323, %v1419
    %v1452 = vadd.f32 %v1324, %v1420
    %v1453 = vadd.f32 %v1325, %v1421
    %v1454 = vadd.f32 %v1326, %v1422
    %v1455 = vadd.f32 %v1327, %v1423
    %v1456 = vadd.f32 %v1328, %v1424
    %v1457 = vadd.f32 %v1329, %v1425
    %v1458 = vadd.f32 %v1330, %v1426
    %v1459 = vadd.f32 %v1331, %v1427
    %v1460 = vadd.f32 %v1332, %v1428
    %v1461 = vadd.f32 %v1333, %v1429
    %v1462 = vadd.f32 %v1334, %v1430
    %v1463 = vadd.f32 %v1335, %v1431
    %v1464 = vadd.f32 %v1336, %v1432
    %v1465 = vadd.f32 %v1337, %v1433
    %v1466 = vadd.f32 %v1338, %v1434
    %v1467 = vadd.f32 %v1339, %v1435
    %v1468 = vadd.f32 %v1340, %v1436
    %v1469 = vadd.f32 %v1341, %v1437
    %v1470 = vadd.f32 %v1342, %v1438
    %v1471 = vadd.f32 %v1343, %v1439
    %v1472 = vadd.f32 %v1344, %v1440
    %v1473 = vadd.f32 %v1345, %v1441
    %v1474 = vadd.f32 %v1346, %v1442
    %v1475 = vpack.c.bf16 %v1444, %v1443
    %v1476 = vpack.c.bf16 %v1446, %v1445
    %v1477 = vpack.c.bf16 %v1448, %v1447
    %v1478 = vpack.c.bf16 %v1450, %v1449
    %v1479 = vpack.c.bf16 %v1452, %v1451
    %v1480 = vpack.c.bf16 %v1454, %v1453
    %v1481 = vpack.c.bf16 %v1456, %v1455
    %v1482 = vpack.c.bf16 %v1458, %v1457
    %v1483 = vpack.c.bf16 %v1460, %v1459
    %v1484 = vpack.c.bf16 %v1462, %v1461
    %v1485 = vpack.c.bf16 %v1464, %v1463
    %v1486 = vpack.c.bf16 %v1466, %v1465
    %v1487 = vpack.c.bf16 %v1468, %v1467
    %v1488 = vpack.c.bf16 %v1470, %v1469
    %v1489 = vpack.c.bf16 %v1472, %v1471
    %v1490 = vpack.c.bf16 %v1474, %v1473
    %v1491 = vld [vmem:[%s1] sm:$0xf]
    %v1492 = vld [vmem:[%s1 + $0x4] sm:$0xf]
    %v1495 = vunpack.c.l.b16 %v1491
    %v1496 = vunpack.c.l.b16 %v1492
    %v1497 = vpack.c.b16 %v1496, %v1495
    %vm1499 = vcmask 130048
    %v1501 = vsel %vm1499, %v1475, 0
    %v1504 = vsel %vm1499, %v1476, 0
    %v1507 = vsel %vm1499, %v1477, 0
    %v1510 = vsel %vm1499, %v1478, 0
    %v1513 = vsel %vm1499, %v1479, 0
    %v1516 = vsel %vm1499, %v1480, 0
    %v1519 = vsel %vm1499, %v1481, 0
    %v1522 = vsel %vm1499, %v1482, 0
    %v1525 = vsel %vm1499, %v1483, 0
    %v1528 = vsel %vm1499, %v1484, 0
    %v1531 = vsel %vm1499, %v1485, 0
    %v1534 = vsel %vm1499, %v1486, 0
    %v1537 = vsel %vm1499, %v1487, 0
    %v1540 = vsel %vm1499, %v1488, 0
    %v1543 = vsel %vm1499, %v1489, 0
    %v1546 = vsel %vm1499, %v1490, 0
    %1548 = vmatpush.bf16.msra.mxu0 0
    %1549 = vmatpush.bf16.msra.mxu0 0
    %1550 = vmatpush.bf16.msra.mxu0 0
    %1551 = vmatpush.bf16.msra.mxu0 0
    %1552 = vmatpush.bf16.msra.mxu0 0
    %1553 = vmatpush.bf16.msra.mxu0 0
    %1554 = vmatpush.bf16.msra.mxu0 0
    %1555 = vmatpush.bf16.msra.mxu0 %v1497
    %1556 = vmatmul.bf16.gmra.mxu0 %v1501
    %v1557 = vpop.f32.mrf.mxu0
    %v1558 = vadd.f32 0.0, %v1557
    %v1559 = vpop.f32.mrf.mxu0
    %v1560 = vadd.f32 0.0, %v1559
    %1561 = vmatmul.bf16.gmra.mxu0 %v1504
    %v1562 = vpop.f32.mrf.mxu0
    %v1563 = vadd.f32 0.0, %v1562
    %v1564 = vpop.f32.mrf.mxu0
    %v1565 = vadd.f32 0.0, %v1564
    %1566 = vmatmul.bf16.gmra.mxu0 %v1507
    %v1567 = vpop.f32.mrf.mxu0
    %v1568 = vadd.f32 0.0, %v1567
    %v1569 = vpop.f32.mrf.mxu0
    %v1570 = vadd.f32 0.0, %v1569
    %1571 = vmatmul.bf16.gmra.mxu0 %v1510
    %v1572 = vpop.f32.mrf.mxu0
    %v1573 = vadd.f32 0.0, %v1572
    %v1574 = vpop.f32.mrf.mxu0
    %v1575 = vadd.f32 0.0, %v1574
    %1576 = vmatmul.bf16.gmra.mxu0 %v1513
    %v1577 = vpop.f32.mrf.mxu0
    %v1578 = vadd.f32 0.0, %v1577
    %v1579 = vpop.f32.mrf.mxu0
    %v1580 = vadd.f32 0.0, %v1579
    %1581 = vmatmul.bf16.gmra.mxu0 %v1516
    %v1582 = vpop.f32.mrf.mxu0
    %v1583 = vadd.f32 0.0, %v1582
    %v1584 = vpop.f32.mrf.mxu0
    %v1585 = vadd.f32 0.0, %v1584
    %1586 = vmatmul.bf16.gmra.mxu0 %v1519
    %v1587 = vpop.f32.mrf.mxu0
    %v1588 = vadd.f32 0.0, %v1587
    %v1589 = vpop.f32.mrf.mxu0
    %v1590 = vadd.f32 0.0, %v1589
    %1591 = vmatmul.bf16.gmra.mxu0 %v1522
    %v1592 = vpop.f32.mrf.mxu0
    %v1593 = vadd.f32 0.0, %v1592
    %v1594 = vpop.f32.mrf.mxu0
    %v1595 = vadd.f32 0.0, %v1594
    %1596 = vmatmul.bf16.gmra.mxu0 %v1525
    %v1597 = vpop.f32.mrf.mxu0
    %v1598 = vadd.f32 0.0, %v1597
    %v1599 = vpop.f32.mrf.mxu0
    %v1600 = vadd.f32 0.0, %v1599
    %1601 = vmatmul.bf16.gmra.mxu0 %v1528
    %v1602 = vpop.f32.mrf.mxu0
    %v1603 = vadd.f32 0.0, %v1602
    %v1604 = vpop.f32.mrf.mxu0
    %v1605 = vadd.f32 0.0, %v1604
    %1606 = vmatmul.bf16.gmra.mxu0 %v1531
    %v1607 = vpop.f32.mrf.mxu0
    %v1608 = vadd.f32 0.0, %v1607
    %v1609 = vpop.f32.mrf.mxu0
    %v1610 = vadd.f32 0.0, %v1609
    %1611 = vmatmul.bf16.gmra.mxu0 %v1534
    %v1612 = vpop.f32.mrf.mxu0
    %v1613 = vadd.f32 0.0, %v1612
    %v1614 = vpop.f32.mrf.mxu0
    %v1615 = vadd.f32 0.0, %v1614
    %1616 = vmatmul.bf16.gmra.mxu0 %v1537
    %v1617 = vpop.f32.mrf.mxu0
    %v1618 = vadd.f32 0.0, %v1617
    %v1619 = vpop.f32.mrf.mxu0
    %v1620 = vadd.f32 0.0, %v1619
    %1621 = vmatmul.bf16.gmra.mxu0 %v1540
    %v1622 = vpop.f32.mrf.mxu0
    %v1623 = vadd.f32 0.0, %v1622
    %v1624 = vpop.f32.mrf.mxu0
    %v1625 = vadd.f32 0.0, %v1624
    %1626 = vmatmul.bf16.gmra.mxu0 %v1543
    %v1627 = vpop.f32.mrf.mxu0
    %v1628 = vadd.f32 0.0, %v1627
    %v1629 = vpop.f32.mrf.mxu0
    %v1630 = vadd.f32 0.0, %v1629
    %1631 = vmatmul.bf16.gmra.mxu0 %v1546
    %v1632 = vpop.f32.mrf.mxu0
    %v1633 = vadd.f32 0.0, %v1632
    %v1634 = vpop.f32.mrf.mxu0
    %v1635 = vadd.f32 0.0, %v1634
    %1636 = vdwg.mxu0
    %v1637 = vmul.u32 %v1251, 4
    %v1638 = vmul.u32 %v1252, 4
    %v1639 = vmul.u32 %v1253, 4
    %v1640 = vmul.u32 %v1254, 4
    %v1641 = vmul.u32 %v1255, 4
    %v1642 = vmul.u32 %v1256, 4
    %v1643 = vmul.u32 %v1257, 4
    %v1644 = vmul.u32 %v1258, 4
    %v1645 = vmul.u32 %v1259, 4
    %v1646 = vmul.u32 %v1260, 4
    %v1647 = vmul.u32 %v1261, 4
    %v1648 = vmul.u32 %v1262, 4
    %v1649 = vmul.u32 %v1263, 4
    %v1650 = vmul.u32 %v1264, 4
    %v1651 = vmul.u32 %v1265, 4
    %v1652 = vmul.u32 %v1266, 4
    %v1653 = vmul.u32 %v1267, 4
    %v1654 = vmul.u32 %v1268, 4
    %v1655 = vmul.u32 %v1269, 4
    %v1656 = vmul.u32 %v1270, 4
    %v1657 = vmul.u32 %v1271, 4
    %v1658 = vmul.u32 %v1272, 4
    %v1659 = vmul.u32 %v1273, 4
    %v1660 = vmul.u32 %v1274, 4
    %v1661 = vmul.u32 %v1275, 4
    %v1662 = vmul.u32 %v1276, 4
    %v1663 = vmul.u32 %v1277, 4
    %v1664 = vmul.u32 %v1278, 4
    %v1665 = vmul.u32 %v1279, 4
    %v1666 = vmul.u32 %v1280, 4
    %v1667 = vmul.u32 %v1281, 4
    %v1668 = vmul.u32 %v1282, 4
    %v1669 = vsub.s32 %v487, %v1637
    %v1670 = vsub.s32 %v487, %v1638
    %v1671 = vsub.s32 %v487, %v1639
    %v1672 = vsub.s32 %v487, %v1640
    %v1673 = vsub.s32 %v487, %v1641
    %v1674 = vsub.s32 %v487, %v1642
    %v1675 = vsub.s32 %v487, %v1643
    %v1676 = vsub.s32 %v487, %v1644
    %v1677 = vsub.s32 %v487, %v1645
    %v1678 = vsub.s32 %v487, %v1646
    %v1679 = vsub.s32 %v487, %v1647
    %v1680 = vsub.s32 %v487, %v1648
    %v1681 = vsub.s32 %v487, %v1649
    %v1682 = vsub.s32 %v487, %v1650
    %v1683 = vsub.s32 %v487, %v1651
    %v1684 = vsub.s32 %v487, %v1652
    %v1685 = vsub.s32 %v487, %v1653
    %v1686 = vsub.s32 %v487, %v1654
    %v1687 = vsub.s32 %v487, %v1655
    %v1688 = vsub.s32 %v487, %v1656
    %v1689 = vsub.s32 %v487, %v1657
    %v1690 = vsub.s32 %v487, %v1658
    %v1691 = vsub.s32 %v487, %v1659
    %v1692 = vsub.s32 %v487, %v1660
    %v1693 = vsub.s32 %v487, %v1661
    %v1694 = vsub.s32 %v487, %v1662
    %v1695 = vsub.s32 %v487, %v1663
    %v1696 = vsub.s32 %v487, %v1664
    %v1697 = vsub.s32 %v487, %v1665
    %v1698 = vsub.s32 %v487, %v1666
    %v1699 = vsub.s32 %v487, %v1667
    %v1700 = vsub.s32 %v487, %v1668
    %vm1701 = vcmp.ge.s32.totalorder %v1669, 0
    %vm1702 = vcmp.ge.s32.totalorder %v1670, 0
    %vm1703 = vcmp.ge.s32.totalorder %v1671, 0
    %vm1704 = vcmp.ge.s32.totalorder %v1672, 0
    %vm1705 = vcmp.ge.s32.totalorder %v1673, 0
    %vm1706 = vcmp.ge.s32.totalorder %v1674, 0
    %vm1707 = vcmp.ge.s32.totalorder %v1675, 0
    %vm1708 = vcmp.ge.s32.totalorder %v1676, 0
    %vm1709 = vcmp.ge.s32.totalorder %v1677, 0
    %vm1710 = vcmp.ge.s32.totalorder %v1678, 0
    %vm1711 = vcmp.ge.s32.totalorder %v1679, 0
    %vm1712 = vcmp.ge.s32.totalorder %v1680, 0
    %vm1713 = vcmp.ge.s32.totalorder %v1681, 0
    %vm1714 = vcmp.ge.s32.totalorder %v1682, 0
    %vm1715 = vcmp.ge.s32.totalorder %v1683, 0
    %vm1716 = vcmp.ge.s32.totalorder %v1684, 0
    %vm1717 = vcmp.ge.s32.totalorder %v1685, 0
    %vm1718 = vcmp.ge.s32.totalorder %v1686, 0
    %vm1719 = vcmp.ge.s32.totalorder %v1687, 0
    %vm1720 = vcmp.ge.s32.totalorder %v1688, 0
    %vm1721 = vcmp.ge.s32.totalorder %v1689, 0
    %vm1722 = vcmp.ge.s32.totalorder %v1690, 0
    %vm1723 = vcmp.ge.s32.totalorder %v1691, 0
    %vm1724 = vcmp.ge.s32.totalorder %v1692, 0
    %vm1725 = vcmp.ge.s32.totalorder %v1693, 0
    %vm1726 = vcmp.ge.s32.totalorder %v1694, 0
    %vm1727 = vcmp.ge.s32.totalorder %v1695, 0
    %vm1728 = vcmp.ge.s32.totalorder %v1696, 0
    %vm1729 = vcmp.ge.s32.totalorder %v1697, 0
    %vm1730 = vcmp.ge.s32.totalorder %v1698, 0
    %vm1731 = vcmp.ge.s32.totalorder %v1699, 0
    %vm1732 = vcmp.ge.s32.totalorder %v1700, 0
    %vm1733 = vcmp.lt.s32.totalorder %v1669, 4
    %vm1734 = vcmp.lt.s32.totalorder %v1670, 4
    %vm1735 = vcmp.lt.s32.totalorder %v1671, 4
    %vm1736 = vcmp.lt.s32.totalorder %v1672, 4
    %vm1737 = vcmp.lt.s32.totalorder %v1673, 4
    %vm1738 = vcmp.lt.s32.totalorder %v1674, 4
    %vm1739 = vcmp.lt.s32.totalorder %v1675, 4
    %vm1740 = vcmp.lt.s32.totalorder %v1676, 4
    %vm1741 = vcmp.lt.s32.totalorder %v1677, 4
    %vm1742 = vcmp.lt.s32.totalorder %v1678, 4
    %vm1743 = vcmp.lt.s32.totalorder %v1679, 4
    %vm1744 = vcmp.lt.s32.totalorder %v1680, 4
    %vm1745 = vcmp.lt.s32.totalorder %v1681, 4
    %vm1746 = vcmp.lt.s32.totalorder %v1682, 4
    %vm1747 = vcmp.lt.s32.totalorder %v1683, 4
    %vm1748 = vcmp.lt.s32.totalorder %v1684, 4
    %vm1749 = vcmp.lt.s32.totalorder %v1685, 4
    %vm1750 = vcmp.lt.s32.totalorder %v1686, 4
    %vm1751 = vcmp.lt.s32.totalorder %v1687, 4
    %vm1752 = vcmp.lt.s32.totalorder %v1688, 4
    %vm1753 = vcmp.lt.s32.totalorder %v1689, 4
    %vm1754 = vcmp.lt.s32.totalorder %v1690, 4
    %vm1755 = vcmp.lt.s32.totalorder %v1691, 4
    %vm1756 = vcmp.lt.s32.totalorder %v1692, 4
    %vm1757 = vcmp.lt.s32.totalorder %v1693, 4
    %vm1758 = vcmp.lt.s32.totalorder %v1694, 4
    %vm1759 = vcmp.lt.s32.totalorder %v1695, 4
    %vm1760 = vcmp.lt.s32.totalorder %v1696, 4
    %vm1761 = vcmp.lt.s32.totalorder %v1697, 4
    %vm1762 = vcmp.lt.s32.totalorder %v1698, 4
    %vm1763 = vcmp.lt.s32.totalorder %v1699, 4
    %vm1764 = vcmp.lt.s32.totalorder %v1700, 4
    %vm1765 = vmand %vm1701, %vm1733
    %vm1766 = vmand %vm1702, %vm1734
    %vm1767 = vmand %vm1703, %vm1735
    %vm1768 = vmand %vm1704, %vm1736
    %vm1769 = vmand %vm1705, %vm1737
    %vm1770 = vmand %vm1706, %vm1738
    %vm1771 = vmand %vm1707, %vm1739
    %vm1772 = vmand %vm1708, %vm1740
    %vm1773 = vmand %vm1709, %vm1741
    %vm1774 = vmand %vm1710, %vm1742
    %vm1775 = vmand %vm1711, %vm1743
    %vm1776 = vmand %vm1712, %vm1744
    %vm1777 = vmand %vm1713, %vm1745
    %vm1778 = vmand %vm1714, %vm1746
    %vm1779 = vmand %vm1715, %vm1747
    %vm1780 = vmand %vm1716, %vm1748
    %vm1781 = vmand %vm1717, %vm1749
    %vm1782 = vmand %vm1718, %vm1750
    %vm1783 = vmand %vm1719, %vm1751
    %vm1784 = vmand %vm1720, %vm1752
    %vm1785 = vmand %vm1721, %vm1753
    %vm1786 = vmand %vm1722, %vm1754
    %vm1787 = vmand %vm1723, %vm1755
    %vm1788 = vmand %vm1724, %vm1756
    %vm1789 = vmand %vm1725, %vm1757
    %vm1790 = vmand %vm1726, %vm1758
    %vm1791 = vmand %vm1727, %vm1759
    %vm1792 = vmand %vm1728, %vm1760
    %vm1793 = vmand %vm1729, %vm1761
    %vm1794 = vmand %vm1730, %vm1762
    %vm1795 = vmand %vm1731, %vm1763
    %vm1796 = vmand %vm1732, %vm1764
    %v1797 = vsel %vm1765, %v1059, 0.0
    %v1798 = vsel %vm1766, %v1060, 0.0
    %v1799 = vsel %vm1767, %v1061, 0.0
    %v1800 = vsel %vm1768, %v1062, 0.0
    %v1801 = vsel %vm1769, %v1063, 0.0
    %v1802 = vsel %vm1770, %v1064, 0.0
    %v1803 = vsel %vm1771, %v1065, 0.0
    %v1804 = vsel %vm1772, %v1066, 0.0
    %v1805 = vsel %vm1773, %v1067, 0.0
    %v1806 = vsel %vm1774, %v1068, 0.0
    %v1807 = vsel %vm1775, %v1069, 0.0
    %v1808 = vsel %vm1776, %v1070, 0.0
    %v1809 = vsel %vm1777, %v1071, 0.0
    %v1810 = vsel %vm1778, %v1072, 0.0
    %v1811 = vsel %vm1779, %v1073, 0.0
    %v1812 = vsel %vm1780, %v1074, 0.0
    %v1813 = vsel %vm1781, %v1075, 0.0
    %v1814 = vsel %vm1782, %v1076, 0.0
    %v1815 = vsel %vm1783, %v1077, 0.0
    %v1816 = vsel %vm1784, %v1078, 0.0
    %v1817 = vsel %vm1785, %v1079, 0.0
    %v1818 = vsel %vm1786, %v1080, 0.0
    %v1819 = vsel %vm1787, %v1081, 0.0
    %v1820 = vsel %vm1788, %v1082, 0.0
    %v1821 = vsel %vm1789, %v1083, 0.0
    %v1822 = vsel %vm1790, %v1084, 0.0
    %v1823 = vsel %vm1791, %v1085, 0.0
    %v1824 = vsel %vm1792, %v1086, 0.0
    %v1825 = vsel %vm1793, %v1087, 0.0
    %v1826 = vsel %vm1794, %v1088, 0.0
    %v1827 = vsel %vm1795, %v1089, 0.0
    %v1828 = vsel %vm1796, %v1090, 0.0
    %vm1829 = vcmp.ge.s32.totalorder %v1669, 4
    %vm1830 = vcmp.ge.s32.totalorder %v1670, 4
    %vm1831 = vcmp.ge.s32.totalorder %v1671, 4
    %vm1832 = vcmp.ge.s32.totalorder %v1672, 4
    %vm1833 = vcmp.ge.s32.totalorder %v1673, 4
    %vm1834 = vcmp.ge.s32.totalorder %v1674, 4
    %vm1835 = vcmp.ge.s32.totalorder %v1675, 4
    %vm1836 = vcmp.ge.s32.totalorder %v1676, 4
    %vm1837 = vcmp.ge.s32.totalorder %v1677, 4
    %vm1838 = vcmp.ge.s32.totalorder %v1678, 4
    %vm1839 = vcmp.ge.s32.totalorder %v1679, 4
    %vm1840 = vcmp.ge.s32.totalorder %v1680, 4
    %vm1841 = vcmp.ge.s32.totalorder %v1681, 4
    %vm1842 = vcmp.ge.s32.totalorder %v1682, 4
    %vm1843 = vcmp.ge.s32.totalorder %v1683, 4
    %vm1844 = vcmp.ge.s32.totalorder %v1684, 4
    %vm1845 = vcmp.ge.s32.totalorder %v1685, 4
    %vm1846 = vcmp.ge.s32.totalorder %v1686, 4
    %vm1847 = vcmp.ge.s32.totalorder %v1687, 4
    %vm1848 = vcmp.ge.s32.totalorder %v1688, 4
    %vm1849 = vcmp.ge.s32.totalorder %v1689, 4
    %vm1850 = vcmp.ge.s32.totalorder %v1690, 4
    %vm1851 = vcmp.ge.s32.totalorder %v1691, 4
    %vm1852 = vcmp.ge.s32.totalorder %v1692, 4
    %vm1853 = vcmp.ge.s32.totalorder %v1693, 4
    %vm1854 = vcmp.ge.s32.totalorder %v1694, 4
    %vm1855 = vcmp.ge.s32.totalorder %v1695, 4
    %vm1856 = vcmp.ge.s32.totalorder %v1696, 4
    %vm1857 = vcmp.ge.s32.totalorder %v1697, 4
    %vm1858 = vcmp.ge.s32.totalorder %v1698, 4
    %vm1859 = vcmp.ge.s32.totalorder %v1699, 4
    %vm1860 = vcmp.ge.s32.totalorder %v1700, 4
    %vm1861 = vcmp.lt.s32.totalorder %v1669, 8
    %vm1862 = vcmp.lt.s32.totalorder %v1670, 8
    %vm1863 = vcmp.lt.s32.totalorder %v1671, 8
    %vm1864 = vcmp.lt.s32.totalorder %v1672, 8
    %vm1865 = vcmp.lt.s32.totalorder %v1673, 8
    %vm1866 = vcmp.lt.s32.totalorder %v1674, 8
    %vm1867 = vcmp.lt.s32.totalorder %v1675, 8
    %vm1868 = vcmp.lt.s32.totalorder %v1676, 8
    %vm1869 = vcmp.lt.s32.totalorder %v1677, 8
    %vm1870 = vcmp.lt.s32.totalorder %v1678, 8
    %vm1871 = vcmp.lt.s32.totalorder %v1679, 8
    %vm1872 = vcmp.lt.s32.totalorder %v1680, 8
    %vm1873 = vcmp.lt.s32.totalorder %v1681, 8
    %vm1874 = vcmp.lt.s32.totalorder %v1682, 8
    %vm1875 = vcmp.lt.s32.totalorder %v1683, 8
    %vm1876 = vcmp.lt.s32.totalorder %v1684, 8
    %vm1877 = vcmp.lt.s32.totalorder %v1685, 8
    %vm1878 = vcmp.lt.s32.totalorder %v1686, 8
    %vm1879 = vcmp.lt.s32.totalorder %v1687, 8
    %vm1880 = vcmp.lt.s32.totalorder %v1688, 8
    %vm1881 = vcmp.lt.s32.totalorder %v1689, 8
    %vm1882 = vcmp.lt.s32.totalorder %v1690, 8
    %vm1883 = vcmp.lt.s32.totalorder %v1691, 8
    %vm1884 = vcmp.lt.s32.totalorder %v1692, 8
    %vm1885 = vcmp.lt.s32.totalorder %v1693, 8
    %vm1886 = vcmp.lt.s32.totalorder %v1694, 8
    %vm1887 = vcmp.lt.s32.totalorder %v1695, 8
    %vm1888 = vcmp.lt.s32.totalorder %v1696, 8
    %vm1889 = vcmp.lt.s32.totalorder %v1697, 8
    %vm1890 = vcmp.lt.s32.totalorder %v1698, 8
    %vm1891 = vcmp.lt.s32.totalorder %v1699, 8
    %vm1892 = vcmp.lt.s32.totalorder %v1700, 8
    %vm1893 = vmand %vm1829, %vm1861
    %vm1894 = vmand %vm1830, %vm1862
    %vm1895 = vmand %vm1831, %vm1863
    %vm1896 = vmand %vm1832, %vm1864
    %vm1897 = vmand %vm1833, %vm1865
    %vm1898 = vmand %vm1834, %vm1866
    %vm1899 = vmand %vm1835, %vm1867
    %vm1900 = vmand %vm1836, %vm1868
    %vm1901 = vmand %vm1837, %vm1869
    %vm1902 = vmand %vm1838, %vm1870
    %vm1903 = vmand %vm1839, %vm1871
    %vm1904 = vmand %vm1840, %vm1872
    %vm1905 = vmand %vm1841, %vm1873
    %vm1906 = vmand %vm1842, %vm1874
    %vm1907 = vmand %vm1843, %vm1875
    %vm1908 = vmand %vm1844, %vm1876
    %vm1909 = vmand %vm1845, %vm1877
    %vm1910 = vmand %vm1846, %vm1878
    %vm1911 = vmand %vm1847, %vm1879
    %vm1912 = vmand %vm1848, %vm1880
    %vm1913 = vmand %vm1849, %vm1881
    %vm1914 = vmand %vm1850, %vm1882
    %vm1915 = vmand %vm1851, %vm1883
    %vm1916 = vmand %vm1852, %vm1884
    %vm1917 = vmand %vm1853, %vm1885
    %vm1918 = vmand %vm1854, %vm1886
    %vm1919 = vmand %vm1855, %vm1887
    %vm1920 = vmand %vm1856, %vm1888
    %vm1921 = vmand %vm1857, %vm1889
    %vm1922 = vmand %vm1858, %vm1890
    %vm1923 = vmand %vm1859, %vm1891
    %vm1924 = vmand %vm1860, %vm1892
    %v1925 = vsel %vm1893, %v1027, 0.0
    %v1926 = vsel %vm1894, %v1028, 0.0
    %v1927 = vsel %vm1895, %v1029, 0.0
    %v1928 = vsel %vm1896, %v1030, 0.0
    %v1929 = vsel %vm1897, %v1031, 0.0
    %v1930 = vsel %vm1898, %v1032, 0.0
    %v1931 = vsel %vm1899, %v1033, 0.0
    %v1932 = vsel %vm1900, %v1034, 0.0
    %v1933 = vsel %vm1901, %v1035, 0.0
    %v1934 = vsel %vm1902, %v1036, 0.0
    %v1935 = vsel %vm1903, %v1037, 0.0
    %v1936 = vsel %vm1904, %v1038, 0.0
    %v1937 = vsel %vm1905, %v1039, 0.0
    %v1938 = vsel %vm1906, %v1040, 0.0
    %v1939 = vsel %vm1907, %v1041, 0.0
    %v1940 = vsel %vm1908, %v1042, 0.0
    %v1941 = vsel %vm1909, %v1043, 0.0
    %v1942 = vsel %vm1910, %v1044, 0.0
    %v1943 = vsel %vm1911, %v1045, 0.0
    %v1944 = vsel %vm1912, %v1046, 0.0
    %v1945 = vsel %vm1913, %v1047, 0.0
    %v1946 = vsel %vm1914, %v1048, 0.0
    %v1947 = vsel %vm1915, %v1049, 0.0
    %v1948 = vsel %vm1916, %v1050, 0.0
    %v1949 = vsel %vm1917, %v1051, 0.0
    %v1950 = vsel %vm1918, %v1052, 0.0
    %v1951 = vsel %vm1919, %v1053, 0.0
    %v1952 = vsel %vm1920, %v1054, 0.0
    %v1953 = vsel %vm1921, %v1055, 0.0
    %v1954 = vsel %vm1922, %v1056, 0.0
    %v1955 = vsel %vm1923, %v1057, 0.0
    %v1956 = vsel %vm1924, %v1058, 0.0
    %v1957 = vadd.f32 %v1797, %v1925
    %v1958 = vadd.f32 %v1798, %v1926
    %v1959 = vadd.f32 %v1799, %v1927
    %v1960 = vadd.f32 %v1800, %v1928
    %v1961 = vadd.f32 %v1801, %v1929
    %v1962 = vadd.f32 %v1802, %v1930
    %v1963 = vadd.f32 %v1803, %v1931
    %v1964 = vadd.f32 %v1804, %v1932
    %v1965 = vadd.f32 %v1805, %v1933
    %v1966 = vadd.f32 %v1806, %v1934
    %v1967 = vadd.f32 %v1807, %v1935
    %v1968 = vadd.f32 %v1808, %v1936
    %v1969 = vadd.f32 %v1809, %v1937
    %v1970 = vadd.f32 %v1810, %v1938
    %v1971 = vadd.f32 %v1811, %v1939
    %v1972 = vadd.f32 %v1812, %v1940
    %v1973 = vadd.f32 %v1813, %v1941
    %v1974 = vadd.f32 %v1814, %v1942
    %v1975 = vadd.f32 %v1815, %v1943
    %v1976 = vadd.f32 %v1816, %v1944
    %v1977 = vadd.f32 %v1817, %v1945
    %v1978 = vadd.f32 %v1818, %v1946
    %v1979 = vadd.f32 %v1819, %v1947
    %v1980 = vadd.f32 %v1820, %v1948
    %v1981 = vadd.f32 %v1821, %v1949
    %v1982 = vadd.f32 %v1822, %v1950
    %v1983 = vadd.f32 %v1823, %v1951
    %v1984 = vadd.f32 %v1824, %v1952
    %v1985 = vadd.f32 %v1825, %v1953
    %v1986 = vadd.f32 %v1826, %v1954
    %v1987 = vadd.f32 %v1827, %v1955
    %v1988 = vadd.f32 %v1828, %v1956
    %v1989 = vmul.f32 %v1957, %v1558
    %v1990 = vmul.f32 %v1958, %v1560
    %v1991 = vmul.f32 %v1959, %v1563
    %v1992 = vmul.f32 %v1960, %v1565
    %v1993 = vmul.f32 %v1961, %v1568
    %v1994 = vmul.f32 %v1962, %v1570
    %v1995 = vmul.f32 %v1963, %v1573
    %v1996 = vmul.f32 %v1964, %v1575
    %v1997 = vmul.f32 %v1965, %v1578
    %v1998 = vmul.f32 %v1966, %v1580
    %v1999 = vmul.f32 %v1967, %v1583
    %v2000 = vmul.f32 %v1968, %v1585
    %v2001 = vmul.f32 %v1969, %v1588
    %v2002 = vmul.f32 %v1970, %v1590
    %v2003 = vmul.f32 %v1971, %v1593
    %v2004 = vmul.f32 %v1972, %v1595
    %v2005 = vmul.f32 %v1973, %v1598
    %v2006 = vmul.f32 %v1974, %v1600
    %v2007 = vmul.f32 %v1975, %v1603
    %v2008 = vmul.f32 %v1976, %v1605
    %v2009 = vmul.f32 %v1977, %v1608
    %v2010 = vmul.f32 %v1978, %v1610
    %v2011 = vmul.f32 %v1979, %v1613
    %v2012 = vmul.f32 %v1980, %v1615
    %v2013 = vmul.f32 %v1981, %v1618
    %v2014 = vmul.f32 %v1982, %v1620
    %v2015 = vmul.f32 %v1983, %v1623
    %v2016 = vmul.f32 %v1984, %v1625
    %v2017 = vmul.f32 %v1985, %v1628
    %v2018 = vmul.f32 %v1986, %v1630
    %v2019 = vmul.f32 %v1987, %v1633
    %v2020 = vmul.f32 %v1988, %v1635
    %vm2021 = vcmask 523264
    %v2023 = vsel %vm2021, %v1989, 0
    %v2026 = vsel %vm2021, %v1990, 0
    %v2029 = vsel %vm2021, %v1991, 0
    %v2032 = vsel %vm2021, %v1992, 0
    %v2035 = vsel %vm2021, %v1993, 0
    %v2038 = vsel %vm2021, %v1994, 0
    %v2041 = vsel %vm2021, %v1995, 0
    %v2044 = vsel %vm2021, %v1996, 0
    %v2047 = vsel %vm2021, %v1997, 0
    %v2050 = vsel %vm2021, %v1998, 0
    %v2053 = vsel %vm2021, %v1999, 0
    %v2056 = vsel %vm2021, %v2000, 0
    %v2059 = vsel %vm2021, %v2001, 0
    %v2062 = vsel %vm2021, %v2002, 0
    %v2065 = vsel %vm2021, %v2003, 0
    %v2068 = vsel %vm2021, %v2004, 0
    %v2071 = vsel %vm2021, %v2005, 0
    %v2074 = vsel %vm2021, %v2006, 0
    %v2077 = vsel %vm2021, %v2007, 0
    %v2080 = vsel %vm2021, %v2008, 0
    %v2083 = vsel %vm2021, %v2009, 0
    %v2086 = vsel %vm2021, %v2010, 0
    %v2089 = vsel %vm2021, %v2011, 0
    %v2092 = vsel %vm2021, %v2012, 0
    %v2095 = vsel %vm2021, %v2013, 0
    %v2098 = vsel %vm2021, %v2014, 0
    %v2101 = vsel %vm2021, %v2015, 0
    %v2104 = vsel %vm2021, %v2016, 0
    %v2107 = vsel %vm2021, %v2017, 0
    %v2110 = vsel %vm2021, %v2018, 0
    %v2113 = vsel %vm2021, %v2019, 0
    %v2116 = vsel %vm2021, %v2020, 0
    %2118 = vmatpush.msra.mxu0 0.0
    %2119 = vmatpush.msra.mxu0 0.0
    %2120 = vmatpush.msra.mxu0 0.0
    %2121 = vmatpush.msra.mxu0 0.0
    %2122 = vmatpush.msra.mxu0 0.0
    %2123 = vmatpush.msra.mxu0 0.0
    %2124 = vmatpush.msra.mxu0 0.0
    %2125 = vmatpush.msra.mxu0 0.0
    %2126 = vmatpush.msra.mxu0 %v495
    %2127 = vmatpush.msra.mxu0 %v494
    %2128 = vmatpush.msra.mxu0 %v493
    %2129 = vmatpush.msra.mxu0 %v492
    %2130 = vmatpush.msra.mxu0 %v491
    %2131 = vmatpush.msra.mxu0 %v490
    %2132 = vmatpush.msra.mxu0 %v489
    %2133 = vmatpush.msra.mxu0 %v488
    %2134 = vmatmul.f32.gmra.mxu0 %v2023
    %v2135 = vpop.f32.mrf.mxu0
    %v2136 = vadd.f32 0.0, %v2135
    %2137 = vmatmul.f32.gmra.mxu0 %v2026
    %v2138 = vpop.f32.mrf.mxu0
    %v2139 = vadd.f32 0.0, %v2138
    %2140 = vmatmul.f32.gmra.mxu0 %v2029
    %v2141 = vpop.f32.mrf.mxu0
    %v2142 = vadd.f32 0.0, %v2141
    %2143 = vmatmul.f32.gmra.mxu0 %v2032
    %v2144 = vpop.f32.mrf.mxu0
    %v2145 = vadd.f32 0.0, %v2144
    %2146 = vmatmul.f32.gmra.mxu0 %v2035
    %v2147 = vpop.f32.mrf.mxu0
    %v2148 = vadd.f32 0.0, %v2147
    %2149 = vmatmul.f32.gmra.mxu0 %v2038
    %v2150 = vpop.f32.mrf.mxu0
    %v2151 = vadd.f32 0.0, %v2150
    %2152 = vmatmul.f32.gmra.mxu0 %v2041
    %v2153 = vpop.f32.mrf.mxu0
    %v2154 = vadd.f32 0.0, %v2153
    %2155 = vmatmul.f32.gmra.mxu0 %v2044
    %v2156 = vpop.f32.mrf.mxu0
    %v2157 = vadd.f32 0.0, %v2156
    %2158 = vmatmul.f32.gmra.mxu0 %v2047
    %v2159 = vpop.f32.mrf.mxu0
    %v2160 = vadd.f32 0.0, %v2159
    %2161 = vmatmul.f32.gmra.mxu0 %v2050
    %v2162 = vpop.f32.mrf.mxu0
    %v2163 = vadd.f32 0.0, %v2162
    %2164 = vmatmul.f32.gmra.mxu0 %v2053
    %v2165 = vpop.f32.mrf.mxu0
    %v2166 = vadd.f32 0.0, %v2165
    %2167 = vmatmul.f32.gmra.mxu0 %v2056
    %v2168 = vpop.f32.mrf.mxu0
    %v2169 = vadd.f32 0.0, %v2168
    %2170 = vmatmul.f32.gmra.mxu0 %v2059
    %v2171 = vpop.f32.mrf.mxu0
    %v2172 = vadd.f32 0.0, %v2171
    %2173 = vmatmul.f32.gmra.mxu0 %v2062
    %v2174 = vpop.f32.mrf.mxu0
    %v2175 = vadd.f32 0.0, %v2174
    %2176 = vmatmul.f32.gmra.mxu0 %v2065
    %v2177 = vpop.f32.mrf.mxu0
    %v2178 = vadd.f32 0.0, %v2177
    %2179 = vmatmul.f32.gmra.mxu0 %v2068
    %v2180 = vpop.f32.mrf.mxu0
    %v2181 = vadd.f32 0.0, %v2180
    %2182 = vmatmul.f32.gmra.mxu0 %v2071
    %v2183 = vpop.f32.mrf.mxu0
    %v2184 = vadd.f32 0.0, %v2183
    %2185 = vmatmul.f32.gmra.mxu0 %v2074
    %v2186 = vpop.f32.mrf.mxu0
    %v2187 = vadd.f32 0.0, %v2186
    %2188 = vmatmul.f32.gmra.mxu0 %v2077
    %v2189 = vpop.f32.mrf.mxu0
    %v2190 = vadd.f32 0.0, %v2189
    %2191 = vmatmul.f32.gmra.mxu0 %v2080
    %v2192 = vpop.f32.mrf.mxu0
    %v2193 = vadd.f32 0.0, %v2192
    %2194 = vmatmul.f32.gmra.mxu0 %v2083
    %v2195 = vpop.f32.mrf.mxu0
    %v2196 = vadd.f32 0.0, %v2195
    %2197 = vmatmul.f32.gmra.mxu0 %v2086
    %v2198 = vpop.f32.mrf.mxu0
    %v2199 = vadd.f32 0.0, %v2198
    %2200 = vmatmul.f32.gmra.mxu0 %v2089
    %v2201 = vpop.f32.mrf.mxu0
    %v2202 = vadd.f32 0.0, %v2201
    %2203 = vmatmul.f32.gmra.mxu0 %v2092
    %v2204 = vpop.f32.mrf.mxu0
    %v2205 = vadd.f32 0.0, %v2204
    %2206 = vmatmul.f32.gmra.mxu0 %v2095
    %v2207 = vpop.f32.mrf.mxu0
    %v2208 = vadd.f32 0.0, %v2207
    %2209 = vmatmul.f32.gmra.mxu0 %v2098
    %v2210 = vpop.f32.mrf.mxu0
    %v2211 = vadd.f32 0.0, %v2210
    %2212 = vmatmul.f32.gmra.mxu0 %v2101
    %v2213 = vpop.f32.mrf.mxu0
    %v2214 = vadd.f32 0.0, %v2213
    %2215 = vmatmul.f32.gmra.mxu0 %v2104
    %v2216 = vpop.f32.mrf.mxu0
    %v2217 = vadd.f32 0.0, %v2216
    %2218 = vmatmul.f32.gmra.mxu0 %v2107
    %v2219 = vpop.f32.mrf.mxu0
    %v2220 = vadd.f32 0.0, %v2219
    %2221 = vmatmul.f32.gmra.mxu0 %v2110
    %v2222 = vpop.f32.mrf.mxu0
    %v2223 = vadd.f32 0.0, %v2222
    %2224 = vmatmul.f32.gmra.mxu0 %v2113
    %v2225 = vpop.f32.mrf.mxu0
    %v2226 = vadd.f32 0.0, %v2225
    %2227 = vmatmul.f32.gmra.mxu0 %v2116
    %v2228 = vpop.f32.mrf.mxu0
    %v2229 = vadd.f32 0.0, %v2228
    %2230 = vdwg.mxu0
    %vm2231 = vcmask 31744
    %2232 = vst.msk [vmem:[%s3] sm:$0xff] %vm2231, %v2136
    %2233 = vst.msk [vmem:[%s3 + $0x8] sm:$0xff] %vm2231, %v2139
    %2234 = vst.msk [vmem:[%s3 + $0x10] sm:$0xff] %vm2231, %v2142
    %2235 = vst.msk [vmem:[%s3 + $0x18] sm:$0xff] %vm2231, %v2145
    %2236 = vst.msk [vmem:[%s3 + $0x20] sm:$0xff] %vm2231, %v2148
    %2237 = vst.msk [vmem:[%s3 + $0x28] sm:$0xff] %vm2231, %v2151
    %2238 = vst.msk [vmem:[%s3 + $0x30] sm:$0xff] %vm2231, %v2154
    %2239 = vst.msk [vmem:[%s3 + $0x38] sm:$0xff] %vm2231, %v2157
    %2240 = vst.msk [vmem:[%s3 + $0x40] sm:$0xff] %vm2231, %v2160
    %2241 = vst.msk [vmem:[%s3 + $0x48] sm:$0xff] %vm2231, %v2163
    %2242 = vst.msk [vmem:[%s3 + $0x50] sm:$0xff] %vm2231, %v2166
    %2243 = vst.msk [vmem:[%s3 + $0x58] sm:$0xff] %vm2231, %v2169
    %2244 = vst.msk [vmem:[%s3 + $0x60] sm:$0xff] %vm2231, %v2172
    %2245 = vst.msk [vmem:[%s3 + $0x68] sm:$0xff] %vm2231, %v2175
    %2246 = vst.msk [vmem:[%s3 + $0x70] sm:$0xff] %vm2231, %v2178
    %2247 = vst.msk [vmem:[%s3 + $0x78] sm:$0xff] %vm2231, %v2181
    %2248 = vst.msk [vmem:[%s3 + $0x80] sm:$0xff] %vm2231, %v2184
    %2249 = vst.msk [vmem:[%s3 + $0x88] sm:$0xff] %vm2231, %v2187
    %2250 = vst.msk [vmem:[%s3 + $0x90] sm:$0xff] %vm2231, %v2190
    %2251 = vst.msk [vmem:[%s3 + $0x98] sm:$0xff] %vm2231, %v2193
    %2252 = vst.msk [vmem:[%s3 + $0xa0] sm:$0xff] %vm2231, %v2196
    %2253 = vst.msk [vmem:[%s3 + $0xa8] sm:$0xff] %vm2231, %v2199
    %2254 = vst.msk [vmem:[%s3 + $0xb0] sm:$0xff] %vm2231, %v2202
    %2255 = vst.msk [vmem:[%s3 + $0xb8] sm:$0xff] %vm2231, %v2205
    %2256 = vst.msk [vmem:[%s3 + $0xc0] sm:$0xff] %vm2231, %v2208
    %2257 = vst.msk [vmem:[%s3 + $0xc8] sm:$0xff] %vm2231, %v2211
    %2258 = vst.msk [vmem:[%s3 + $0xd0] sm:$0xff] %vm2231, %v2214
    %2259 = vst.msk [vmem:[%s3 + $0xd8] sm:$0xff] %vm2231, %v2217
    %2260 = vst.msk [vmem:[%s3 + $0xe0] sm:$0xff] %vm2231, %v2220
    %2261 = vst.msk [vmem:[%s3 + $0xe8] sm:$0xff] %vm2231, %v2223
    %2262 = vst.msk [vmem:[%s3 + $0xf0] sm:$0xff] %vm2231, %v2226
    %2263 = vst.msk [vmem:[%s3 + $0xf8] sm:$0xff] %vm2231, %v2229
    %s2264 = sadd.s32 %s496, 1
    %s2265 = smul.u32 %s2264, 128
    %s2266 = sld [smem:[#allocation2 + %s2265]]
    %s2267 = sadd.s32 %s2265, 1
    %s2268 = sld [smem:[#allocation2 + %s2267]]
    %s2269 = sadd.s32 %s2265, 2
    %s2270 = sld [smem:[#allocation2 + %s2269]]
    %s2271 = sadd.s32 %s2265, 3
    %s2272 = sld [smem:[#allocation2 + %s2271]]
    %s2273 = sadd.s32 %s2265, 4
    %s2274 = sld [smem:[#allocation2 + %s2273]]
    %s2275 = sadd.s32 %s2265, 5
    %s2276 = sld [smem:[#allocation2 + %s2275]]
    %v2277 = vstv %s2266
    %v2278 = vmul.f32 %v358, %v2277
    %v2279 = vmul.f32 %v359, %v2277
    %v2280 = vmul.f32 %v360, %v2277
    %v2281 = vmul.f32 %v361, %v2277
    %v2282 = vmul.f32 %v362, %v2277
    %v2283 = vmul.f32 %v363, %v2277
    %v2284 = vmul.f32 %v364, %v2277
    %v2285 = vmul.f32 %v365, %v2277
    %v2286 = vmul.f32 %v366, %v2277
    %v2287 = vmul.f32 %v367, %v2277
    %v2288 = vmul.f32 %v368, %v2277
    %v2289 = vmul.f32 %v369, %v2277
    %v2290 = vmul.f32 %v370, %v2277
    %v2291 = vmul.f32 %v371, %v2277
    %v2292 = vmul.f32 %v372, %v2277
    %v2293 = vmul.f32 %v373, %v2277
    %v2294 = vmul.f32 %v374, %v2277
    %v2295 = vmul.f32 %v375, %v2277
    %v2296 = vmul.f32 %v376, %v2277
    %v2297 = vmul.f32 %v377, %v2277
    %v2298 = vmul.f32 %v378, %v2277
    %v2299 = vmul.f32 %v379, %v2277
    %v2300 = vmul.f32 %v380, %v2277
    %v2301 = vmul.f32 %v381, %v2277
    %v2302 = vmul.f32 %v382, %v2277
    %v2303 = vmul.f32 %v383, %v2277
    %v2304 = vmul.f32 %v384, %v2277
    %v2305 = vmul.f32 %v385, %v2277
    %v2306 = vmul.f32 %v386, %v2277
    %v2307 = vmul.f32 %v387, %v2277
    %v2308 = vmul.f32 %v388, %v2277
    %v2309 = vmul.f32 %v389, %v2277
    %v2310 = vstv %s2268
    %v2311 = vmul.f32 %v454, %v2310
    %v2312 = vmul.f32 %v455, %v2310
    %v2313 = vmul.f32 %v456, %v2310
    %v2314 = vmul.f32 %v457, %v2310
    %v2315 = vmul.f32 %v458, %v2310
    %v2316 = vmul.f32 %v459, %v2310
    %v2317 = vmul.f32 %v460, %v2310
    %v2318 = vmul.f32 %v461, %v2310
    %v2319 = vmul.f32 %v462, %v2310
    %v2320 = vmul.f32 %v463, %v2310
    %v2321 = vmul.f32 %v464, %v2310
    %v2322 = vmul.f32 %v465, %v2310
    %v2323 = vmul.f32 %v466, %v2310
    %v2324 = vmul.f32 %v467, %v2310
    %v2325 = vmul.f32 %v468, %v2310
    %v2326 = vmul.f32 %v469, %v2310
    %v2327 = vmul.f32 %v470, %v2310
    %v2328 = vmul.f32 %v471, %v2310
    %v2329 = vmul.f32 %v472, %v2310
    %v2330 = vmul.f32 %v473, %v2310
    %v2331 = vmul.f32 %v474, %v2310
    %v2332 = vmul.f32 %v475, %v2310
    %v2333 = vmul.f32 %v476, %v2310
    %v2334 = vmul.f32 %v477, %v2310
    %v2335 = vmul.f32 %v478, %v2310
    %v2336 = vmul.f32 %v479, %v2310
    %v2337 = vmul.f32 %v480, %v2310
    %v2338 = vmul.f32 %v481, %v2310
    %v2339 = vmul.f32 %v482, %v2310
    %v2340 = vmul.f32 %v483, %v2310
    %v2341 = vmul.f32 %v484, %v2310
    %v2342 = vmul.f32 %v485, %v2310
    %v2343 = vadd.f32 %v2278, %v2311
    %v2344 = vadd.f32 %v2279, %v2312
    %v2345 = vadd.f32 %v2280, %v2313
    %v2346 = vadd.f32 %v2281, %v2314
    %v2347 = vadd.f32 %v2282, %v2315
    %v2348 = vadd.f32 %v2283, %v2316
    %v2349 = vadd.f32 %v2284, %v2317
    %v2350 = vadd.f32 %v2285, %v2318
    %v2351 = vadd.f32 %v2286, %v2319
    %v2352 = vadd.f32 %v2287, %v2320
    %v2353 = vadd.f32 %v2288, %v2321
    %v2354 = vadd.f32 %v2289, %v2322
    %v2355 = vadd.f32 %v2290, %v2323
    %v2356 = vadd.f32 %v2291, %v2324
    %v2357 = vadd.f32 %v2292, %v2325
    %v2358 = vadd.f32 %v2293, %v2326
    %v2359 = vadd.f32 %v2294, %v2327
    %v2360 = vadd.f32 %v2295, %v2328
    %v2361 = vadd.f32 %v2296, %v2329
    %v2362 = vadd.f32 %v2297, %v2330
    %v2363 = vadd.f32 %v2298, %v2331
    %v2364 = vadd.f32 %v2299, %v2332
    %v2365 = vadd.f32 %v2300, %v2333
    %v2366 = vadd.f32 %v2301, %v2334
    %v2367 = vadd.f32 %v2302, %v2335
    %v2368 = vadd.f32 %v2303, %v2336
    %v2369 = vadd.f32 %v2304, %v2337
    %v2370 = vadd.f32 %v2305, %v2338
    %v2371 = vadd.f32 %v2306, %v2339
    %v2372 = vadd.f32 %v2307, %v2340
    %v2373 = vadd.f32 %v2308, %v2341
    %v2374 = vadd.f32 %v2309, %v2342
    %v2375 = vstv %s2270
    %v2376 = vadd.f32 %v2343, %v2375
    %v2377 = vadd.f32 %v2344, %v2375
    %v2378 = vadd.f32 %v2345, %v2375
    %v2379 = vadd.f32 %v2346, %v2375
    %v2380 = vadd.f32 %v2347, %v2375
    %v2381 = vadd.f32 %v2348, %v2375
    %v2382 = vadd.f32 %v2349, %v2375
    %v2383 = vadd.f32 %v2350, %v2375
    %v2384 = vadd.f32 %v2351, %v2375
    %v2385 = vadd.f32 %v2352, %v2375
    %v2386 = vadd.f32 %v2353, %v2375
    %v2387 = vadd.f32 %v2354, %v2375
    %v2388 = vadd.f32 %v2355, %v2375
    %v2389 = vadd.f32 %v2356, %v2375
    %v2390 = vadd.f32 %v2357, %v2375
    %v2391 = vadd.f32 %v2358, %v2375
    %v2392 = vadd.f32 %v2359, %v2375
    %v2393 = vadd.f32 %v2360, %v2375
    %v2394 = vadd.f32 %v2361, %v2375
    %v2395 = vadd.f32 %v2362, %v2375
    %v2396 = vadd.f32 %v2363, %v2375
    %v2397 = vadd.f32 %v2364, %v2375
    %v2398 = vadd.f32 %v2365, %v2375
    %v2399 = vadd.f32 %v2366, %v2375
    %v2400 = vadd.f32 %v2367, %v2375
    %v2401 = vadd.f32 %v2368, %v2375
    %v2402 = vadd.f32 %v2369, %v2375
    %v2403 = vadd.f32 %v2370, %v2375
    %v2404 = vadd.f32 %v2371, %v2375
    %v2405 = vadd.f32 %v2372, %v2375
    %v2406 = vadd.f32 %v2373, %v2375
    %v2407 = vadd.f32 %v2374, %v2375
    %v2408 = vstv %s2272
    %v2409 = vmul.f32 %v358, %v2408
    %v2410 = vmul.f32 %v359, %v2408
    %v2411 = vmul.f32 %v360, %v2408
    %v2412 = vmul.f32 %v361, %v2408
    %v2413 = vmul.f32 %v362, %v2408
    %v2414 = vmul.f32 %v363, %v2408
    %v2415 = vmul.f32 %v364, %v2408
    %v2416 = vmul.f32 %v365, %v2408
    %v2417 = vmul.f32 %v366, %v2408
    %v2418 = vmul.f32 %v367, %v2408
    %v2419 = vmul.f32 %v368, %v2408
    %v2420 = vmul.f32 %v369, %v2408
    %v2421 = vmul.f32 %v370, %v2408
    %v2422 = vmul.f32 %v371, %v2408
    %v2423 = vmul.f32 %v372, %v2408
    %v2424 = vmul.f32 %v373, %v2408
    %v2425 = vmul.f32 %v374, %v2408
    %v2426 = vmul.f32 %v375, %v2408
    %v2427 = vmul.f32 %v376, %v2408
    %v2428 = vmul.f32 %v377, %v2408
    %v2429 = vmul.f32 %v378, %v2408
    %v2430 = vmul.f32 %v379, %v2408
    %v2431 = vmul.f32 %v380, %v2408
    %v2432 = vmul.f32 %v381, %v2408
    %v2433 = vmul.f32 %v382, %v2408
    %v2434 = vmul.f32 %v383, %v2408
    %v2435 = vmul.f32 %v384, %v2408
    %v2436 = vmul.f32 %v385, %v2408
    %v2437 = vmul.f32 %v386, %v2408
    %v2438 = vmul.f32 %v387, %v2408
    %v2439 = vmul.f32 %v388, %v2408
    %v2440 = vmul.f32 %v389, %v2408
    %v2441 = vstv %s2274
    %v2442 = vmul.f32 %v454, %v2441
    %v2443 = vmul.f32 %v455, %v2441
    %v2444 = vmul.f32 %v456, %v2441
    %v2445 = vmul.f32 %v457, %v2441
    %v2446 = vmul.f32 %v458, %v2441
    %v2447 = vmul.f32 %v459, %v2441
    %v2448 = vmul.f32 %v460, %v2441
    %v2449 = vmul.f32 %v461, %v2441
    %v2450 = vmul.f32 %v462, %v2441
    %v2451 = vmul.f32 %v463, %v2441
    %v2452 = vmul.f32 %v464, %v2441
    %v2453 = vmul.f32 %v465, %v2441
    %v2454 = vmul.f32 %v466, %v2441
    %v2455 = vmul.f32 %v467, %v2441
    %v2456 = vmul.f32 %v468, %v2441
    %v2457 = vmul.f32 %v469, %v2441
    %v2458 = vmul.f32 %v470, %v2441
    %v2459 = vmul.f32 %v471, %v2441
    %v2460 = vmul.f32 %v472, %v2441
    %v2461 = vmul.f32 %v473, %v2441
    %v2462 = vmul.f32 %v474, %v2441
    %v2463 = vmul.f32 %v475, %v2441
    %v2464 = vmul.f32 %v476, %v2441
    %v2465 = vmul.f32 %v477, %v2441
    %v2466 = vmul.f32 %v478, %v2441
    %v2467 = vmul.f32 %v479, %v2441
    %v2468 = vmul.f32 %v480, %v2441
    %v2469 = vmul.f32 %v481, %v2441
    %v2470 = vmul.f32 %v482, %v2441
    %v2471 = vmul.f32 %v483, %v2441
    %v2472 = vmul.f32 %v484, %v2441
    %v2473 = vmul.f32 %v485, %v2441
    %v2474 = vadd.f32 %v2409, %v2442
    %v2475 = vadd.f32 %v2410, %v2443
    %v2476 = vadd.f32 %v2411, %v2444
    %v2477 = vadd.f32 %v2412, %v2445
    %v2478 = vadd.f32 %v2413, %v2446
    %v2479 = vadd.f32 %v2414, %v2447
    %v2480 = vadd.f32 %v2415, %v2448
    %v2481 = vadd.f32 %v2416, %v2449
    %v2482 = vadd.f32 %v2417, %v2450
    %v2483 = vadd.f32 %v2418, %v2451
    %v2484 = vadd.f32 %v2419, %v2452
    %v2485 = vadd.f32 %v2420, %v2453
    %v2486 = vadd.f32 %v2421, %v2454
    %v2487 = vadd.f32 %v2422, %v2455
    %v2488 = vadd.f32 %v2423, %v2456
    %v2489 = vadd.f32 %v2424, %v2457
    %v2490 = vadd.f32 %v2425, %v2458
    %v2491 = vadd.f32 %v2426, %v2459
    %v2492 = vadd.f32 %v2427, %v2460
    %v2493 = vadd.f32 %v2428, %v2461
    %v2494 = vadd.f32 %v2429, %v2462
    %v2495 = vadd.f32 %v2430, %v2463
    %v2496 = vadd.f32 %v2431, %v2464
    %v2497 = vadd.f32 %v2432, %v2465
    %v2498 = vadd.f32 %v2433, %v2466
    %v2499 = vadd.f32 %v2434, %v2467
    %v2500 = vadd.f32 %v2435, %v2468
    %v2501 = vadd.f32 %v2436, %v2469
    %v2502 = vadd.f32 %v2437, %v2470
    %v2503 = vadd.f32 %v2438, %v2471
    %v2504 = vadd.f32 %v2439, %v2472
    %v2505 = vadd.f32 %v2440, %v2473
    %v2506 = vstv %s2276
    %v2507 = vadd.f32 %v2474, %v2506
    %v2508 = vadd.f32 %v2475, %v2506
    %v2509 = vadd.f32 %v2476, %v2506
    %v2510 = vadd.f32 %v2477, %v2506
    %v2511 = vadd.f32 %v2478, %v2506
    %v2512 = vadd.f32 %v2479, %v2506
    %v2513 = vadd.f32 %v2480, %v2506
    %v2514 = vadd.f32 %v2481, %v2506
    %v2515 = vadd.f32 %v2482, %v2506
    %v2516 = vadd.f32 %v2483, %v2506
    %v2517 = vadd.f32 %v2484, %v2506
    %v2518 = vadd.f32 %v2485, %v2506
    %v2519 = vadd.f32 %v2486, %v2506
    %v2520 = vadd.f32 %v2487, %v2506
    %v2521 = vadd.f32 %v2488, %v2506
    %v2522 = vadd.f32 %v2489, %v2506
    %v2523 = vadd.f32 %v2490, %v2506
    %v2524 = vadd.f32 %v2491, %v2506
    %v2525 = vadd.f32 %v2492, %v2506
    %v2526 = vadd.f32 %v2493, %v2506
    %v2527 = vadd.f32 %v2494, %v2506
    %v2528 = vadd.f32 %v2495, %v2506
    %v2529 = vadd.f32 %v2496, %v2506
    %v2530 = vadd.f32 %v2497, %v2506
    %v2531 = vadd.f32 %v2498, %v2506
    %v2532 = vadd.f32 %v2499, %v2506
    %v2533 = vadd.f32 %v2500, %v2506
    %v2534 = vadd.f32 %v2501, %v2506
    %v2535 = vadd.f32 %v2502, %v2506
    %v2536 = vadd.f32 %v2503, %v2506
    %v2537 = vadd.f32 %v2504, %v2506
    %v2538 = vadd.f32 %v2505, %v2506
    %v2539 = vadd.f32 %v2376, 1.0
    %v2540 = vadd.f32 %v2377, 1.0
    %v2541 = vadd.f32 %v2378, 1.0
    %v2542 = vadd.f32 %v2379, 1.0
    %v2543 = vadd.f32 %v2380, 1.0
    %v2544 = vadd.f32 %v2381, 1.0
    %v2545 = vadd.f32 %v2382, 1.0
    %v2546 = vadd.f32 %v2383, 1.0
    %v2547 = vadd.f32 %v2384, 1.0
    %v2548 = vadd.f32 %v2385, 1.0
    %v2549 = vadd.f32 %v2386, 1.0
    %v2550 = vadd.f32 %v2387, 1.0
    %v2551 = vadd.f32 %v2388, 1.0
    %v2552 = vadd.f32 %v2389, 1.0
    %v2553 = vadd.f32 %v2390, 1.0
    %v2554 = vadd.f32 %v2391, 1.0
    %v2555 = vadd.f32 %v2392, 1.0
    %v2556 = vadd.f32 %v2393, 1.0
    %v2557 = vadd.f32 %v2394, 1.0
    %v2558 = vadd.f32 %v2395, 1.0
    %v2559 = vadd.f32 %v2396, 1.0
    %v2560 = vadd.f32 %v2397, 1.0
    %v2561 = vadd.f32 %v2398, 1.0
    %v2562 = vadd.f32 %v2399, 1.0
    %v2563 = vadd.f32 %v2400, 1.0
    %v2564 = vadd.f32 %v2401, 1.0
    %v2565 = vadd.f32 %v2402, 1.0
    %v2566 = vadd.f32 %v2403, 1.0
    %v2567 = vadd.f32 %v2404, 1.0
    %v2568 = vadd.f32 %v2405, 1.0
    %v2569 = vadd.f32 %v2406, 1.0
    %v2570 = vadd.f32 %v2407, 1.0
    %v2571 = vmul.f32 %v2539, 7.5
    %v2572 = vmul.f32 %v2540, 7.5
    %v2573 = vmul.f32 %v2541, 7.5
    %v2574 = vmul.f32 %v2542, 7.5
    %v2575 = vmul.f32 %v2543, 7.5
    %v2576 = vmul.f32 %v2544, 7.5
    %v2577 = vmul.f32 %v2545, 7.5
    %v2578 = vmul.f32 %v2546, 7.5
    %v2579 = vmul.f32 %v2547, 7.5
    %v2580 = vmul.f32 %v2548, 7.5
    %v2581 = vmul.f32 %v2549, 7.5
    %v2582 = vmul.f32 %v2550, 7.5
    %v2583 = vmul.f32 %v2551, 7.5
    %v2584 = vmul.f32 %v2552, 7.5
    %v2585 = vmul.f32 %v2553, 7.5
    %v2586 = vmul.f32 %v2554, 7.5
    %v2587 = vmul.f32 %v2555, 7.5
    %v2588 = vmul.f32 %v2556, 7.5
    %v2589 = vmul.f32 %v2557, 7.5
    %v2590 = vmul.f32 %v2558, 7.5
    %v2591 = vmul.f32 %v2559, 7.5
    %v2592 = vmul.f32 %v2560, 7.5
    %v2593 = vmul.f32 %v2561, 7.5
    %v2594 = vmul.f32 %v2562, 7.5
    %v2595 = vmul.f32 %v2563, 7.5
    %v2596 = vmul.f32 %v2564, 7.5
    %v2597 = vmul.f32 %v2565, 7.5
    %v2598 = vmul.f32 %v2566, 7.5
    %v2599 = vmul.f32 %v2567, 7.5
    %v2600 = vmul.f32 %v2568, 7.5
    %v2601 = vmul.f32 %v2569, 7.5
    %v2602 = vmul.f32 %v2570, 7.5
    %v2603 = vadd.f32 %v2507, 1.0
    %v2604 = vadd.f32 %v2508, 1.0
    %v2605 = vadd.f32 %v2509, 1.0
    %v2606 = vadd.f32 %v2510, 1.0
    %v2607 = vadd.f32 %v2511, 1.0
    %v2608 = vadd.f32 %v2512, 1.0
    %v2609 = vadd.f32 %v2513, 1.0
    %v2610 = vadd.f32 %v2514, 1.0
    %v2611 = vadd.f32 %v2515, 1.0
    %v2612 = vadd.f32 %v2516, 1.0
    %v2613 = vadd.f32 %v2517, 1.0
    %v2614 = vadd.f32 %v2518, 1.0
    %v2615 = vadd.f32 %v2519, 1.0
    %v2616 = vadd.f32 %v2520, 1.0
    %v2617 = vadd.f32 %v2521, 1.0
    %v2618 = vadd.f32 %v2522, 1.0
    %v2619 = vadd.f32 %v2523, 1.0
    %v2620 = vadd.f32 %v2524, 1.0
    %v2621 = vadd.f32 %v2525, 1.0
    %v2622 = vadd.f32 %v2526, 1.0
    %v2623 = vadd.f32 %v2527, 1.0
    %v2624 = vadd.f32 %v2528, 1.0
    %v2625 = vadd.f32 %v2529, 1.0
    %v2626 = vadd.f32 %v2530, 1.0
    %v2627 = vadd.f32 %v2531, 1.0
    %v2628 = vadd.f32 %v2532, 1.0
    %v2629 = vadd.f32 %v2533, 1.0
    %v2630 = vadd.f32 %v2534, 1.0
    %v2631 = vadd.f32 %v2535, 1.0
    %v2632 = vadd.f32 %v2536, 1.0
    %v2633 = vadd.f32 %v2537, 1.0
    %v2634 = vadd.f32 %v2538, 1.0
    %v2635 = vmul.f32 %v2603, 7.5
    %v2636 = vmul.f32 %v2604, 7.5
    %v2637 = vmul.f32 %v2605, 7.5
    %v2638 = vmul.f32 %v2606, 7.5
    %v2639 = vmul.f32 %v2607, 7.5
    %v2640 = vmul.f32 %v2608, 7.5
    %v2641 = vmul.f32 %v2609, 7.5
    %v2642 = vmul.f32 %v2610, 7.5
    %v2643 = vmul.f32 %v2611, 7.5
    %v2644 = vmul.f32 %v2612, 7.5
    %v2645 = vmul.f32 %v2613, 7.5
    %v2646 = vmul.f32 %v2614, 7.5
    %v2647 = vmul.f32 %v2615, 7.5
    %v2648 = vmul.f32 %v2616, 7.5
    %v2649 = vmul.f32 %v2617, 7.5
    %v2650 = vmul.f32 %v2618, 7.5
    %v2651 = vmul.f32 %v2619, 7.5
    %v2652 = vmul.f32 %v2620, 7.5
    %v2653 = vmul.f32 %v2621, 7.5
    %v2654 = vmul.f32 %v2622, 7.5
    %v2655 = vmul.f32 %v2623, 7.5
    %v2656 = vmul.f32 %v2624, 7.5
    %v2657 = vmul.f32 %v2625, 7.5
    %v2658 = vmul.f32 %v2626, 7.5
    %v2659 = vmul.f32 %v2627, 7.5
    %v2660 = vmul.f32 %v2628, 7.5
    %v2661 = vmul.f32 %v2629, 7.5
    %v2662 = vmul.f32 %v2630, 7.5
    %v2663 = vmul.f32 %v2631, 7.5
    %v2664 = vmul.f32 %v2632, 7.5
    %v2665 = vmul.f32 %v2633, 7.5
    %v2666 = vmul.f32 %v2634, 7.5
    %v2667 = vfloor.f32 %v2571
    %v2668 = vfloor.f32 %v2572
    %v2669 = vfloor.f32 %v2573
    %v2670 = vfloor.f32 %v2574
    %v2671 = vfloor.f32 %v2575
    %v2672 = vfloor.f32 %v2576
    %v2673 = vfloor.f32 %v2577
    %v2674 = vfloor.f32 %v2578
    %v2675 = vfloor.f32 %v2579
    %v2676 = vfloor.f32 %v2580
    %v2677 = vfloor.f32 %v2581
    %v2678 = vfloor.f32 %v2582
    %v2679 = vfloor.f32 %v2583
    %v2680 = vfloor.f32 %v2584
    %v2681 = vfloor.f32 %v2585
    %v2682 = vfloor.f32 %v2586
    %v2683 = vfloor.f32 %v2587
    %v2684 = vfloor.f32 %v2588
    %v2685 = vfloor.f32 %v2589
    %v2686 = vfloor.f32 %v2590
    %v2687 = vfloor.f32 %v2591
    %v2688 = vfloor.f32 %v2592
    %v2689 = vfloor.f32 %v2593
    %v2690 = vfloor.f32 %v2594
    %v2691 = vfloor.f32 %v2595
    %v2692 = vfloor.f32 %v2596
    %v2693 = vfloor.f32 %v2597
    %v2694 = vfloor.f32 %v2598
    %v2695 = vfloor.f32 %v2599
    %v2696 = vfloor.f32 %v2600
    %v2697 = vfloor.f32 %v2601
    %v2698 = vfloor.f32 %v2602
    %v2699 = vfloor.f32 %v2635
    %v2700 = vfloor.f32 %v2636
    %v2701 = vfloor.f32 %v2637
    %v2702 = vfloor.f32 %v2638
    %v2703 = vfloor.f32 %v2639
    %v2704 = vfloor.f32 %v2640
    %v2705 = vfloor.f32 %v2641
    %v2706 = vfloor.f32 %v2642
    %v2707 = vfloor.f32 %v2643
    %v2708 = vfloor.f32 %v2644
    %v2709 = vfloor.f32 %v2645
    %v2710 = vfloor.f32 %v2646
    %v2711 = vfloor.f32 %v2647
    %v2712 = vfloor.f32 %v2648
    %v2713 = vfloor.f32 %v2649
    %v2714 = vfloor.f32 %v2650
    %v2715 = vfloor.f32 %v2651
    %v2716 = vfloor.f32 %v2652
    %v2717 = vfloor.f32 %v2653
    %v2718 = vfloor.f32 %v2654
    %v2719 = vfloor.f32 %v2655
    %v2720 = vfloor.f32 %v2656
    %v2721 = vfloor.f32 %v2657
    %v2722 = vfloor.f32 %v2658
    %v2723 = vfloor.f32 %v2659
    %v2724 = vfloor.f32 %v2660
    %v2725 = vfloor.f32 %v2661
    %v2726 = vfloor.f32 %v2662
    %v2727 = vfloor.f32 %v2663
    %v2728 = vfloor.f32 %v2664
    %v2729 = vfloor.f32 %v2665
    %v2730 = vfloor.f32 %v2666
    %v2731 = vsub.f32 %v2571, %v2667
    %v2732 = vsub.f32 %v2572, %v2668
    %v2733 = vsub.f32 %v2573, %v2669
    %v2734 = vsub.f32 %v2574, %v2670
    %v2735 = vsub.f32 %v2575, %v2671
    %v2736 = vsub.f32 %v2576, %v2672
    %v2737 = vsub.f32 %v2577, %v2673
    %v2738 = vsub.f32 %v2578, %v2674
    %v2739 = vsub.f32 %v2579, %v2675
    %v2740 = vsub.f32 %v2580, %v2676
    %v2741 = vsub.f32 %v2581, %v2677
    %v2742 = vsub.f32 %v2582, %v2678
    %v2743 = vsub.f32 %v2583, %v2679
    %v2744 = vsub.f32 %v2584, %v2680
    %v2745 = vsub.f32 %v2585, %v2681
    %v2746 = vsub.f32 %v2586, %v2682
    %v2747 = vsub.f32 %v2587, %v2683
    %v2748 = vsub.f32 %v2588, %v2684
    %v2749 = vsub.f32 %v2589, %v2685
    %v2750 = vsub.f32 %v2590, %v2686
    %v2751 = vsub.f32 %v2591, %v2687
    %v2752 = vsub.f32 %v2592, %v2688
    %v2753 = vsub.f32 %v2593, %v2689
    %v2754 = vsub.f32 %v2594, %v2690
    %v2755 = vsub.f32 %v2595, %v2691
    %v2756 = vsub.f32 %v2596, %v2692
    %v2757 = vsub.f32 %v2597, %v2693
    %v2758 = vsub.f32 %v2598, %v2694
    %v2759 = vsub.f32 %v2599, %v2695
    %v2760 = vsub.f32 %v2600, %v2696
    %v2761 = vsub.f32 %v2601, %v2697
    %v2762 = vsub.f32 %v2602, %v2698
    %v2763 = vsub.f32 1.0, %v2731
    %v2764 = vsub.f32 1.0, %v2732
    %v2765 = vsub.f32 1.0, %v2733
    %v2766 = vsub.f32 1.0, %v2734
    %v2767 = vsub.f32 1.0, %v2735
    %v2768 = vsub.f32 1.0, %v2736
    %v2769 = vsub.f32 1.0, %v2737
    %v2770 = vsub.f32 1.0, %v2738
    %v2771 = vsub.f32 1.0, %v2739
    %v2772 = vsub.f32 1.0, %v2740
    %v2773 = vsub.f32 1.0, %v2741
    %v2774 = vsub.f32 1.0, %v2742
    %v2775 = vsub.f32 1.0, %v2743
    %v2776 = vsub.f32 1.0, %v2744
    %v2777 = vsub.f32 1.0, %v2745
    %v2778 = vsub.f32 1.0, %v2746
    %v2779 = vsub.f32 1.0, %v2747
    %v2780 = vsub.f32 1.0, %v2748
    %v2781 = vsub.f32 1.0, %v2749
    %v2782 = vsub.f32 1.0, %v2750
    %v2783 = vsub.f32 1.0, %v2751
    %v2784 = vsub.f32 1.0, %v2752
    %v2785 = vsub.f32 1.0, %v2753
    %v2786 = vsub.f32 1.0, %v2754
    %v2787 = vsub.f32 1.0, %v2755
    %v2788 = vsub.f32 1.0, %v2756
    %v2789 = vsub.f32 1.0, %v2757
    %v2790 = vsub.f32 1.0, %v2758
    %v2791 = vsub.f32 1.0, %v2759
    %v2792 = vsub.f32 1.0, %v2760
    %v2793 = vsub.f32 1.0, %v2761
    %v2794 = vsub.f32 1.0, %v2762
    %v2795 = vsub.f32 %v2635, %v2699
    %v2796 = vsub.f32 %v2636, %v2700
    %v2797 = vsub.f32 %v2637, %v2701
    %v2798 = vsub.f32 %v2638, %v2702
    %v2799 = vsub.f32 %v2639, %v2703
    %v2800 = vsub.f32 %v2640, %v2704
    %v2801 = vsub.f32 %v2641, %v2705
    %v2802 = vsub.f32 %v2642, %v2706
    %v2803 = vsub.f32 %v2643, %v2707
    %v2804 = vsub.f32 %v2644, %v2708
    %v2805 = vsub.f32 %v2645, %v2709
    %v2806 = vsub.f32 %v2646, %v2710
    %v2807 = vsub.f32 %v2647, %v2711
    %v2808 = vsub.f32 %v2648, %v2712
    %v2809 = vsub.f32 %v2649, %v2713
    %v2810 = vsub.f32 %v2650, %v2714
    %v2811 = vsub.f32 %v2651, %v2715
    %v2812 = vsub.f32 %v2652, %v2716
    %v2813 = vsub.f32 %v2653, %v2717
    %v2814 = vsub.f32 %v2654, %v2718
    %v2815 = vsub.f32 %v2655, %v2719
    %v2816 = vsub.f32 %v2656, %v2720
    %v2817 = vsub.f32 %v2657, %v2721
    %v2818 = vsub.f32 %v2658, %v2722
    %v2819 = vsub.f32 %v2659, %v2723
    %v2820 = vsub.f32 %v2660, %v2724
    %v2821 = vsub.f32 %v2661, %v2725
    %v2822 = vsub.f32 %v2662, %v2726
    %v2823 = vsub.f32 %v2663, %v2727
    %v2824 = vsub.f32 %v2664, %v2728
    %v2825 = vsub.f32 %v2665, %v2729
    %v2826 = vsub.f32 %v2666, %v2730
    %v2827 = vsub.f32 1.0, %v2795
    %v2828 = vsub.f32 1.0, %v2796
    %v2829 = vsub.f32 1.0, %v2797
    %v2830 = vsub.f32 1.0, %v2798
    %v2831 = vsub.f32 1.0, %v2799
    %v2832 = vsub.f32 1.0, %v2800
    %v2833 = vsub.f32 1.0, %v2801
    %v2834 = vsub.f32 1.0, %v2802
    %v2835 = vsub.f32 1.0, %v2803
    %v2836 = vsub.f32 1.0, %v2804
    %v2837 = vsub.f32 1.0, %v2805
    %v2838 = vsub.f32 1.0, %v2806
    %v2839 = vsub.f32 1.0, %v2807
    %v2840 = vsub.f32 1.0, %v2808
    %v2841 = vsub.f32 1.0, %v2809
    %v2842 = vsub.f32 1.0, %v2810
    %v2843 = vsub.f32 1.0, %v2811
    %v2844 = vsub.f32 1.0, %v2812
    %v2845 = vsub.f32 1.0, %v2813
    %v2846 = vsub.f32 1.0, %v2814
    %v2847 = vsub.f32 1.0, %v2815
    %v2848 = vsub.f32 1.0, %v2816
    %v2849 = vsub.f32 1.0, %v2817
    %v2850 = vsub.f32 1.0, %v2818
    %v2851 = vsub.f32 1.0, %v2819
    %v2852 = vsub.f32 1.0, %v2820
    %v2853 = vsub.f32 1.0, %v2821
    %v2854 = vsub.f32 1.0, %v2822
    %v2855 = vsub.f32 1.0, %v2823
    %v2856 = vsub.f32 1.0, %v2824
    %v2857 = vsub.f32 1.0, %v2825
    %v2858 = vsub.f32 1.0, %v2826
    %v2859 = vmax.f32 %v2667, -2.0
    %v2860 = vmax.f32 %v2668, -2.0
    %v2861 = vmax.f32 %v2669, -2.0
    %v2862 = vmax.f32 %v2670, -2.0
    %v2863 = vmax.f32 %v2671, -2.0
    %v2864 = vmax.f32 %v2672, -2.0
    %v2865 = vmax.f32 %v2673, -2.0
    %v2866 = vmax.f32 %v2674, -2.0
    %v2867 = vmax.f32 %v2675, -2.0
    %v2868 = vmax.f32 %v2676, -2.0
    %v2869 = vmax.f32 %v2677, -2.0
    %v2870 = vmax.f32 %v2678, -2.0
    %v2871 = vmax.f32 %v2679, -2.0
    %v2872 = vmax.f32 %v2680, -2.0
    %v2873 = vmax.f32 %v2681, -2.0
    %v2874 = vmax.f32 %v2682, -2.0
    %v2875 = vmax.f32 %v2683, -2.0
    %v2876 = vmax.f32 %v2684, -2.0
    %v2877 = vmax.f32 %v2685, -2.0
    %v2878 = vmax.f32 %v2686, -2.0
    %v2879 = vmax.f32 %v2687, -2.0
    %v2880 = vmax.f32 %v2688, -2.0
    %v2881 = vmax.f32 %v2689, -2.0
    %v2882 = vmax.f32 %v2690, -2.0
    %v2883 = vmax.f32 %v2691, -2.0
    %v2884 = vmax.f32 %v2692, -2.0
    %v2885 = vmax.f32 %v2693, -2.0
    %v2886 = vmax.f32 %v2694, -2.0
    %v2887 = vmax.f32 %v2695, -2.0
    %v2888 = vmax.f32 %v2696, -2.0
    %v2889 = vmax.f32 %v2697, -2.0
    %v2890 = vmax.f32 %v2698, -2.0
    %v2891 = vmin.f32 %v2859, 17.0
    %v2892 = vmin.f32 %v2860, 17.0
    %v2893 = vmin.f32 %v2861, 17.0
    %v2894 = vmin.f32 %v2862, 17.0
    %v2895 = vmin.f32 %v2863, 17.0
    %v2896 = vmin.f32 %v2864, 17.0
    %v2897 = vmin.f32 %v2865, 17.0
    %v2898 = vmin.f32 %v2866, 17.0
    %v2899 = vmin.f32 %v2867, 17.0
    %v2900 = vmin.f32 %v2868, 17.0
    %v2901 = vmin.f32 %v2869, 17.0
    %v2902 = vmin.f32 %v2870, 17.0
    %v2903 = vmin.f32 %v2871, 17.0
    %v2904 = vmin.f32 %v2872, 17.0
    %v2905 = vmin.f32 %v2873, 17.0
    %v2906 = vmin.f32 %v2874, 17.0
    %v2907 = vmin.f32 %v2875, 17.0
    %v2908 = vmin.f32 %v2876, 17.0
    %v2909 = vmin.f32 %v2877, 17.0
    %v2910 = vmin.f32 %v2878, 17.0
    %v2911 = vmin.f32 %v2879, 17.0
    %v2912 = vmin.f32 %v2880, 17.0
    %v2913 = vmin.f32 %v2881, 17.0
    %v2914 = vmin.f32 %v2882, 17.0
    %v2915 = vmin.f32 %v2883, 17.0
    %v2916 = vmin.f32 %v2884, 17.0
    %v2917 = vmin.f32 %v2885, 17.0
    %v2918 = vmin.f32 %v2886, 17.0
    %v2919 = vmin.f32 %v2887, 17.0
    %v2920 = vmin.f32 %v2888, 17.0
    %v2921 = vmin.f32 %v2889, 17.0
    %v2922 = vmin.f32 %v2890, 17.0
    %v2923 = vcvt.f32.s32.to.zero.pseudo %v2891
    %v2924 = vcvt.f32.s32.to.zero.pseudo %v2892
    %v2925 = vcvt.f32.s32.to.zero.pseudo %v2893
    %v2926 = vcvt.f32.s32.to.zero.pseudo %v2894
    %v2927 = vcvt.f32.s32.to.zero.pseudo %v2895
    %v2928 = vcvt.f32.s32.to.zero.pseudo %v2896
    %v2929 = vcvt.f32.s32.to.zero.pseudo %v2897
    %v2930 = vcvt.f32.s32.to.zero.pseudo %v2898
    %v2931 = vcvt.f32.s32.to.zero.pseudo %v2899
    %v2932 = vcvt.f32.s32.to.zero.pseudo %v2900
    %v2933 = vcvt.f32.s32.to.zero.pseudo %v2901
    %v2934 = vcvt.f32.s32.to.zero.pseudo %v2902
    %v2935 = vcvt.f32.s32.to.zero.pseudo %v2903
    %v2936 = vcvt.f32.s32.to.zero.pseudo %v2904
    %v2937 = vcvt.f32.s32.to.zero.pseudo %v2905
    %v2938 = vcvt.f32.s32.to.zero.pseudo %v2906
    %v2939 = vcvt.f32.s32.to.zero.pseudo %v2907
    %v2940 = vcvt.f32.s32.to.zero.pseudo %v2908
    %v2941 = vcvt.f32.s32.to.zero.pseudo %v2909
    %v2942 = vcvt.f32.s32.to.zero.pseudo %v2910
    %v2943 = vcvt.f32.s32.to.zero.pseudo %v2911
    %v2944 = vcvt.f32.s32.to.zero.pseudo %v2912
    %v2945 = vcvt.f32.s32.to.zero.pseudo %v2913
    %v2946 = vcvt.f32.s32.to.zero.pseudo %v2914
    %v2947 = vcvt.f32.s32.to.zero.pseudo %v2915
    %v2948 = vcvt.f32.s32.to.zero.pseudo %v2916
    %v2949 = vcvt.f32.s32.to.zero.pseudo %v2917
    %v2950 = vcvt.f32.s32.to.zero.pseudo %v2918
    %v2951 = vcvt.f32.s32.to.zero.pseudo %v2919
    %v2952 = vcvt.f32.s32.to.zero.pseudo %v2920
    %v2953 = vcvt.f32.s32.to.zero.pseudo %v2921
    %v2954 = vcvt.f32.s32.to.zero.pseudo %v2922
    %v2955 = vmax.f32 %v2699, -2.0
    %v2956 = vmax.f32 %v2700, -2.0
    %v2957 = vmax.f32 %v2701, -2.0
    %v2958 = vmax.f32 %v2702, -2.0
    %v2959 = vmax.f32 %v2703, -2.0
    %v2960 = vmax.f32 %v2704, -2.0
    %v2961 = vmax.f32 %v2705, -2.0
    %v2962 = vmax.f32 %v2706, -2.0
    %v2963 = vmax.f32 %v2707, -2.0
    %v2964 = vmax.f32 %v2708, -2.0
    %v2965 = vmax.f32 %v2709, -2.0
    %v2966 = vmax.f32 %v2710, -2.0
    %v2967 = vmax.f32 %v2711, -2.0
    %v2968 = vmax.f32 %v2712, -2.0
    %v2969 = vmax.f32 %v2713, -2.0
    %v2970 = vmax.f32 %v2714, -2.0
    %v2971 = vmax.f32 %v2715, -2.0
    %v2972 = vmax.f32 %v2716, -2.0
    %v2973 = vmax.f32 %v2717, -2.0
    %v2974 = vmax.f32 %v2718, -2.0
    %v2975 = vmax.f32 %v2719, -2.0
    %v2976 = vmax.f32 %v2720, -2.0
    %v2977 = vmax.f32 %v2721, -2.0
    %v2978 = vmax.f32 %v2722, -2.0
    %v2979 = vmax.f32 %v2723, -2.0
    %v2980 = vmax.f32 %v2724, -2.0
    %v2981 = vmax.f32 %v2725, -2.0
    %v2982 = vmax.f32 %v2726, -2.0
    %v2983 = vmax.f32 %v2727, -2.0
    %v2984 = vmax.f32 %v2728, -2.0
    %v2985 = vmax.f32 %v2729, -2.0
    %v2986 = vmax.f32 %v2730, -2.0
    %v2987 = vmin.f32 %v2955, 17.0
    %v2988 = vmin.f32 %v2956, 17.0
    %v2989 = vmin.f32 %v2957, 17.0
    %v2990 = vmin.f32 %v2958, 17.0
    %v2991 = vmin.f32 %v2959, 17.0
    %v2992 = vmin.f32 %v2960, 17.0
    %v2993 = vmin.f32 %v2961, 17.0
    %v2994 = vmin.f32 %v2962, 17.0
    %v2995 = vmin.f32 %v2963, 17.0
    %v2996 = vmin.f32 %v2964, 17.0
    %v2997 = vmin.f32 %v2965, 17.0
    %v2998 = vmin.f32 %v2966, 17.0
    %v2999 = vmin.f32 %v2967, 17.0
    %v3000 = vmin.f32 %v2968, 17.0
    %v3001 = vmin.f32 %v2969, 17.0
    %v3002 = vmin.f32 %v2970, 17.0
    %v3003 = vmin.f32 %v2971, 17.0
    %v3004 = vmin.f32 %v2972, 17.0
    %v3005 = vmin.f32 %v2973, 17.0
    %v3006 = vmin.f32 %v2974, 17.0
    %v3007 = vmin.f32 %v2975, 17.0
    %v3008 = vmin.f32 %v2976, 17.0
    %v3009 = vmin.f32 %v2977, 17.0
    %v3010 = vmin.f32 %v2978, 17.0
    %v3011 = vmin.f32 %v2979, 17.0
    %v3012 = vmin.f32 %v2980, 17.0
    %v3013 = vmin.f32 %v2981, 17.0
    %v3014 = vmin.f32 %v2982, 17.0
    %v3015 = vmin.f32 %v2983, 17.0
    %v3016 = vmin.f32 %v2984, 17.0
    %v3017 = vmin.f32 %v2985, 17.0
    %v3018 = vmin.f32 %v2986, 17.0
    %v3019 = vcvt.f32.s32.to.zero.pseudo %v2987
    %v3020 = vcvt.f32.s32.to.zero.pseudo %v2988
    %v3021 = vcvt.f32.s32.to.zero.pseudo %v2989
    %v3022 = vcvt.f32.s32.to.zero.pseudo %v2990
    %v3023 = vcvt.f32.s32.to.zero.pseudo %v2991
    %v3024 = vcvt.f32.s32.to.zero.pseudo %v2992
    %v3025 = vcvt.f32.s32.to.zero.pseudo %v2993
    %v3026 = vcvt.f32.s32.to.zero.pseudo %v2994
    %v3027 = vcvt.f32.s32.to.zero.pseudo %v2995
    %v3028 = vcvt.f32.s32.to.zero.pseudo %v2996
    %v3029 = vcvt.f32.s32.to.zero.pseudo %v2997
    %v3030 = vcvt.f32.s32.to.zero.pseudo %v2998
    %v3031 = vcvt.f32.s32.to.zero.pseudo %v2999
    %v3032 = vcvt.f32.s32.to.zero.pseudo %v3000
    %v3033 = vcvt.f32.s32.to.zero.pseudo %v3001
    %v3034 = vcvt.f32.s32.to.zero.pseudo %v3002
    %v3035 = vcvt.f32.s32.to.zero.pseudo %v3003
    %v3036 = vcvt.f32.s32.to.zero.pseudo %v3004
    %v3037 = vcvt.f32.s32.to.zero.pseudo %v3005
    %v3038 = vcvt.f32.s32.to.zero.pseudo %v3006
    %v3039 = vcvt.f32.s32.to.zero.pseudo %v3007
    %v3040 = vcvt.f32.s32.to.zero.pseudo %v3008
    %v3041 = vcvt.f32.s32.to.zero.pseudo %v3009
    %v3042 = vcvt.f32.s32.to.zero.pseudo %v3010
    %v3043 = vcvt.f32.s32.to.zero.pseudo %v3011
    %v3044 = vcvt.f32.s32.to.zero.pseudo %v3012
    %v3045 = vcvt.f32.s32.to.zero.pseudo %v3013
    %v3046 = vcvt.f32.s32.to.zero.pseudo %v3014
    %v3047 = vcvt.f32.s32.to.zero.pseudo %v3015
    %v3048 = vcvt.f32.s32.to.zero.pseudo %v3016
    %v3049 = vcvt.f32.s32.to.zero.pseudo %v3017
    %v3050 = vcvt.f32.s32.to.zero.pseudo %v3018
    %vm3051 = vcmp.eq.s32.totalorder %v487, %v2923
    %vm3052 = vcmp.eq.s32.totalorder %v487, %v2924
    %vm3053 = vcmp.eq.s32.totalorder %v487, %v2925
    %vm3054 = vcmp.eq.s32.totalorder %v487, %v2926
    %vm3055 = vcmp.eq.s32.totalorder %v487, %v2927
    %vm3056 = vcmp.eq.s32.totalorder %v487, %v2928
    %vm3057 = vcmp.eq.s32.totalorder %v487, %v2929
    %vm3058 = vcmp.eq.s32.totalorder %v487, %v2930
    %vm3059 = vcmp.eq.s32.totalorder %v487, %v2931
    %vm3060 = vcmp.eq.s32.totalorder %v487, %v2932
    %vm3061 = vcmp.eq.s32.totalorder %v487, %v2933
    %vm3062 = vcmp.eq.s32.totalorder %v487, %v2934
    %vm3063 = vcmp.eq.s32.totalorder %v487, %v2935
    %vm3064 = vcmp.eq.s32.totalorder %v487, %v2936
    %vm3065 = vcmp.eq.s32.totalorder %v487, %v2937
    %vm3066 = vcmp.eq.s32.totalorder %v487, %v2938
    %vm3067 = vcmp.eq.s32.totalorder %v487, %v2939
    %vm3068 = vcmp.eq.s32.totalorder %v487, %v2940
    %vm3069 = vcmp.eq.s32.totalorder %v487, %v2941
    %vm3070 = vcmp.eq.s32.totalorder %v487, %v2942
    %vm3071 = vcmp.eq.s32.totalorder %v487, %v2943
    %vm3072 = vcmp.eq.s32.totalorder %v487, %v2944
    %vm3073 = vcmp.eq.s32.totalorder %v487, %v2945
    %vm3074 = vcmp.eq.s32.totalorder %v487, %v2946
    %vm3075 = vcmp.eq.s32.totalorder %v487, %v2947
    %vm3076 = vcmp.eq.s32.totalorder %v487, %v2948
    %vm3077 = vcmp.eq.s32.totalorder %v487, %v2949
    %vm3078 = vcmp.eq.s32.totalorder %v487, %v2950
    %vm3079 = vcmp.eq.s32.totalorder %v487, %v2951
    %vm3080 = vcmp.eq.s32.totalorder %v487, %v2952
    %vm3081 = vcmp.eq.s32.totalorder %v487, %v2953
    %vm3082 = vcmp.eq.s32.totalorder %v487, %v2954
    %v3083 = vsel %vm3051, %v2763, 0.0
    %v3084 = vsel %vm3052, %v2764, 0.0
    %v3085 = vsel %vm3053, %v2765, 0.0
    %v3086 = vsel %vm3054, %v2766, 0.0
    %v3087 = vsel %vm3055, %v2767, 0.0
    %v3088 = vsel %vm3056, %v2768, 0.0
    %v3089 = vsel %vm3057, %v2769, 0.0
    %v3090 = vsel %vm3058, %v2770, 0.0
    %v3091 = vsel %vm3059, %v2771, 0.0
    %v3092 = vsel %vm3060, %v2772, 0.0
    %v3093 = vsel %vm3061, %v2773, 0.0
    %v3094 = vsel %vm3062, %v2774, 0.0
    %v3095 = vsel %vm3063, %v2775, 0.0
    %v3096 = vsel %vm3064, %v2776, 0.0
    %v3097 = vsel %vm3065, %v2777, 0.0
    %v3098 = vsel %vm3066, %v2778, 0.0
    %v3099 = vsel %vm3067, %v2779, 0.0
    %v3100 = vsel %vm3068, %v2780, 0.0
    %v3101 = vsel %vm3069, %v2781, 0.0
    %v3102 = vsel %vm3070, %v2782, 0.0
    %v3103 = vsel %vm3071, %v2783, 0.0
    %v3104 = vsel %vm3072, %v2784, 0.0
    %v3105 = vsel %vm3073, %v2785, 0.0
    %v3106 = vsel %vm3074, %v2786, 0.0
    %v3107 = vsel %vm3075, %v2787, 0.0
    %v3108 = vsel %vm3076, %v2788, 0.0
    %v3109 = vsel %vm3077, %v2789, 0.0
    %v3110 = vsel %vm3078, %v2790, 0.0
    %v3111 = vsel %vm3079, %v2791, 0.0
    %v3112 = vsel %vm3080, %v2792, 0.0
    %v3113 = vsel %vm3081, %v2793, 0.0
    %v3114 = vsel %vm3082, %v2794, 0.0
    %v3115 = vadd.s32 %v2923, 1
    %v3116 = vadd.s32 %v2924, 1
    %v3117 = vadd.s32 %v2925, 1
    %v3118 = vadd.s32 %v2926, 1
    %v3119 = vadd.s32 %v2927, 1
    %v3120 = vadd.s32 %v2928, 1
    %v3121 = vadd.s32 %v2929, 1
    %v3122 = vadd.s32 %v2930, 1
    %v3123 = vadd.s32 %v2931, 1
    %v3124 = vadd.s32 %v2932, 1
    %v3125 = vadd.s32 %v2933, 1
    %v3126 = vadd.s32 %v2934, 1
    %v3127 = vadd.s32 %v2935, 1
    %v3128 = vadd.s32 %v2936, 1
    %v3129 = vadd.s32 %v2937, 1
    %v3130 = vadd.s32 %v2938, 1
    %v3131 = vadd.s32 %v2939, 1
    %v3132 = vadd.s32 %v2940, 1
    %v3133 = vadd.s32 %v2941, 1
    %v3134 = vadd.s32 %v2942, 1
    %v3135 = vadd.s32 %v2943, 1
    %v3136 = vadd.s32 %v2944, 1
    %v3137 = vadd.s32 %v2945, 1
    %v3138 = vadd.s32 %v2946, 1
    %v3139 = vadd.s32 %v2947, 1
    %v3140 = vadd.s32 %v2948, 1
    %v3141 = vadd.s32 %v2949, 1
    %v3142 = vadd.s32 %v2950, 1
    %v3143 = vadd.s32 %v2951, 1
    %v3144 = vadd.s32 %v2952, 1
    %v3145 = vadd.s32 %v2953, 1
    %v3146 = vadd.s32 %v2954, 1
    %vm3147 = vcmp.eq.s32.totalorder %v487, %v3115
    %vm3148 = vcmp.eq.s32.totalorder %v487, %v3116
    %vm3149 = vcmp.eq.s32.totalorder %v487, %v3117
    %vm3150 = vcmp.eq.s32.totalorder %v487, %v3118
    %vm3151 = vcmp.eq.s32.totalorder %v487, %v3119
    %vm3152 = vcmp.eq.s32.totalorder %v487, %v3120
    %vm3153 = vcmp.eq.s32.totalorder %v487, %v3121
    %vm3154 = vcmp.eq.s32.totalorder %v487, %v3122
    %vm3155 = vcmp.eq.s32.totalorder %v487, %v3123
    %vm3156 = vcmp.eq.s32.totalorder %v487, %v3124
    %vm3157 = vcmp.eq.s32.totalorder %v487, %v3125
    %vm3158 = vcmp.eq.s32.totalorder %v487, %v3126
    %vm3159 = vcmp.eq.s32.totalorder %v487, %v3127
    %vm3160 = vcmp.eq.s32.totalorder %v487, %v3128
    %vm3161 = vcmp.eq.s32.totalorder %v487, %v3129
    %vm3162 = vcmp.eq.s32.totalorder %v487, %v3130
    %vm3163 = vcmp.eq.s32.totalorder %v487, %v3131
    %vm3164 = vcmp.eq.s32.totalorder %v487, %v3132
    %vm3165 = vcmp.eq.s32.totalorder %v487, %v3133
    %vm3166 = vcmp.eq.s32.totalorder %v487, %v3134
    %vm3167 = vcmp.eq.s32.totalorder %v487, %v3135
    %vm3168 = vcmp.eq.s32.totalorder %v487, %v3136
    %vm3169 = vcmp.eq.s32.totalorder %v487, %v3137
    %vm3170 = vcmp.eq.s32.totalorder %v487, %v3138
    %vm3171 = vcmp.eq.s32.totalorder %v487, %v3139
    %vm3172 = vcmp.eq.s32.totalorder %v487, %v3140
    %vm3173 = vcmp.eq.s32.totalorder %v487, %v3141
    %vm3174 = vcmp.eq.s32.totalorder %v487, %v3142
    %vm3175 = vcmp.eq.s32.totalorder %v487, %v3143
    %vm3176 = vcmp.eq.s32.totalorder %v487, %v3144
    %vm3177 = vcmp.eq.s32.totalorder %v487, %v3145
    %vm3178 = vcmp.eq.s32.totalorder %v487, %v3146
    %v3179 = vsel %vm3147, %v2731, 0.0
    %v3180 = vsel %vm3148, %v2732, 0.0
    %v3181 = vsel %vm3149, %v2733, 0.0
    %v3182 = vsel %vm3150, %v2734, 0.0
    %v3183 = vsel %vm3151, %v2735, 0.0
    %v3184 = vsel %vm3152, %v2736, 0.0
    %v3185 = vsel %vm3153, %v2737, 0.0
    %v3186 = vsel %vm3154, %v2738, 0.0
    %v3187 = vsel %vm3155, %v2739, 0.0
    %v3188 = vsel %vm3156, %v2740, 0.0
    %v3189 = vsel %vm3157, %v2741, 0.0
    %v3190 = vsel %vm3158, %v2742, 0.0
    %v3191 = vsel %vm3159, %v2743, 0.0
    %v3192 = vsel %vm3160, %v2744, 0.0
    %v3193 = vsel %vm3161, %v2745, 0.0
    %v3194 = vsel %vm3162, %v2746, 0.0
    %v3195 = vsel %vm3163, %v2747, 0.0
    %v3196 = vsel %vm3164, %v2748, 0.0
    %v3197 = vsel %vm3165, %v2749, 0.0
    %v3198 = vsel %vm3166, %v2750, 0.0
    %v3199 = vsel %vm3167, %v2751, 0.0
    %v3200 = vsel %vm3168, %v2752, 0.0
    %v3201 = vsel %vm3169, %v2753, 0.0
    %v3202 = vsel %vm3170, %v2754, 0.0
    %v3203 = vsel %vm3171, %v2755, 0.0
    %v3204 = vsel %vm3172, %v2756, 0.0
    %v3205 = vsel %vm3173, %v2757, 0.0
    %v3206 = vsel %vm3174, %v2758, 0.0
    %v3207 = vsel %vm3175, %v2759, 0.0
    %v3208 = vsel %vm3176, %v2760, 0.0
    %v3209 = vsel %vm3177, %v2761, 0.0
    %v3210 = vsel %vm3178, %v2762, 0.0
    %v3211 = vadd.f32 %v3083, %v3179
    %v3212 = vadd.f32 %v3084, %v3180
    %v3213 = vadd.f32 %v3085, %v3181
    %v3214 = vadd.f32 %v3086, %v3182
    %v3215 = vadd.f32 %v3087, %v3183
    %v3216 = vadd.f32 %v3088, %v3184
    %v3217 = vadd.f32 %v3089, %v3185
    %v3218 = vadd.f32 %v3090, %v3186
    %v3219 = vadd.f32 %v3091, %v3187
    %v3220 = vadd.f32 %v3092, %v3188
    %v3221 = vadd.f32 %v3093, %v3189
    %v3222 = vadd.f32 %v3094, %v3190
    %v3223 = vadd.f32 %v3095, %v3191
    %v3224 = vadd.f32 %v3096, %v3192
    %v3225 = vadd.f32 %v3097, %v3193
    %v3226 = vadd.f32 %v3098, %v3194
    %v3227 = vadd.f32 %v3099, %v3195
    %v3228 = vadd.f32 %v3100, %v3196
    %v3229 = vadd.f32 %v3101, %v3197
    %v3230 = vadd.f32 %v3102, %v3198
    %v3231 = vadd.f32 %v3103, %v3199
    %v3232 = vadd.f32 %v3104, %v3200
    %v3233 = vadd.f32 %v3105, %v3201
    %v3234 = vadd.f32 %v3106, %v3202
    %v3235 = vadd.f32 %v3107, %v3203
    %v3236 = vadd.f32 %v3108, %v3204
    %v3237 = vadd.f32 %v3109, %v3205
    %v3238 = vadd.f32 %v3110, %v3206
    %v3239 = vadd.f32 %v3111, %v3207
    %v3240 = vadd.f32 %v3112, %v3208
    %v3241 = vadd.f32 %v3113, %v3209
    %v3242 = vadd.f32 %v3114, %v3210
    %v3243 = vpack.c.bf16 %v3212, %v3211
    %v3244 = vpack.c.bf16 %v3214, %v3213
    %v3245 = vpack.c.bf16 %v3216, %v3215
    %v3246 = vpack.c.bf16 %v3218, %v3217
    %v3247 = vpack.c.bf16 %v3220, %v3219
    %v3248 = vpack.c.bf16 %v3222, %v3221
    %v3249 = vpack.c.bf16 %v3224, %v3223
    %v3250 = vpack.c.bf16 %v3226, %v3225
    %v3251 = vpack.c.bf16 %v3228, %v3227
    %v3252 = vpack.c.bf16 %v3230, %v3229
    %v3253 = vpack.c.bf16 %v3232, %v3231
    %v3254 = vpack.c.bf16 %v3234, %v3233
    %v3255 = vpack.c.bf16 %v3236, %v3235
    %v3256 = vpack.c.bf16 %v3238, %v3237
    %v3257 = vpack.c.bf16 %v3240, %v3239
    %v3258 = vpack.c.bf16 %v3242, %v3241
    %s3259 = scalar_lea.vmem %s1, 8
    %v3260 = vld [vmem:[%s3259] sm:$0xf]
    %v3261 = vld [vmem:[%s3259 + $0x4] sm:$0xf]
    %v3264 = vunpack.c.l.b16 %v3260
    %v3265 = vunpack.c.l.b16 %v3261
    %v3266 = vpack.c.b16 %v3265, %v3264
    %v3269 = vsel %vm1499, %v3243, 0
    %v3272 = vsel %vm1499, %v3244, 0
    %v3275 = vsel %vm1499, %v3245, 0
    %v3278 = vsel %vm1499, %v3246, 0
    %v3281 = vsel %vm1499, %v3247, 0
    %v3284 = vsel %vm1499, %v3248, 0
    %v3287 = vsel %vm1499, %v3249, 0
    %v3290 = vsel %vm1499, %v3250, 0
    %v3293 = vsel %vm1499, %v3251, 0
    %v3296 = vsel %vm1499, %v3252, 0
    %v3299 = vsel %vm1499, %v3253, 0
    %v3302 = vsel %vm1499, %v3254, 0
    %v3305 = vsel %vm1499, %v3255, 0
    %v3308 = vsel %vm1499, %v3256, 0
    %v3311 = vsel %vm1499, %v3257, 0
    %v3314 = vsel %vm1499, %v3258, 0
    %3316 = vmatpush.bf16.msra.mxu0 0
    %3317 = vmatpush.bf16.msra.mxu0 0
    %3318 = vmatpush.bf16.msra.mxu0 0
    %3319 = vmatpush.bf16.msra.mxu0 0
    %3320 = vmatpush.bf16.msra.mxu0 0
    %3321 = vmatpush.bf16.msra.mxu0 0
    %3322 = vmatpush.bf16.msra.mxu0 0
    %3323 = vmatpush.bf16.msra.mxu0 %v3266
    %3324 = vmatmul.bf16.gmra.mxu0 %v3269
    %v3325 = vpop.f32.mrf.mxu0
    %v3326 = vadd.f32 0.0, %v3325
    %v3327 = vpop.f32.mrf.mxu0
    %v3328 = vadd.f32 0.0, %v3327
    %3329 = vmatmul.bf16.gmra.mxu0 %v3272
    %v3330 = vpop.f32.mrf.mxu0
    %v3331 = vadd.f32 0.0, %v3330
    %v3332 = vpop.f32.mrf.mxu0
    %v3333 = vadd.f32 0.0, %v3332
    %3334 = vmatmul.bf16.gmra.mxu0 %v3275
    %v3335 = vpop.f32.mrf.mxu0
    %v3336 = vadd.f32 0.0, %v3335
    %v3337 = vpop.f32.mrf.mxu0
    %v3338 = vadd.f32 0.0, %v3337
    %3339 = vmatmul.bf16.gmra.mxu0 %v3278
    %v3340 = vpop.f32.mrf.mxu0
    %v3341 = vadd.f32 0.0, %v3340
    %v3342 = vpop.f32.mrf.mxu0
    %v3343 = vadd.f32 0.0, %v3342
    %3344 = vmatmul.bf16.gmra.mxu0 %v3281
    %v3345 = vpop.f32.mrf.mxu0
    %v3346 = vadd.f32 0.0, %v3345
    %v3347 = vpop.f32.mrf.mxu0
    %v3348 = vadd.f32 0.0, %v3347
    %3349 = vmatmul.bf16.gmra.mxu0 %v3284
    %v3350 = vpop.f32.mrf.mxu0
    %v3351 = vadd.f32 0.0, %v3350
    %v3352 = vpop.f32.mrf.mxu0
    %v3353 = vadd.f32 0.0, %v3352
    %3354 = vmatmul.bf16.gmra.mxu0 %v3287
    %v3355 = vpop.f32.mrf.mxu0
    %v3356 = vadd.f32 0.0, %v3355
    %v3357 = vpop.f32.mrf.mxu0
    %v3358 = vadd.f32 0.0, %v3357
    %3359 = vmatmul.bf16.gmra.mxu0 %v3290
    %v3360 = vpop.f32.mrf.mxu0
    %v3361 = vadd.f32 0.0, %v3360
    %v3362 = vpop.f32.mrf.mxu0
    %v3363 = vadd.f32 0.0, %v3362
    %3364 = vmatmul.bf16.gmra.mxu0 %v3293
    %v3365 = vpop.f32.mrf.mxu0
    %v3366 = vadd.f32 0.0, %v3365
    %v3367 = vpop.f32.mrf.mxu0
    %v3368 = vadd.f32 0.0, %v3367
    %3369 = vmatmul.bf16.gmra.mxu0 %v3296
    %v3370 = vpop.f32.mrf.mxu0
    %v3371 = vadd.f32 0.0, %v3370
    %v3372 = vpop.f32.mrf.mxu0
    %v3373 = vadd.f32 0.0, %v3372
    %3374 = vmatmul.bf16.gmra.mxu0 %v3299
    %v3375 = vpop.f32.mrf.mxu0
    %v3376 = vadd.f32 0.0, %v3375
    %v3377 = vpop.f32.mrf.mxu0
    %v3378 = vadd.f32 0.0, %v3377
    %3379 = vmatmul.bf16.gmra.mxu0 %v3302
    %v3380 = vpop.f32.mrf.mxu0
    %v3381 = vadd.f32 0.0, %v3380
    %v3382 = vpop.f32.mrf.mxu0
    %v3383 = vadd.f32 0.0, %v3382
    %3384 = vmatmul.bf16.gmra.mxu0 %v3305
    %v3385 = vpop.f32.mrf.mxu0
    %v3386 = vadd.f32 0.0, %v3385
    %v3387 = vpop.f32.mrf.mxu0
    %v3388 = vadd.f32 0.0, %v3387
    %3389 = vmatmul.bf16.gmra.mxu0 %v3308
    %v3390 = vpop.f32.mrf.mxu0
    %v3391 = vadd.f32 0.0, %v3390
    %v3392 = vpop.f32.mrf.mxu0
    %v3393 = vadd.f32 0.0, %v3392
    %3394 = vmatmul.bf16.gmra.mxu0 %v3311
    %v3395 = vpop.f32.mrf.mxu0
    %v3396 = vadd.f32 0.0, %v3395
    %v3397 = vpop.f32.mrf.mxu0
    %v3398 = vadd.f32 0.0, %v3397
    %3399 = vmatmul.bf16.gmra.mxu0 %v3314
    %v3400 = vpop.f32.mrf.mxu0
    %v3401 = vadd.f32 0.0, %v3400
    %v3402 = vpop.f32.mrf.mxu0
    %v3403 = vadd.f32 0.0, %v3402
    %3404 = vdwg.mxu0
    %v3405 = vmul.u32 %v3019, 4
    %v3406 = vmul.u32 %v3020, 4
    %v3407 = vmul.u32 %v3021, 4
    %v3408 = vmul.u32 %v3022, 4
    %v3409 = vmul.u32 %v3023, 4
    %v3410 = vmul.u32 %v3024, 4
    %v3411 = vmul.u32 %v3025, 4
    %v3412 = vmul.u32 %v3026, 4
    %v3413 = vmul.u32 %v3027, 4
    %v3414 = vmul.u32 %v3028, 4
    %v3415 = vmul.u32 %v3029, 4
    %v3416 = vmul.u32 %v3030, 4
    %v3417 = vmul.u32 %v3031, 4
    %v3418 = vmul.u32 %v3032, 4
    %v3419 = vmul.u32 %v3033, 4
    %v3420 = vmul.u32 %v3034, 4
    %v3421 = vmul.u32 %v3035, 4
    %v3422 = vmul.u32 %v3036, 4
    %v3423 = vmul.u32 %v3037, 4
    %v3424 = vmul.u32 %v3038, 4
    %v3425 = vmul.u32 %v3039, 4
    %v3426 = vmul.u32 %v3040, 4
    %v3427 = vmul.u32 %v3041, 4
    %v3428 = vmul.u32 %v3042, 4
    %v3429 = vmul.u32 %v3043, 4
    %v3430 = vmul.u32 %v3044, 4
    %v3431 = vmul.u32 %v3045, 4
    %v3432 = vmul.u32 %v3046, 4
    %v3433 = vmul.u32 %v3047, 4
    %v3434 = vmul.u32 %v3048, 4
    %v3435 = vmul.u32 %v3049, 4
    %v3436 = vmul.u32 %v3050, 4
    %v3437 = vsub.s32 %v487, %v3405
    %v3438 = vsub.s32 %v487, %v3406
    %v3439 = vsub.s32 %v487, %v3407
    %v3440 = vsub.s32 %v487, %v3408
    %v3441 = vsub.s32 %v487, %v3409
    %v3442 = vsub.s32 %v487, %v3410
    %v3443 = vsub.s32 %v487, %v3411
    %v3444 = vsub.s32 %v487, %v3412
    %v3445 = vsub.s32 %v487, %v3413
    %v3446 = vsub.s32 %v487, %v3414
    %v3447 = vsub.s32 %v487, %v3415
    %v3448 = vsub.s32 %v487, %v3416
    %v3449 = vsub.s32 %v487, %v3417
    %v3450 = vsub.s32 %v487, %v3418
    %v3451 = vsub.s32 %v487, %v3419
    %v3452 = vsub.s32 %v487, %v3420
    %v3453 = vsub.s32 %v487, %v3421
    %v3454 = vsub.s32 %v487, %v3422
    %v3455 = vsub.s32 %v487, %v3423
    %v3456 = vsub.s32 %v487, %v3424
    %v3457 = vsub.s32 %v487, %v3425
    %v3458 = vsub.s32 %v487, %v3426
    %v3459 = vsub.s32 %v487, %v3427
    %v3460 = vsub.s32 %v487, %v3428
    %v3461 = vsub.s32 %v487, %v3429
    %v3462 = vsub.s32 %v487, %v3430
    %v3463 = vsub.s32 %v487, %v3431
    %v3464 = vsub.s32 %v487, %v3432
    %v3465 = vsub.s32 %v487, %v3433
    %v3466 = vsub.s32 %v487, %v3434
    %v3467 = vsub.s32 %v487, %v3435
    %v3468 = vsub.s32 %v487, %v3436
    %vm3469 = vcmp.ge.s32.totalorder %v3437, 0
    %vm3470 = vcmp.ge.s32.totalorder %v3438, 0
    %vm3471 = vcmp.ge.s32.totalorder %v3439, 0
    %vm3472 = vcmp.ge.s32.totalorder %v3440, 0
    %vm3473 = vcmp.ge.s32.totalorder %v3441, 0
    %vm3474 = vcmp.ge.s32.totalorder %v3442, 0
    %vm3475 = vcmp.ge.s32.totalorder %v3443, 0
    %vm3476 = vcmp.ge.s32.totalorder %v3444, 0
    %vm3477 = vcmp.ge.s32.totalorder %v3445, 0
    %vm3478 = vcmp.ge.s32.totalorder %v3446, 0
    %vm3479 = vcmp.ge.s32.totalorder %v3447, 0
    %vm3480 = vcmp.ge.s32.totalorder %v3448, 0
    %vm3481 = vcmp.ge.s32.totalorder %v3449, 0
    %vm3482 = vcmp.ge.s32.totalorder %v3450, 0
    %vm3483 = vcmp.ge.s32.totalorder %v3451, 0
    %vm3484 = vcmp.ge.s32.totalorder %v3452, 0
    %vm3485 = vcmp.ge.s32.totalorder %v3453, 0
    %vm3486 = vcmp.ge.s32.totalorder %v3454, 0
    %vm3487 = vcmp.ge.s32.totalorder %v3455, 0
    %vm3488 = vcmp.ge.s32.totalorder %v3456, 0
    %vm3489 = vcmp.ge.s32.totalorder %v3457, 0
    %vm3490 = vcmp.ge.s32.totalorder %v3458, 0
    %vm3491 = vcmp.ge.s32.totalorder %v3459, 0
    %vm3492 = vcmp.ge.s32.totalorder %v3460, 0
    %vm3493 = vcmp.ge.s32.totalorder %v3461, 0
    %vm3494 = vcmp.ge.s32.totalorder %v3462, 0
    %vm3495 = vcmp.ge.s32.totalorder %v3463, 0
    %vm3496 = vcmp.ge.s32.totalorder %v3464, 0
    %vm3497 = vcmp.ge.s32.totalorder %v3465, 0
    %vm3498 = vcmp.ge.s32.totalorder %v3466, 0
    %vm3499 = vcmp.ge.s32.totalorder %v3467, 0
    %vm3500 = vcmp.ge.s32.totalorder %v3468, 0
    %vm3501 = vcmp.lt.s32.totalorder %v3437, 4
    %vm3502 = vcmp.lt.s32.totalorder %v3438, 4
    %vm3503 = vcmp.lt.s32.totalorder %v3439, 4
    %vm3504 = vcmp.lt.s32.totalorder %v3440, 4
    %vm3505 = vcmp.lt.s32.totalorder %v3441, 4
    %vm3506 = vcmp.lt.s32.totalorder %v3442, 4
    %vm3507 = vcmp.lt.s32.totalorder %v3443, 4
    %vm3508 = vcmp.lt.s32.totalorder %v3444, 4
    %vm3509 = vcmp.lt.s32.totalorder %v3445, 4
    %vm3510 = vcmp.lt.s32.totalorder %v3446, 4
    %vm3511 = vcmp.lt.s32.totalorder %v3447, 4
    %vm3512 = vcmp.lt.s32.totalorder %v3448, 4
    %vm3513 = vcmp.lt.s32.totalorder %v3449, 4
    %vm3514 = vcmp.lt.s32.totalorder %v3450, 4
    %vm3515 = vcmp.lt.s32.totalorder %v3451, 4
    %vm3516 = vcmp.lt.s32.totalorder %v3452, 4
    %vm3517 = vcmp.lt.s32.totalorder %v3453, 4
    %vm3518 = vcmp.lt.s32.totalorder %v3454, 4
    %vm3519 = vcmp.lt.s32.totalorder %v3455, 4
    %vm3520 = vcmp.lt.s32.totalorder %v3456, 4
    %vm3521 = vcmp.lt.s32.totalorder %v3457, 4
    %vm3522 = vcmp.lt.s32.totalorder %v3458, 4
    %vm3523 = vcmp.lt.s32.totalorder %v3459, 4
    %vm3524 = vcmp.lt.s32.totalorder %v3460, 4
    %vm3525 = vcmp.lt.s32.totalorder %v3461, 4
    %vm3526 = vcmp.lt.s32.totalorder %v3462, 4
    %vm3527 = vcmp.lt.s32.totalorder %v3463, 4
    %vm3528 = vcmp.lt.s32.totalorder %v3464, 4
    %vm3529 = vcmp.lt.s32.totalorder %v3465, 4
    %vm3530 = vcmp.lt.s32.totalorder %v3466, 4
    %vm3531 = vcmp.lt.s32.totalorder %v3467, 4
    %vm3532 = vcmp.lt.s32.totalorder %v3468, 4
    %vm3533 = vmand %vm3469, %vm3501
    %vm3534 = vmand %vm3470, %vm3502
    %vm3535 = vmand %vm3471, %vm3503
    %vm3536 = vmand %vm3472, %vm3504
    %vm3537 = vmand %vm3473, %vm3505
    %vm3538 = vmand %vm3474, %vm3506
    %vm3539 = vmand %vm3475, %vm3507
    %vm3540 = vmand %vm3476, %vm3508
    %vm3541 = vmand %vm3477, %vm3509
    %vm3542 = vmand %vm3478, %vm3510
    %vm3543 = vmand %vm3479, %vm3511
    %vm3544 = vmand %vm3480, %vm3512
    %vm3545 = vmand %vm3481, %vm3513
    %vm3546 = vmand %vm3482, %vm3514
    %vm3547 = vmand %vm3483, %vm3515
    %vm3548 = vmand %vm3484, %vm3516
    %vm3549 = vmand %vm3485, %vm3517
    %vm3550 = vmand %vm3486, %vm3518
    %vm3551 = vmand %vm3487, %vm3519
    %vm3552 = vmand %vm3488, %vm3520
    %vm3553 = vmand %vm3489, %vm3521
    %vm3554 = vmand %vm3490, %vm3522
    %vm3555 = vmand %vm3491, %vm3523
    %vm3556 = vmand %vm3492, %vm3524
    %vm3557 = vmand %vm3493, %vm3525
    %vm3558 = vmand %vm3494, %vm3526
    %vm3559 = vmand %vm3495, %vm3527
    %vm3560 = vmand %vm3496, %vm3528
    %vm3561 = vmand %vm3497, %vm3529
    %vm3562 = vmand %vm3498, %vm3530
    %vm3563 = vmand %vm3499, %vm3531
    %vm3564 = vmand %vm3500, %vm3532
    %v3565 = vsel %vm3533, %v2827, 0.0
    %v3566 = vsel %vm3534, %v2828, 0.0
    %v3567 = vsel %vm3535, %v2829, 0.0
    %v3568 = vsel %vm3536, %v2830, 0.0
    %v3569 = vsel %vm3537, %v2831, 0.0
    %v3570 = vsel %vm3538, %v2832, 0.0
    %v3571 = vsel %vm3539, %v2833, 0.0
    %v3572 = vsel %vm3540, %v2834, 0.0
    %v3573 = vsel %vm3541, %v2835, 0.0
    %v3574 = vsel %vm3542, %v2836, 0.0
    %v3575 = vsel %vm3543, %v2837, 0.0
    %v3576 = vsel %vm3544, %v2838, 0.0
    %v3577 = vsel %vm3545, %v2839, 0.0
    %v3578 = vsel %vm3546, %v2840, 0.0
    %v3579 = vsel %vm3547, %v2841, 0.0
    %v3580 = vsel %vm3548, %v2842, 0.0
    %v3581 = vsel %vm3549, %v2843, 0.0
    %v3582 = vsel %vm3550, %v2844, 0.0
    %v3583 = vsel %vm3551, %v2845, 0.0
    %v3584 = vsel %vm3552, %v2846, 0.0
    %v3585 = vsel %vm3553, %v2847, 0.0
    %v3586 = vsel %vm3554, %v2848, 0.0
    %v3587 = vsel %vm3555, %v2849, 0.0
    %v3588 = vsel %vm3556, %v2850, 0.0
    %v3589 = vsel %vm3557, %v2851, 0.0
    %v3590 = vsel %vm3558, %v2852, 0.0
    %v3591 = vsel %vm3559, %v2853, 0.0
    %v3592 = vsel %vm3560, %v2854, 0.0
    %v3593 = vsel %vm3561, %v2855, 0.0
    %v3594 = vsel %vm3562, %v2856, 0.0
    %v3595 = vsel %vm3563, %v2857, 0.0
    %v3596 = vsel %vm3564, %v2858, 0.0
    %vm3597 = vcmp.ge.s32.totalorder %v3437, 4
    %vm3598 = vcmp.ge.s32.totalorder %v3438, 4
    %vm3599 = vcmp.ge.s32.totalorder %v3439, 4
    %vm3600 = vcmp.ge.s32.totalorder %v3440, 4
    %vm3601 = vcmp.ge.s32.totalorder %v3441, 4
    %vm3602 = vcmp.ge.s32.totalorder %v3442, 4
    %vm3603 = vcmp.ge.s32.totalorder %v3443, 4
    %vm3604 = vcmp.ge.s32.totalorder %v3444, 4
    %vm3605 = vcmp.ge.s32.totalorder %v3445, 4
    %vm3606 = vcmp.ge.s32.totalorder %v3446, 4
    %vm3607 = vcmp.ge.s32.totalorder %v3447, 4
    %vm3608 = vcmp.ge.s32.totalorder %v3448, 4
    %vm3609 = vcmp.ge.s32.totalorder %v3449, 4
    %vm3610 = vcmp.ge.s32.totalorder %v3450, 4
    %vm3611 = vcmp.ge.s32.totalorder %v3451, 4
    %vm3612 = vcmp.ge.s32.totalorder %v3452, 4
    %vm3613 = vcmp.ge.s32.totalorder %v3453, 4
    %vm3614 = vcmp.ge.s32.totalorder %v3454, 4
    %vm3615 = vcmp.ge.s32.totalorder %v3455, 4
    %vm3616 = vcmp.ge.s32.totalorder %v3456, 4
    %vm3617 = vcmp.ge.s32.totalorder %v3457, 4
    %vm3618 = vcmp.ge.s32.totalorder %v3458, 4
    %vm3619 = vcmp.ge.s32.totalorder %v3459, 4
    %vm3620 = vcmp.ge.s32.totalorder %v3460, 4
    %vm3621 = vcmp.ge.s32.totalorder %v3461, 4
    %vm3622 = vcmp.ge.s32.totalorder %v3462, 4
    %vm3623 = vcmp.ge.s32.totalorder %v3463, 4
    %vm3624 = vcmp.ge.s32.totalorder %v3464, 4
    %vm3625 = vcmp.ge.s32.totalorder %v3465, 4
    %vm3626 = vcmp.ge.s32.totalorder %v3466, 4
    %vm3627 = vcmp.ge.s32.totalorder %v3467, 4
    %vm3628 = vcmp.ge.s32.totalorder %v3468, 4
    %vm3629 = vcmp.lt.s32.totalorder %v3437, 8
    %vm3630 = vcmp.lt.s32.totalorder %v3438, 8
    %vm3631 = vcmp.lt.s32.totalorder %v3439, 8
    %vm3632 = vcmp.lt.s32.totalorder %v3440, 8
    %vm3633 = vcmp.lt.s32.totalorder %v3441, 8
    %vm3634 = vcmp.lt.s32.totalorder %v3442, 8
    %vm3635 = vcmp.lt.s32.totalorder %v3443, 8
    %vm3636 = vcmp.lt.s32.totalorder %v3444, 8
    %vm3637 = vcmp.lt.s32.totalorder %v3445, 8
    %vm3638 = vcmp.lt.s32.totalorder %v3446, 8
    %vm3639 = vcmp.lt.s32.totalorder %v3447, 8
    %vm3640 = vcmp.lt.s32.totalorder %v3448, 8
    %vm3641 = vcmp.lt.s32.totalorder %v3449, 8
    %vm3642 = vcmp.lt.s32.totalorder %v3450, 8
    %vm3643 = vcmp.lt.s32.totalorder %v3451, 8
    %vm3644 = vcmp.lt.s32.totalorder %v3452, 8
    %vm3645 = vcmp.lt.s32.totalorder %v3453, 8
    %vm3646 = vcmp.lt.s32.totalorder %v3454, 8
    %vm3647 = vcmp.lt.s32.totalorder %v3455, 8
    %vm3648 = vcmp.lt.s32.totalorder %v3456, 8
    %vm3649 = vcmp.lt.s32.totalorder %v3457, 8
    %vm3650 = vcmp.lt.s32.totalorder %v3458, 8
    %vm3651 = vcmp.lt.s32.totalorder %v3459, 8
    %vm3652 = vcmp.lt.s32.totalorder %v3460, 8
    %vm3653 = vcmp.lt.s32.totalorder %v3461, 8
    %vm3654 = vcmp.lt.s32.totalorder %v3462, 8
    %vm3655 = vcmp.lt.s32.totalorder %v3463, 8
    %vm3656 = vcmp.lt.s32.totalorder %v3464, 8
    %vm3657 = vcmp.lt.s32.totalorder %v3465, 8
    %vm3658 = vcmp.lt.s32.totalorder %v3466, 8
    %vm3659 = vcmp.lt.s32.totalorder %v3467, 8
    %vm3660 = vcmp.lt.s32.totalorder %v3468, 8
    %vm3661 = vmand %vm3597, %vm3629
    %vm3662 = vmand %vm3598, %vm3630
    %vm3663 = vmand %vm3599, %vm3631
    %vm3664 = vmand %vm3600, %vm3632
    %vm3665 = vmand %vm3601, %vm3633
    %vm3666 = vmand %vm3602, %vm3634
    %vm3667 = vmand %vm3603, %vm3635
    %vm3668 = vmand %vm3604, %vm3636
    %vm3669 = vmand %vm3605, %vm3637
    %vm3670 = vmand %vm3606, %vm3638
    %vm3671 = vmand %vm3607, %vm3639
    %vm3672 = vmand %vm3608, %vm3640
    %vm3673 = vmand %vm3609, %vm3641
    %vm3674 = vmand %vm3610, %vm3642
    %vm3675 = vmand %vm3611, %vm3643
    %vm3676 = vmand %vm3612, %vm3644
    %vm3677 = vmand %vm3613, %vm3645
    %vm3678 = vmand %vm3614, %vm3646
    %vm3679 = vmand %vm3615, %vm3647
    %vm3680 = vmand %vm3616, %vm3648
    %vm3681 = vmand %vm3617, %vm3649
    %vm3682 = vmand %vm3618, %vm3650
    %vm3683 = vmand %vm3619, %vm3651
    %vm3684 = vmand %vm3620, %vm3652
    %vm3685 = vmand %vm3621, %vm3653
    %vm3686 = vmand %vm3622, %vm3654
    %vm3687 = vmand %vm3623, %vm3655
    %vm3688 = vmand %vm3624, %vm3656
    %vm3689 = vmand %vm3625, %vm3657
    %vm3690 = vmand %vm3626, %vm3658
    %vm3691 = vmand %vm3627, %vm3659
    %vm3692 = vmand %vm3628, %vm3660
    %v3693 = vsel %vm3661, %v2795, 0.0
    %v3694 = vsel %vm3662, %v2796, 0.0
    %v3695 = vsel %vm3663, %v2797, 0.0
    %v3696 = vsel %vm3664, %v2798, 0.0
    %v3697 = vsel %vm3665, %v2799, 0.0
    %v3698 = vsel %vm3666, %v2800, 0.0
    %v3699 = vsel %vm3667, %v2801, 0.0
    %v3700 = vsel %vm3668, %v2802, 0.0
    %v3701 = vsel %vm3669, %v2803, 0.0
    %v3702 = vsel %vm3670, %v2804, 0.0
    %v3703 = vsel %vm3671, %v2805, 0.0
    %v3704 = vsel %vm3672, %v2806, 0.0
    %v3705 = vsel %vm3673, %v2807, 0.0
    %v3706 = vsel %vm3674, %v2808, 0.0
    %v3707 = vsel %vm3675, %v2809, 0.0
    %v3708 = vsel %vm3676, %v2810, 0.0
    %v3709 = vsel %vm3677, %v2811, 0.0
    %v3710 = vsel %vm3678, %v2812, 0.0
    %v3711 = vsel %vm3679, %v2813, 0.0
    %v3712 = vsel %vm3680, %v2814, 0.0
    %v3713 = vsel %vm3681, %v2815, 0.0
    %v3714 = vsel %vm3682, %v2816, 0.0
    %v3715 = vsel %vm3683, %v2817, 0.0
    %v3716 = vsel %vm3684, %v2818, 0.0
    %v3717 = vsel %vm3685, %v2819, 0.0
    %v3718 = vsel %vm3686, %v2820, 0.0
    %v3719 = vsel %vm3687, %v2821, 0.0
    %v3720 = vsel %vm3688, %v2822, 0.0
    %v3721 = vsel %vm3689, %v2823, 0.0
    %v3722 = vsel %vm3690, %v2824, 0.0
    %v3723 = vsel %vm3691, %v2825, 0.0
    %v3724 = vsel %vm3692, %v2826, 0.0
    %v3725 = vadd.f32 %v3565, %v3693
    %v3726 = vadd.f32 %v3566, %v3694
    %v3727 = vadd.f32 %v3567, %v3695
    %v3728 = vadd.f32 %v3568, %v3696
    %v3729 = vadd.f32 %v3569, %v3697
    %v3730 = vadd.f32 %v3570, %v3698
    %v3731 = vadd.f32 %v3571, %v3699
    %v3732 = vadd.f32 %v3572, %v3700
    %v3733 = vadd.f32 %v3573, %v3701
    %v3734 = vadd.f32 %v3574, %v3702
    %v3735 = vadd.f32 %v3575, %v3703
    %v3736 = vadd.f32 %v3576, %v3704
    %v3737 = vadd.f32 %v3577, %v3705
    %v3738 = vadd.f32 %v3578, %v3706
    %v3739 = vadd.f32 %v3579, %v3707
    %v3740 = vadd.f32 %v3580, %v3708
    %v3741 = vadd.f32 %v3581, %v3709
    %v3742 = vadd.f32 %v3582, %v3710
    %v3743 = vadd.f32 %v3583, %v3711
    %v3744 = vadd.f32 %v3584, %v3712
    %v3745 = vadd.f32 %v3585, %v3713
    %v3746 = vadd.f32 %v3586, %v3714
    %v3747 = vadd.f32 %v3587, %v3715
    %v3748 = vadd.f32 %v3588, %v3716
    %v3749 = vadd.f32 %v3589, %v3717
    %v3750 = vadd.f32 %v3590, %v3718
    %v3751 = vadd.f32 %v3591, %v3719
    %v3752 = vadd.f32 %v3592, %v3720
    %v3753 = vadd.f32 %v3593, %v3721
    %v3754 = vadd.f32 %v3594, %v3722
    %v3755 = vadd.f32 %v3595, %v3723
    %v3756 = vadd.f32 %v3596, %v3724
    %v3757 = vmul.f32 %v3725, %v3326
    %v3758 = vmul.f32 %v3726, %v3328
    %v3759 = vmul.f32 %v3727, %v3331
    %v3760 = vmul.f32 %v3728, %v3333
    %v3761 = vmul.f32 %v3729, %v3336
    %v3762 = vmul.f32 %v3730, %v3338
    %v3763 = vmul.f32 %v3731, %v3341
    %v3764 = vmul.f32 %v3732, %v3343
    %v3765 = vmul.f32 %v3733, %v3346
    %v3766 = vmul.f32 %v3734, %v3348
    %v3767 = vmul.f32 %v3735, %v3351
    %v3768 = vmul.f32 %v3736, %v3353
    %v3769 = vmul.f32 %v3737, %v3356
    %v3770 = vmul.f32 %v3738, %v3358
    %v3771 = vmul.f32 %v3739, %v3361
    %v3772 = vmul.f32 %v3740, %v3363
    %v3773 = vmul.f32 %v3741, %v3366
    %v3774 = vmul.f32 %v3742, %v3368
    %v3775 = vmul.f32 %v3743, %v3371
    %v3776 = vmul.f32 %v3744, %v3373
    %v3777 = vmul.f32 %v3745, %v3376
    %v3778 = vmul.f32 %v3746, %v3378
    %v3779 = vmul.f32 %v3747, %v3381
    %v3780 = vmul.f32 %v3748, %v3383
    %v3781 = vmul.f32 %v3749, %v3386
    %v3782 = vmul.f32 %v3750, %v3388
    %v3783 = vmul.f32 %v3751, %v3391
    %v3784 = vmul.f32 %v3752, %v3393
    %v3785 = vmul.f32 %v3753, %v3396
    %v3786 = vmul.f32 %v3754, %v3398
    %v3787 = vmul.f32 %v3755, %v3401
    %v3788 = vmul.f32 %v3756, %v3403
    %v3790 = vsel %vm2021, %v3757, 0
    %v3793 = vsel %vm2021, %v3758, 0
    %v3796 = vsel %vm2021, %v3759, 0
    %v3799 = vsel %vm2021, %v3760, 0
    %v3802 = vsel %vm2021, %v3761, 0
    %v3805 = vsel %vm2021, %v3762, 0
    %v3808 = vsel %vm2021, %v3763, 0
    %v3811 = vsel %vm2021, %v3764, 0
    %v3814 = vsel %vm2021, %v3765, 0
    %v3817 = vsel %vm2021, %v3766, 0
    %v3820 = vsel %vm2021, %v3767, 0
    %v3823 = vsel %vm2021, %v3768, 0
    %v3826 = vsel %vm2021, %v3769, 0
    %v3829 = vsel %vm2021, %v3770, 0
    %v3832 = vsel %vm2021, %v3771, 0
    %v3835 = vsel %vm2021, %v3772, 0
    %v3838 = vsel %vm2021, %v3773, 0
    %v3841 = vsel %vm2021, %v3774, 0
    %v3844 = vsel %vm2021, %v3775, 0
    %v3847 = vsel %vm2021, %v3776, 0
    %v3850 = vsel %vm2021, %v3777, 0
    %v3853 = vsel %vm2021, %v3778, 0
    %v3856 = vsel %vm2021, %v3779, 0
    %v3859 = vsel %vm2021, %v3780, 0
    %v3862 = vsel %vm2021, %v3781, 0
    %v3865 = vsel %vm2021, %v3782, 0
    %v3868 = vsel %vm2021, %v3783, 0
    %v3871 = vsel %vm2021, %v3784, 0
    %v3874 = vsel %vm2021, %v3785, 0
    %v3877 = vsel %vm2021, %v3786, 0
    %v3880 = vsel %vm2021, %v3787, 0
    %v3883 = vsel %vm2021, %v3788, 0
    %3885 = vmatpush.msra.mxu0 0.0
    %3886 = vmatpush.msra.mxu0 0.0
    %3887 = vmatpush.msra.mxu0 0.0
    %3888 = vmatpush.msra.mxu0 0.0
    %3889 = vmatpush.msra.mxu0 0.0
    %3890 = vmatpush.msra.mxu0 0.0
    %3891 = vmatpush.msra.mxu0 0.0
    %3892 = vmatpush.msra.mxu0 0.0
    %3893 = vmatpush.msra.mxu0 %v495
    %3894 = vmatpush.msra.mxu0 %v494
    %3895 = vmatpush.msra.mxu0 %v493
    %3896 = vmatpush.msra.mxu0 %v492
    %3897 = vmatpush.msra.mxu0 %v491
    %3898 = vmatpush.msra.mxu0 %v490
    %3899 = vmatpush.msra.mxu0 %v489
    %3900 = vmatpush.msra.mxu0 %v488
    %3901 = vmatmul.f32.gmra.mxu0 %v3790
    %v3902 = vpop.f32.mrf.mxu0
    %v3903 = vadd.f32 0.0, %v3902
    %3904 = vmatmul.f32.gmra.mxu0 %v3793
    %v3905 = vpop.f32.mrf.mxu0
    %v3906 = vadd.f32 0.0, %v3905
    %3907 = vmatmul.f32.gmra.mxu0 %v3796
    %v3908 = vpop.f32.mrf.mxu0
    %v3909 = vadd.f32 0.0, %v3908
    %3910 = vmatmul.f32.gmra.mxu0 %v3799
    %v3911 = vpop.f32.mrf.mxu0
    %v3912 = vadd.f32 0.0, %v3911
    %3913 = vmatmul.f32.gmra.mxu0 %v3802
    %v3914 = vpop.f32.mrf.mxu0
    %v3915 = vadd.f32 0.0, %v3914
    %3916 = vmatmul.f32.gmra.mxu0 %v3805
    %v3917 = vpop.f32.mrf.mxu0
    %v3918 = vadd.f32 0.0, %v3917
    %3919 = vmatmul.f32.gmra.mxu0 %v3808
    %v3920 = vpop.f32.mrf.mxu0
    %v3921 = vadd.f32 0.0, %v3920
    %3922 = vmatmul.f32.gmra.mxu0 %v3811
    %v3923 = vpop.f32.mrf.mxu0
    %v3924 = vadd.f32 0.0, %v3923
    %3925 = vmatmul.f32.gmra.mxu0 %v3814
    %v3926 = vpop.f32.mrf.mxu0
    %v3927 = vadd.f32 0.0, %v3926
    %3928 = vmatmul.f32.gmra.mxu0 %v3817
    %v3929 = vpop.f32.mrf.mxu0
    %v3930 = vadd.f32 0.0, %v3929
    %3931 = vmatmul.f32.gmra.mxu0 %v3820
    %v3932 = vpop.f32.mrf.mxu0
    %v3933 = vadd.f32 0.0, %v3932
    %3934 = vmatmul.f32.gmra.mxu0 %v3823
    %v3935 = vpop.f32.mrf.mxu0
    %v3936 = vadd.f32 0.0, %v3935
    %3937 = vmatmul.f32.gmra.mxu0 %v3826
    %v3938 = vpop.f32.mrf.mxu0
    %v3939 = vadd.f32 0.0, %v3938
    %3940 = vmatmul.f32.gmra.mxu0 %v3829
    %v3941 = vpop.f32.mrf.mxu0
    %v3942 = vadd.f32 0.0, %v3941
    %3943 = vmatmul.f32.gmra.mxu0 %v3832
    %v3944 = vpop.f32.mrf.mxu0
    %v3945 = vadd.f32 0.0, %v3944
    %3946 = vmatmul.f32.gmra.mxu0 %v3835
    %v3947 = vpop.f32.mrf.mxu0
    %v3948 = vadd.f32 0.0, %v3947
    %3949 = vmatmul.f32.gmra.mxu0 %v3838
    %v3950 = vpop.f32.mrf.mxu0
    %v3951 = vadd.f32 0.0, %v3950
    %3952 = vmatmul.f32.gmra.mxu0 %v3841
    %v3953 = vpop.f32.mrf.mxu0
    %v3954 = vadd.f32 0.0, %v3953
    %3955 = vmatmul.f32.gmra.mxu0 %v3844
    %v3956 = vpop.f32.mrf.mxu0
    %v3957 = vadd.f32 0.0, %v3956
    %3958 = vmatmul.f32.gmra.mxu0 %v3847
    %v3959 = vpop.f32.mrf.mxu0
    %v3960 = vadd.f32 0.0, %v3959
    %3961 = vmatmul.f32.gmra.mxu0 %v3850
    %v3962 = vpop.f32.mrf.mxu0
    %v3963 = vadd.f32 0.0, %v3962
    %3964 = vmatmul.f32.gmra.mxu0 %v3853
    %v3965 = vpop.f32.mrf.mxu0
    %v3966 = vadd.f32 0.0, %v3965
    %3967 = vmatmul.f32.gmra.mxu0 %v3856
    %v3968 = vpop.f32.mrf.mxu0
    %v3969 = vadd.f32 0.0, %v3968
    %3970 = vmatmul.f32.gmra.mxu0 %v3859
    %v3971 = vpop.f32.mrf.mxu0
    %v3972 = vadd.f32 0.0, %v3971
    %3973 = vmatmul.f32.gmra.mxu0 %v3862
    %v3974 = vpop.f32.mrf.mxu0
    %v3975 = vadd.f32 0.0, %v3974
    %3976 = vmatmul.f32.gmra.mxu0 %v3865
    %v3977 = vpop.f32.mrf.mxu0
    %v3978 = vadd.f32 0.0, %v3977
    %3979 = vmatmul.f32.gmra.mxu0 %v3868
    %v3980 = vpop.f32.mrf.mxu0
    %v3981 = vadd.f32 0.0, %v3980
    %3982 = vmatmul.f32.gmra.mxu0 %v3871
    %v3983 = vpop.f32.mrf.mxu0
    %v3984 = vadd.f32 0.0, %v3983
    %3985 = vmatmul.f32.gmra.mxu0 %v3874
    %v3986 = vpop.f32.mrf.mxu0
    %v3987 = vadd.f32 0.0, %v3986
    %3988 = vmatmul.f32.gmra.mxu0 %v3877
    %v3989 = vpop.f32.mrf.mxu0
    %v3990 = vadd.f32 0.0, %v3989
    %3991 = vmatmul.f32.gmra.mxu0 %v3880
    %v3992 = vpop.f32.mrf.mxu0
    %v3993 = vadd.f32 0.0, %v3992
    %3994 = vmatmul.f32.gmra.mxu0 %v3883
    %v3995 = vpop.f32.mrf.mxu0
    %v3996 = vadd.f32 0.0, %v3995
    %3997 = vdwg.mxu0
    %s3998 = scalar_lea.vmem %s3, 256
    %3999 = vst.msk [vmem:[%s3998] sm:$0xff] %vm2231, %v3903
    %4000 = vst.msk [vmem:[%s3998 + $0x8] sm:$0xff] %vm2231, %v3906
    %4001 = vst.msk [vmem:[%s3998 + $0x10] sm:$0xff] %vm2231, %v3909
    %4002 = vst.msk [vmem:[%s3998 + $0x18] sm:$0xff] %vm2231, %v3912
    %4003 = vst.msk [vmem:[%s3998 + $0x20] sm:$0xff] %vm2231, %v3915
    %4004 = vst.msk [vmem:[%s3998 + $0x28] sm:$0xff] %vm2231, %v3918
    %4005 = vst.msk [vmem:[%s3998 + $0x30] sm:$0xff] %vm2231, %v3921
    %4006 = vst.msk [vmem:[%s3998 + $0x38] sm:$0xff] %vm2231, %v3924
    %4007 = vst.msk [vmem:[%s3998 + $0x40] sm:$0xff] %vm2231, %v3927
    %4008 = vst.msk [vmem:[%s3998 + $0x48] sm:$0xff] %vm2231, %v3930
    %4009 = vst.msk [vmem:[%s3998 + $0x50] sm:$0xff] %vm2231, %v3933
    %4010 = vst.msk [vmem:[%s3998 + $0x58] sm:$0xff] %vm2231, %v3936
    %4011 = vst.msk [vmem:[%s3998 + $0x60] sm:$0xff] %vm2231, %v3939
    %4012 = vst.msk [vmem:[%s3998 + $0x68] sm:$0xff] %vm2231, %v3942
    %4013 = vst.msk [vmem:[%s3998 + $0x70] sm:$0xff] %vm2231, %v3945
    %4014 = vst.msk [vmem:[%s3998 + $0x78] sm:$0xff] %vm2231, %v3948
    %4015 = vst.msk [vmem:[%s3998 + $0x80] sm:$0xff] %vm2231, %v3951
    %4016 = vst.msk [vmem:[%s3998 + $0x88] sm:$0xff] %vm2231, %v3954
    %4017 = vst.msk [vmem:[%s3998 + $0x90] sm:$0xff] %vm2231, %v3957
    %4018 = vst.msk [vmem:[%s3998 + $0x98] sm:$0xff] %vm2231, %v3960
    %4019 = vst.msk [vmem:[%s3998 + $0xa0] sm:$0xff] %vm2231, %v3963
    %4020 = vst.msk [vmem:[%s3998 + $0xa8] sm:$0xff] %vm2231, %v3966
    %4021 = vst.msk [vmem:[%s3998 + $0xb0] sm:$0xff] %vm2231, %v3969
    %4022 = vst.msk [vmem:[%s3998 + $0xb8] sm:$0xff] %vm2231, %v3972
    %4023 = vst.msk [vmem:[%s3998 + $0xc0] sm:$0xff] %vm2231, %v3975
    %4024 = vst.msk [vmem:[%s3998 + $0xc8] sm:$0xff] %vm2231, %v3978
    %4025 = vst.msk [vmem:[%s3998 + $0xd0] sm:$0xff] %vm2231, %v3981
    %4026 = vst.msk [vmem:[%s3998 + $0xd8] sm:$0xff] %vm2231, %v3984
    %4027 = vst.msk [vmem:[%s3998 + $0xe0] sm:$0xff] %vm2231, %v3987
    %4028 = vst.msk [vmem:[%s3998 + $0xe8] sm:$0xff] %vm2231, %v3990
    %4029 = vst.msk [vmem:[%s3998 + $0xf0] sm:$0xff] %vm2231, %v3993
    %4030 = vst.msk [vmem:[%s3998 + $0xf8] sm:$0xff] %vm2231, %v3996
    // Predicated region
    $region18: #{tpu_custom_call.1} parent=1 // pred_check
      _
    $region19: #{tpu_custom_call.1} parent=1 // pred_check_branch
      %4032 = sbr.rel (0) target = $region21
    $region20: #{tpu_custom_call.1} parent=1 // pred_region
      _
    $region21: #{tpu_custom_call.1} parent=1 // pred_fallthru
      _
    // Predicated region
    $region22: #{tpu_custom_call.1} parent=1 // pred_check
      _
    $region23: #{tpu_custom_call.1} parent=1 // pred_check_branch
      %4034 = sbr.rel (0) target = $region25
    $region24: #{tpu_custom_call.1} parent=1 // pred_region
      _
    $region25: #{tpu_custom_call.1} parent=1 // pred_fallthru
      _
    %4035 = vsyncpa [#allocation3], 1

</llo_original>
